<compile_context>
chip_gen: v6e
topology: v6e:2x2x1
jax: 0.10.0
libtpu: 0.0.40
codegen_flags: <defaults>
</compile_context>

<pallas_src>
import jax
import jax.numpy as jnp
from jax.experimental import pallas as pl
from jax.experimental.pallas import tpu as pltpu


# ---------------------------------------------------------------------------
# Fused forward
# ---------------------------------------------------------------------------
def head_vgg_forward(x_nchw, kp):
    """x_nchw: (N, 3, H, W) float32 (PyTorch layout); kp: prepared params."""
    n, cin, H0, W0 = x_nchw.shape
    c1 = kp["conv1_w"].shape[1]
    c2 = kp["conv2_w"].shape[1]
    H1, W1 = H0 // 2, W0 // 2            # after maxpool1
    H2, W2 = H1 // 2, W1 // 2            # after maxpool2
    assert H0 % 4 == 0 and W0 % 4 == 0
    # AdaptiveAvgPool2d((2,2)) on an H2 x W2 map equals a 2x2 avg pool iff H2=W2=4.
    assert H2 == 4 and W2 == 4
    num_classes = kp["head_w"].shape[1]

    # Single XLA transpose NCHW -> NHWC so channels sit on the lane dim.
    x = jnp.transpose(x_nchw, (0, 2, 3, 1)).astype(jnp.float32)

    def kernel(x_r, w1_r, b1_r, w2_r, b2_r, wf1_r, bf1_r, wf2_r, bf2_r,
               wh_r, bh_r, o_r, pad1, pad2, t2, t3):
        # ---- conv1 (3x3, pad=1) + ReLU: in-kernel zero padding + one im2col matmul
        pad1[...] = jnp.zeros(pad1.shape, pad1.dtype)
        pad1[:, 1:H0 + 1, 1:W0 + 1, :] = x_r[...]
        cols1 = jnp.concatenate(
            [pad1[:, dy:dy + H0, dx:dx + W0, :] for dy in range(3) for dx in range(3)],
            axis=-1).reshape(n * H0 * W0, 9 * cin)
        a1 = jnp.dot(cols1, w1_r[...], preferred_element_type=jnp.float32) + b1_r[...]
        a1 = jnp.maximum(a1, 0.0)                                    # (n*H0*W0, c1)

        # ---- maxpool1 2x2: H via layout-preserving reshape + max, W via unrolled
        #      column-pair max written directly into conv2's padded scratch.
        v1 = a1.reshape(n, H1, 2, W0, c1)                            # minor dims (W0, c1) unchanged
        rmax1 = jnp.maximum(v1[:, :, 0], v1[:, :, 1])                # (n, H1, W0, c1)
        pad2[...] = jnp.zeros(pad2.shape, pad2.dtype)
        for wo in range(W1):
            pad2[:, 1:H1 + 1, 1 + wo:2 + wo, :] = jnp.maximum(
                rmax1[:, :, 2 * wo:2 * wo + 1, :],
                rmax1[:, :, 2 * wo + 1:2 * wo + 2, :])

        # ---- conv2 (3x3, pad=1) + ReLU
        cols2 = jnp.concatenate(
            [pad2[:, dy:dy + H1, dx:dx + W1, :] for dy in range(3) for dx in range(3)],
            axis=-1).reshape(n * H1 * W1, 9 * c1)
        a2 = jnp.dot(cols2, w2_r[...], preferred_element_type=jnp.float32) + b2_r[...]
        a2 = jnp.maximum(a2, 0.0)                                    # (n*H1*W1, c2)

        # ---- maxpool2 2x2
        v2 = a2.reshape(n, H2, 2, W1, c2)
        rmax2 = jnp.maximum(v2[:, :, 0], v2[:, :, 1])                # (n, H2, W1, c2)
        for wo in range(W2):
            t2[:, :, wo:wo + 1, :] = jnp.maximum(
                rmax2[:, :, 2 * wo:2 * wo + 1, :],
                rmax2[:, :, 2 * wo + 1:2 * wo + 2, :])

        # ---- AdaptiveAvgPool2d((2,2)) on the 4x4 map == 2x2 average pool
        v3 = t2[...].reshape(n, 2, 2, W2, c2)
        ravg = (v3[:, :, 0] + v3[:, :, 1]) * 0.5                     # (n, 2, W2, c2)
        for wo in range(2):
            t3[:, :, wo:wo + 1, :] = (ravg[:, :, 2 * wo:2 * wo + 1, :] +
                                      ravg[:, :, 2 * wo + 1:2 * wo + 2, :]) * 0.5

        # ---- flatten in (h, w, c) order; fc1 weight rows were pre-permuted to match
        #      torch.flatten(x, 1)'s NCHW (c, h, w) order. Then the 3 dense layers.
        feats = jnp.concatenate(
            [t3[:, i, j, :] for i in range(2) for j in range(2)], axis=-1)  # (n, 4*c2)
        y = jnp.dot(feats, wf1_r[...], preferred_element_type=jnp.float32) + bf1_r[...]
        y = jnp.maximum(y, 0.0)
        # TODO(synk): nn.Dropout is identity in eval mode; training-mode dropout not implemented.
        y = jnp.dot(y, wf2_r[...], preferred_element_type=jnp.float32) + bf2_r[...]
        y = jnp.maximum(y, 0.0)   # module_head ReLU
        y = jnp.dot(y, wh_r[...], preferred_element_type=jnp.float32) + bh_r[...]
        o_r[...] = y

    return pl.pallas_call(
        kernel,
        out_shape=jax.ShapeDtypeStruct((n, num_classes), jnp.float32),
        scratch_shapes=[
            pltpu.VMEM((n, H0 + 2, W0 + 2, cin), jnp.float32),  # zero-padded conv1 input
            pltpu.VMEM((n, H1 + 2, W1 + 2, c1), jnp.float32),   # zero-padded conv2 input (= pool1)
            pltpu.VMEM((n, H2, W2, c2), jnp.float32),           # maxpool2 output
            pltpu.VMEM((n, 2, 2, c2), jnp.float32),             # avgpool output
        ],
    )(x, kp["conv1_w"], kp["conv1_b"], kp["conv2_w"], kp["conv2_b"],
      kp["fc1_w"], kp["fc1_b"], kp["fc2_w"], kp["fc2_b"],
      kp["head_w"], kp["head_b"])


# ---------------------------------------------------------------------------
# Parameters: PyTorch-layout init + one-time conversion to kernel layouts.
# ---------------------------------------------------------------------------
def init_params(key):
    """Synthetic 'original_model' + module_head weights in PyTorch layouts."""
    ks = jax.random.split(key, 10)

    def nrm(k, shape, scale):
        return (scale * jax.random.normal(k, shape)).astype(jnp.float32)

    return {
        "conv1_w": nrm(ks[0], (8, 3, 3, 3), 0.2),    # (Cout, Cin, kH, kW)
        "conv1_b": nrm(ks[1], (8,), 0.1),
        "conv2_w": nrm(ks[2], (16, 8, 3, 3), 0.1),
        "conv2_b": nrm(ks[3], (16,), 0.1),
        "fc1_w": nrm(ks[4], (32, 64), 0.1),          # (out, in); in-index = c*4 + h*2 + w
        "fc1_b": nrm(ks[5], (32,), 0.1),
        "fc2_w": nrm(ks[6], (10, 32), 0.1),
        "fc2_b": nrm(ks[7], (10,), 0.1),
        "head_w": nrm(ks[8], (2, 10), 0.1),
        "head_b": nrm(ks[9], (2,), 0.1),
    }


def prepare_params(p):
    """One-time weight prep (hoisted out of the per-forward path)."""
    def conv_im2col(wc):  # (Cout, Cin, 3, 3) -> (9*Cin, Cout), row = (dy*3+dx)*Cin + ci
        cout, cin = wc.shape[0], wc.shape[1]
        return jnp.transpose(wc, (2, 3, 1, 0)).reshape(9 * cin, cout).astype(jnp.float32)

    def fc1_nhwc(wf, c, hh, ww):  # (out, c*hh*ww) -> (hh*ww*c, out), row = (h*ww+w)*c + ci
        out = wf.shape[0]
        return (wf.T.reshape(c, hh, ww, out)
                    .transpose(1, 2, 0, 3)
                    .reshape(hh * ww * c, out).astype(jnp.float32))

    return {
        "conv1_w": conv_im2col(p["conv1_w"]),
        "conv1_b": p["conv1_b"].reshape(1, -1).astype(jnp.float32),
        "conv2_w": conv_im2col(p["conv2_w"]),
        "conv2_b": p["conv2_b"].reshape(1, -1).astype(jnp.float32),
        "fc1_w": fc1_nhwc(p["fc1_w"], 16, 2, 2),
        "fc1_b": p["fc1_b"].reshape(1, -1).astype(jnp.float32),
        "fc2_w": p["fc2_w"].T.astype(jnp.float32),
        "fc2_b": p["fc2_b"].reshape(1, -1).astype(jnp.float32),
        "head_w": p["head_w"].T.astype(jnp.float32),
        "head_b": p["head_b"].reshape(1, -1).astype(jnp.float32),
    }


if __name__ == "__main__":
    key = jax.random.PRNGKey(0)
    k_x, k_p = jax.random.split(key)
    x = jax.random.normal(k_x, (2, 3, 16, 16), dtype=jnp.float32)  # NCHW
    kparams = prepare_params(init_params(k_p))

    fwd = jax.jit(head_vgg_forward)
    out = jax.block_until_ready(fwd(x, kparams))
    assert out.shape == (2, 2), out.shape
    print("KERNEL_OK")
</pallas_src>

<mosaic_0001>
module attributes {stable_mosaic.version = 11 : i64} {
  func.func @kernel(%arg0: memref<2x16x16x3xf32, #tpu.memory_space<vmem>>, %arg1: memref<27x8xf32, #tpu.memory_space<vmem>>, %arg2: memref<1x8xf32, #tpu.memory_space<vmem>>, %arg3: memref<72x16xf32, #tpu.memory_space<vmem>>, %arg4: memref<1x16xf32, #tpu.memory_space<vmem>>, %arg5: memref<64x32xf32, #tpu.memory_space<vmem>>, %arg6: memref<1x32xf32, #tpu.memory_space<vmem>>, %arg7: memref<32x10xf32, #tpu.memory_space<vmem>>, %arg8: memref<1x10xf32, #tpu.memory_space<vmem>>, %arg9: memref<10x2xf32, #tpu.memory_space<vmem>>, %arg10: memref<1x2xf32, #tpu.memory_space<vmem>>, %arg11: memref<2x2xf32, #tpu.memory_space<vmem>>, %arg12: memref<2x18x18x3xf32, #tpu.memory_space<vmem>>, %arg13: memref<2x10x10x8xf32, #tpu.memory_space<vmem>>, %arg14: memref<2x4x4x16xf32, #tpu.memory_space<vmem>>, %arg15: memref<2x2x2x16xf32, #tpu.memory_space<vmem>>) attributes {dimension_semantics = [], scalar_prefetch = 0 : i64, scratch_operands = 4 : i64, tpu.core_type = #tpu.core_type<tc>} {
    %cst = arith.constant 0.000000e+00 : f32
    %0 = vector.broadcast %cst : f32 to vector<2x18x18x3xf32>
    %c0 = arith.constant 0 : index
    %c0_0 = arith.constant 0 : index
    %c0_1 = arith.constant 0 : index
    %c0_2 = arith.constant 0 : index
    %1 = vector.load %arg12[%c0, %c0_0, %c0_1, %c0_2] : memref<2x18x18x3xf32, #tpu.memory_space<vmem>>, vector<2x18x18x3xf32>
    tpu.vector_store %arg12[%c0, %c0_0, %c0_1, %c0_2], %0 {strides = array<i32>} : memref<2x18x18x3xf32, #tpu.memory_space<vmem>>, vector<2x18x18x3xf32>,
    %c0_3 = arith.constant 0 : index
    %c0_4 = arith.constant 0 : index
    %c0_5 = arith.constant 0 : index
    %c0_6 = arith.constant 0 : index
    %2 = vector.load %arg0[%c0_3, %c0_4, %c0_5, %c0_6] : memref<2x16x16x3xf32, #tpu.memory_space<vmem>>, vector<2x16x16x3xf32>
    %c0_7 = arith.constant 0 : index
    %c1 = arith.constant 1 : index
    %c1_8 = arith.constant 1 : index
    %c0_9 = arith.constant 0 : index
    %3 = vector.load %arg12[%c0_7, %c1, %c1_8, %c0_9] : memref<2x18x18x3xf32, #tpu.memory_space<vmem>>, vector<2x16x16x3xf32>
    tpu.vector_store %arg12[%c0_7, %c1, %c1_8, %c0_9], %2 {strides = array<i32>} : memref<2x18x18x3xf32, #tpu.memory_space<vmem>>, vector<2x16x16x3xf32>,
    %c0_10 = arith.constant 0 : index
    %c0_11 = arith.constant 0 : index
    %c0_12 = arith.constant 0 : index
    %c0_13 = arith.constant 0 : index
    %4 = vector.load %arg12[%c0_10, %c0_11, %c0_12, %c0_13] : memref<2x18x18x3xf32, #tpu.memory_space<vmem>>, vector<2x16x16x3xf32>
    %c0_14 = arith.constant 0 : index
    %c0_15 = arith.constant 0 : index
    %c1_16 = arith.constant 1 : index
    %c0_17 = arith.constant 0 : index
    %5 = vector.load %arg12[%c0_14, %c0_15, %c1_16, %c0_17] : memref<2x18x18x3xf32, #tpu.memory_space<vmem>>, vector<2x16x16x3xf32>
    %c0_18 = arith.constant 0 : index
    %c0_19 = arith.constant 0 : index
    %c2 = arith.constant 2 : index
    %c0_20 = arith.constant 0 : index
    %6 = vector.load %arg12[%c0_18, %c0_19, %c2, %c0_20] : memref<2x18x18x3xf32, #tpu.memory_space<vmem>>, vector<2x16x16x3xf32>
    %c0_21 = arith.constant 0 : index
    %c1_22 = arith.constant 1 : index
    %c0_23 = arith.constant 0 : index
    %c0_24 = arith.constant 0 : index
    %7 = vector.load %arg12[%c0_21, %c1_22, %c0_23, %c0_24] : memref<2x18x18x3xf32, #tpu.memory_space<vmem>>, vector<2x16x16x3xf32>
    %c0_25 = arith.constant 0 : index
    %c1_26 = arith.constant 1 : index
    %c1_27 = arith.constant 1 : index
    %c0_28 = arith.constant 0 : index
    %8 = vector.load %arg12[%c0_25, %c1_26, %c1_27, %c0_28] : memref<2x18x18x3xf32, #tpu.memory_space<vmem>>, vector<2x16x16x3xf32>
    %c0_29 = arith.constant 0 : index
    %c1_30 = arith.constant 1 : index
    %c2_31 = arith.constant 2 : index
    %c0_32 = arith.constant 0 : index
    %9 = vector.load %arg12[%c0_29, %c1_30, %c2_31, %c0_32] : memref<2x18x18x3xf32, #tpu.memory_space<vmem>>, vector<2x16x16x3xf32>
    %c0_33 = arith.constant 0 : index
    %c2_34 = arith.constant 2 : index
    %c0_35 = arith.constant 0 : index
    %c0_36 = arith.constant 0 : index
    %10 = vector.load %arg12[%c0_33, %c2_34, %c0_35, %c0_36] : memref<2x18x18x3xf32, #tpu.memory_space<vmem>>, vector<2x16x16x3xf32>
    %c0_37 = arith.constant 0 : index
    %c2_38 = arith.constant 2 : index
    %c1_39 = arith.constant 1 : index
    %c0_40 = arith.constant 0 : index
    %11 = vector.load %arg12[%c0_37, %c2_38, %c1_39, %c0_40] : memref<2x18x18x3xf32, #tpu.memory_space<vmem>>, vector<2x16x16x3xf32>
    %c0_41 = arith.constant 0 : index
    %c2_42 = arith.constant 2 : index
    %c2_43 = arith.constant 2 : index
    %c0_44 = arith.constant 0 : index
    %12 = vector.load %arg12[%c0_41, %c2_42, %c2_43, %c0_44] : memref<2x18x18x3xf32, #tpu.memory_space<vmem>>, vector<2x16x16x3xf32>
    %13 = tpu.concatenate %4, %5, %6, %7, %8, %9, %10, %11, %12 in 3 : vector<2x16x16x3xf32>, vector<2x16x16x3xf32>, vector<2x16x16x3xf32>, vector<2x16x16x3xf32>, vector<2x16x16x3xf32>, vector<2x16x16x3xf32>, vector<2x16x16x3xf32>, vector<2x16x16x3xf32>, vector<2x16x16x3xf32> -> vector<2x16x16x27xf32>
    %14 = vector.shape_cast %13 : vector<2x16x16x27xf32> to vector<512x27xf32>
    %c0_45 = arith.constant 0 : index
    %c0_46 = arith.constant 0 : index
    %15 = vector.load %arg1[%c0_45, %c0_46] : memref<27x8xf32, #tpu.memory_space<vmem>>, vector<27x8xf32>
    %cst_47 = arith.constant dense<0.000000e+00> : vector<512x8xf32>
    %16 = tpu.matmul %14, %15, %cst_47 {dimension_numbers = #tpu.dot_dimension_numbers<[1], [0], [0], [1], [0, 0, 1, 1], [], []>} : vector<512x27xf32>, vector<27x8xf32>, vector<512x8xf32> -> vector<512x8xf32>
    %c0_48 = arith.constant 0 : index
    %c0_49 = arith.constant 0 : index
    %17 = vector.load %arg2[%c0_48, %c0_49] : memref<1x8xf32, #tpu.memory_space<vmem>>, vector<1x8xf32>
    %18 = vector.broadcast %17 : vector<1x8xf32> to vector<512x8xf32>
    %19 = arith.addf %16, %18 : vector<512x8xf32>
    %cst_50 = arith.constant 0.000000e+00 : f32
    %20 = vector.broadcast %cst_50 : f32 to vector<512x8xf32>
    %21 = arith.maximumf %19, %20 : vector<512x8xf32>
    %22 = vector.shape_cast %21 : vector<512x8xf32> to vector<2x8x2x16x8xf32>
    %23 = vector.extract_strided_slice %22 {offsets = [0, 0, 0, 0, 0], sizes = [2, 8, 1, 16, 8], strides = [1, 1, 1, 1, 1]} : vector<2x8x2x16x8xf32> to vector<2x8x1x16x8xf32>
    %24 = vector.shape_cast %23 : vector<2x8x1x16x8xf32> to vector<2x8x16x8xf32>
    %25 = vector.extract_strided_slice %22 {offsets = [0, 0, 1, 0, 0], sizes = [2, 8, 1, 16, 8], strides = [1, 1, 1, 1, 1]} : vector<2x8x2x16x8xf32> to vector<2x8x1x16x8xf32>
    %26 = vector.shape_cast %25 : vector<2x8x1x16x8xf32> to vector<2x8x16x8xf32>
    %27 = arith.maximumf %24, %26 : vector<2x8x16x8xf32>
    %cst_51 = arith.constant 0.000000e+00 : f32
    %28 = vector.broadcast %cst_51 : f32 to vector<2x10x10x8xf32>
    %c0_52 = arith.constant 0 : index
    %c0_53 = arith.constant 0 : index
    %c0_54 = arith.constant 0 : index
    %c0_55 = arith.constant 0 : index
    %29 = vector.load %arg13[%c0_52, %c0_53, %c0_54, %c0_55] : memref<2x10x10x8xf32, #tpu.memory_space<vmem>>, vector<2x10x10x8xf32>
    tpu.vector_store %arg13[%c0_52, %c0_53, %c0_54, %c0_55], %28 {strides = array<i32>} : memref<2x10x10x8xf32, #tpu.memory_space<vmem>>, vector<2x10x10x8xf32>,
    %30 = vector.extract_strided_slice %27 {offsets = [0, 0, 0, 0], sizes = [2, 8, 1, 8], strides = [1, 1, 1, 1]} : vector<2x8x16x8xf32> to vector<2x8x1x8xf32>
    %31 = vector.extract_strided_slice %27 {offsets = [0, 0, 1, 0], sizes = [2, 8, 1, 8], strides = [1, 1, 1, 1]} : vector<2x8x16x8xf32> to vector<2x8x1x8xf32>
    %32 = arith.maximumf %30, %31 : vector<2x8x1x8xf32>
    %c0_56 = arith.constant 0 : index
    %c1_57 = arith.constant 1 : index
    %c1_58 = arith.constant 1 : index
    %c0_59 = arith.constant 0 : index
    %33 = vector.load %arg13[%c0_56, %c1_57, %c1_58, %c0_59] : memref<2x10x10x8xf32, #tpu.memory_space<vmem>>, vector<2x8x1x8xf32>
    tpu.vector_store %arg13[%c0_56, %c1_57, %c1_58, %c0_59], %32 {strides = array<i32>} : memref<2x10x10x8xf32, #tpu.memory_space<vmem>>, vector<2x8x1x8xf32>,
    %34 = vector.extract_strided_slice %27 {offsets = [0, 0, 2, 0], sizes = [2, 8, 1, 8], strides = [1, 1, 1, 1]} : vector<2x8x16x8xf32> to vector<2x8x1x8xf32>
    %35 = vector.extract_strided_slice %27 {offsets = [0, 0, 3, 0], sizes = [2, 8, 1, 8], strides = [1, 1, 1, 1]} : vector<2x8x16x8xf32> to vector<2x8x1x8xf32>
    %36 = arith.maximumf %34, %35 : vector<2x8x1x8xf32>
    %c0_60 = arith.constant 0 : index
    %c1_61 = arith.constant 1 : index
    %c2_62 = arith.constant 2 : index
    %c0_63 = arith.constant 0 : index
    %37 = vector.load %arg13[%c0_60, %c1_61, %c2_62, %c0_63] : memref<2x10x10x8xf32, #tpu.memory_space<vmem>>, vector<2x8x1x8xf32>
    tpu.vector_store %arg13[%c0_60, %c1_61, %c2_62, %c0_63], %36 {strides = array<i32>} : memref<2x10x10x8xf32, #tpu.memory_space<vmem>>, vector<2x8x1x8xf32>,
    %38 = vector.extract_strided_slice %27 {offsets = [0, 0, 4, 0], sizes = [2, 8, 1, 8], strides = [1, 1, 1, 1]} : vector<2x8x16x8xf32> to vector<2x8x1x8xf32>
    %39 = vector.extract_strided_slice %27 {offsets = [0, 0, 5, 0], sizes = [2, 8, 1, 8], strides = [1, 1, 1, 1]} : vector<2x8x16x8xf32> to vector<2x8x1x8xf32>
    %40 = arith.maximumf %38, %39 : vector<2x8x1x8xf32>
    %c0_64 = arith.constant 0 : index
    %c1_65 = arith.constant 1 : index
    %c3 = arith.constant 3 : index
    %c0_66 = arith.constant 0 : index
    %41 = vector.load %arg13[%c0_64, %c1_65, %c3, %c0_66] : memref<2x10x10x8xf32, #tpu.memory_space<vmem>>, vector<2x8x1x8xf32>
    tpu.vector_store %arg13[%c0_64, %c1_65, %c3, %c0_66], %40 {strides = array<i32>} : memref<2x10x10x8xf32, #tpu.memory_space<vmem>>, vector<2x8x1x8xf32>,
    %42 = vector.extract_strided_slice %27 {offsets = [0, 0, 6, 0], sizes = [2, 8, 1, 8], strides = [1, 1, 1, 1]} : vector<2x8x16x8xf32> to vector<2x8x1x8xf32>
    %43 = vector.extract_strided_slice %27 {offsets = [0, 0, 7, 0], sizes = [2, 8, 1, 8], strides = [1, 1, 1, 1]} : vector<2x8x16x8xf32> to vector<2x8x1x8xf32>
    %44 = arith.maximumf %42, %43 : vector<2x8x1x8xf32>
    %c0_67 = arith.constant 0 : index
    %c1_68 = arith.constant 1 : index
    %c4 = arith.constant 4 : index
    %c0_69 = arith.constant 0 : index
    %45 = vector.load %arg13[%c0_67, %c1_68, %c4, %c0_69] : memref<2x10x10x8xf32, #tpu.memory_space<vmem>>, vector<2x8x1x8xf32>
    tpu.vector_store %arg13[%c0_67, %c1_68, %c4, %c0_69], %44 {strides = array<i32>} : memref<2x10x10x8xf32, #tpu.memory_space<vmem>>, vector<2x8x1x8xf32>,
    %46 = vector.extract_strided_slice %27 {offsets = [0, 0, 8, 0], sizes = [2, 8, 1, 8], strides = [1, 1, 1, 1]} : vector<2x8x16x8xf32> to vector<2x8x1x8xf32>
    %47 = vector.extract_strided_slice %27 {offsets = [0, 0, 9, 0], sizes = [2, 8, 1, 8], strides = [1, 1, 1, 1]} : vector<2x8x16x8xf32> to vector<2x8x1x8xf32>
    %48 = arith.maximumf %46, %47 : vector<2x8x1x8xf32>
    %c0_70 = arith.constant 0 : index
    %c1_71 = arith.constant 1 : index
    %c5 = arith.constant 5 : index
    %c0_72 = arith.constant 0 : index
    %49 = vector.load %arg13[%c0_70, %c1_71, %c5, %c0_72] : memref<2x10x10x8xf32, #tpu.memory_space<vmem>>, vector<2x8x1x8xf32>
    tpu.vector_store %arg13[%c0_70, %c1_71, %c5, %c0_72], %48 {strides = array<i32>} : memref<2x10x10x8xf32, #tpu.memory_space<vmem>>, vector<2x8x1x8xf32>,
    %50 = vector.extract_strided_slice %27 {offsets = [0, 0, 10, 0], sizes = [2, 8, 1, 8], strides = [1, 1, 1, 1]} : vector<2x8x16x8xf32> to vector<2x8x1x8xf32>
    %51 = vector.extract_strided_slice %27 {offsets = [0, 0, 11, 0], sizes = [2, 8, 1, 8], strides = [1, 1, 1, 1]} : vector<2x8x16x8xf32> to vector<2x8x1x8xf32>
    %52 = arith.maximumf %50, %51 : vector<2x8x1x8xf32>
    %c0_73 = arith.constant 0 : index
    %c1_74 = arith.constant 1 : index
    %c6 = arith.constant 6 : index
    %c0_75 = arith.constant 0 : index
    %53 = vector.load %arg13[%c0_73, %c1_74, %c6, %c0_75] : memref<2x10x10x8xf32, #tpu.memory_space<vmem>>, vector<2x8x1x8xf32>
    tpu.vector_store %arg13[%c0_73, %c1_74, %c6, %c0_75], %52 {strides = array<i32>} : memref<2x10x10x8xf32, #tpu.memory_space<vmem>>, vector<2x8x1x8xf32>,
    %54 = vector.extract_strided_slice %27 {offsets = [0, 0, 12, 0], sizes = [2, 8, 1, 8], strides = [1, 1, 1, 1]} : vector<2x8x16x8xf32> to vector<2x8x1x8xf32>
    %55 = vector.extract_strided_slice %27 {offsets = [0, 0, 13, 0], sizes = [2, 8, 1, 8], strides = [1, 1, 1, 1]} : vector<2x8x16x8xf32> to vector<2x8x1x8xf32>
    %56 = arith.maximumf %54, %55 : vector<2x8x1x8xf32>
    %c0_76 = arith.constant 0 : index
    %c1_77 = arith.constant 1 : index
    %c7 = arith.constant 7 : index
    %c0_78 = arith.constant 0 : index
    %57 = vector.load %arg13[%c0_76, %c1_77, %c7, %c0_78] : memref<2x10x10x8xf32, #tpu.memory_space<vmem>>, vector<2x8x1x8xf32>
    tpu.vector_store %arg13[%c0_76, %c1_77, %c7, %c0_78], %56 {strides = array<i32>} : memref<2x10x10x8xf32, #tpu.memory_space<vmem>>, vector<2x8x1x8xf32>,
    %58 = vector.extract_strided_slice %27 {offsets = [0, 0, 14, 0], sizes = [2, 8, 1, 8], strides = [1, 1, 1, 1]} : vector<2x8x16x8xf32> to vector<2x8x1x8xf32>
    %59 = vector.extract_strided_slice %27 {offsets = [0, 0, 15, 0], sizes = [2, 8, 1, 8], strides = [1, 1, 1, 1]} : vector<2x8x16x8xf32> to vector<2x8x1x8xf32>
    %60 = arith.maximumf %58, %59 : vector<2x8x1x8xf32>
    %c0_79 = arith.constant 0 : index
    %c1_80 = arith.constant 1 : index
    %c8 = arith.constant 8 : index
    %c0_81 = arith.constant 0 : index
    %61 = vector.load %arg13[%c0_79, %c1_80, %c8, %c0_81] : memref<2x10x10x8xf32, #tpu.memory_space<vmem>>, vector<2x8x1x8xf32>
    tpu.vector_store %arg13[%c0_79, %c1_80, %c8, %c0_81], %60 {strides = array<i32>} : memref<2x10x10x8xf32, #tpu.memory_space<vmem>>, vector<2x8x1x8xf32>,
    %c0_82 = arith.constant 0 : index
    %c0_83 = arith.constant 0 : index
    %c0_84 = arith.constant 0 : index
    %c0_85 = arith.constant 0 : index
    %62 = vector.load %arg13[%c0_82, %c0_83, %c0_84, %c0_85] : memref<2x10x10x8xf32, #tpu.memory_space<vmem>>, vector<2x8x8x8xf32>
    %c0_86 = arith.constant 0 : index
    %c0_87 = arith.constant 0 : index
    %c1_88 = arith.constant 1 : index
    %c0_89 = arith.constant 0 : index
    %63 = vector.load %arg13[%c0_86, %c0_87, %c1_88, %c0_89] : memref<2x10x10x8xf32, #tpu.memory_space<vmem>>, vector<2x8x8x8xf32>
    %c0_90 = arith.constant 0 : index
    %c0_91 = arith.constant 0 : index
    %c2_92 = arith.constant 2 : index
    %c0_93 = arith.constant 0 : index
    %64 = vector.load %arg13[%c0_90, %c0_91, %c2_92, %c0_93] : memref<2x10x10x8xf32, #tpu.memory_space<vmem>>, vector<2x8x8x8xf32>
    %c0_94 = arith.constant 0 : index
    %c1_95 = arith.constant 1 : index
    %c0_96 = arith.constant 0 : index
    %c0_97 = arith.constant 0 : index
    %65 = vector.load %arg13[%c0_94, %c1_95, %c0_96, %c0_97] : memref<2x10x10x8xf32, #tpu.memory_space<vmem>>, vector<2x8x8x8xf32>
    %c0_98 = arith.constant 0 : index
    %c1_99 = arith.constant 1 : index
    %c1_100 = arith.constant 1 : index
    %c0_101 = arith.constant 0 : index
    %66 = vector.load %arg13[%c0_98, %c1_99, %c1_100, %c0_101] : memref<2x10x10x8xf32, #tpu.memory_space<vmem>>, vector<2x8x8x8xf32>
    %c0_102 = arith.constant 0 : index
    %c1_103 = arith.constant 1 : index
    %c2_104 = arith.constant 2 : index
    %c0_105 = arith.constant 0 : index
    %67 = vector.load %arg13[%c0_102, %c1_103, %c2_104, %c0_105] : memref<2x10x10x8xf32, #tpu.memory_space<vmem>>, vector<2x8x8x8xf32>
    %c0_106 = arith.constant 0 : index
    %c2_107 = arith.constant 2 : index
    %c0_108 = arith.constant 0 : index
    %c0_109 = arith.constant 0 : index
    %68 = vector.load %arg13[%c0_106, %c2_107, %c0_108, %c0_109] : memref<2x10x10x8xf32, #tpu.memory_space<vmem>>, vector<2x8x8x8xf32>
    %c0_110 = arith.constant 0 : index
    %c2_111 = arith.constant 2 : index
    %c1_112 = arith.constant 1 : index
    %c0_113 = arith.constant 0 : index
    %69 = vector.load %arg13[%c0_110, %c2_111, %c1_112, %c0_113] : memref<2x10x10x8xf32, #tpu.memory_space<vmem>>, vector<2x8x8x8xf32>
    %c0_114 = arith.constant 0 : index
    %c2_115 = arith.constant 2 : index
    %c2_116 = arith.constant 2 : index
    %c0_117 = arith.constant 0 : index
    %70 = vector.load %arg13[%c0_114, %c2_115, %c2_116, %c0_117] : memref<2x10x10x8xf32, #tpu.memory_space<vmem>>, vector<2x8x8x8xf32>
    %71 = tpu.concatenate %62, %63, %64, %65, %66, %67, %68, %69, %70 in 3 : vector<2x8x8x8xf32>, vector<2x8x8x8xf32>, vector<2x8x8x8xf32>, vector<2x8x8x8xf32>, vector<2x8x8x8xf32>, vector<2x8x8x8xf32>, vector<2x8x8x8xf32>, vector<2x8x8x8xf32>, vector<2x8x8x8xf32> -> vector<2x8x8x72xf32>
    %72 = vector.shape_cast %71 : vector<2x8x8x72xf32> to vector<128x72xf32>
    %c0_118 = arith.constant 0 : index
    %c0_119 = arith.constant 0 : index
    %73 = vector.load %arg3[%c0_118, %c0_119] : memref<72x16xf32, #tpu.memory_space<vmem>>, vector<72x16xf32>
    %cst_120 = arith.constant dense<0.000000e+00> : vector<128x16xf32>
    %74 = tpu.matmul %72, %73, %cst_120 {dimension_numbers = #tpu.dot_dimension_numbers<[1], [0], [0], [1], [0, 0, 1, 1], [], []>} : vector<128x72xf32>, vector<72x16xf32>, vector<128x16xf32> -> vector<128x16xf32>
    %c0_121 = arith.constant 0 : index
    %c0_122 = arith.constant 0 : index
    %75 = vector.load %arg4[%c0_121, %c0_122] : memref<1x16xf32, #tpu.memory_space<vmem>>, vector<1x16xf32>
    %76 = vector.broadcast %75 : vector<1x16xf32> to vector<128x16xf32>
    %77 = arith.addf %74, %76 : vector<128x16xf32>
    %cst_123 = arith.constant 0.000000e+00 : f32
    %78 = vector.broadcast %cst_123 : f32 to vector<128x16xf32>
    %79 = arith.maximumf %77, %78 : vector<128x16xf32>
    %80 = vector.shape_cast %79 : vector<128x16xf32> to vector<2x4x2x8x16xf32>
    %81 = vector.extract_strided_slice %80 {offsets = [0, 0, 0, 0, 0], sizes = [2, 4, 1, 8, 16], strides = [1, 1, 1, 1, 1]} : vector<2x4x2x8x16xf32> to vector<2x4x1x8x16xf32>
    %82 = vector.shape_cast %81 : vector<2x4x1x8x16xf32> to vector<2x4x8x16xf32>
    %83 = vector.extract_strided_slice %80 {offsets = [0, 0, 1, 0, 0], sizes = [2, 4, 1, 8, 16], strides = [1, 1, 1, 1, 1]} : vector<2x4x2x8x16xf32> to vector<2x4x1x8x16xf32>
    %84 = vector.shape_cast %83 : vector<2x4x1x8x16xf32> to vector<2x4x8x16xf32>
    %85 = arith.maximumf %82, %84 : vector<2x4x8x16xf32>
    %86 = vector.extract_strided_slice %85 {offsets = [0, 0, 0, 0], sizes = [2, 4, 1, 16], strides = [1, 1, 1, 1]} : vector<2x4x8x16xf32> to vector<2x4x1x16xf32>
    %87 = vector.extract_strided_slice %85 {offsets = [0, 0, 1, 0], sizes = [2, 4, 1, 16], strides = [1, 1, 1, 1]} : vector<2x4x8x16xf32> to vector<2x4x1x16xf32>
    %88 = arith.maximumf %86, %87 : vector<2x4x1x16xf32>
    %c0_124 = arith.constant 0 : index
    %c0_125 = arith.constant 0 : index
    %c0_126 = arith.constant 0 : index
    %c0_127 = arith.constant 0 : index
    %89 = vector.load %arg14[%c0_124, %c0_125, %c0_126, %c0_127] : memref<2x4x4x16xf32, #tpu.memory_space<vmem>>, vector<2x4x1x16xf32>
    tpu.vector_store %arg14[%c0_124, %c0_125, %c0_126, %c0_127], %88 {strides = array<i32>} : memref<2x4x4x16xf32, #tpu.memory_space<vmem>>, vector<2x4x1x16xf32>,
    %90 = vector.extract_strided_slice %85 {offsets = [0, 0, 2, 0], sizes = [2, 4, 1, 16], strides = [1, 1, 1, 1]} : vector<2x4x8x16xf32> to vector<2x4x1x16xf32>
    %91 = vector.extract_strided_slice %85 {offsets = [0, 0, 3, 0], sizes = [2, 4, 1, 16], strides = [1, 1, 1, 1]} : vector<2x4x8x16xf32> to vector<2x4x1x16xf32>
    %92 = arith.maximumf %90, %91 : vector<2x4x1x16xf32>
    %c0_128 = arith.constant 0 : index
    %c0_129 = arith.constant 0 : index
    %c1_130 = arith.constant 1 : index
    %c0_131 = arith.constant 0 : index
    %93 = vector.load %arg14[%c0_128, %c0_129, %c1_130, %c0_131] : memref<2x4x4x16xf32, #tpu.memory_space<vmem>>, vector<2x4x1x16xf32>
    tpu.vector_store %arg14[%c0_128, %c0_129, %c1_130, %c0_131], %92 {strides = array<i32>} : memref<2x4x4x16xf32, #tpu.memory_space<vmem>>, vector<2x4x1x16xf32>,
    %94 = vector.extract_strided_slice %85 {offsets = [0, 0, 4, 0], sizes = [2, 4, 1, 16], strides = [1, 1, 1, 1]} : vector<2x4x8x16xf32> to vector<2x4x1x16xf32>
    %95 = vector.extract_strided_slice %85 {offsets = [0, 0, 5, 0], sizes = [2, 4, 1, 16], strides = [1, 1, 1, 1]} : vector<2x4x8x16xf32> to vector<2x4x1x16xf32>
    %96 = arith.maximumf %94, %95 : vector<2x4x1x16xf32>
    %c0_132 = arith.constant 0 : index
    %c0_133 = arith.constant 0 : index
    %c2_134 = arith.constant 2 : index
    %c0_135 = arith.constant 0 : index
    %97 = vector.load %arg14[%c0_132, %c0_133, %c2_134, %c0_135] : memref<2x4x4x16xf32, #tpu.memory_space<vmem>>, vector<2x4x1x16xf32>
    tpu.vector_store %arg14[%c0_132, %c0_133, %c2_134, %c0_135], %96 {strides = array<i32>} : memref<2x4x4x16xf32, #tpu.memory_space<vmem>>, vector<2x4x1x16xf32>,
    %98 = vector.extract_strided_slice %85 {offsets = [0, 0, 6, 0], sizes = [2, 4, 1, 16], strides = [1, 1, 1, 1]} : vector<2x4x8x16xf32> to vector<2x4x1x16xf32>
    %99 = vector.extract_strided_slice %85 {offsets = [0, 0, 7, 0], sizes = [2, 4, 1, 16], strides = [1, 1, 1, 1]} : vector<2x4x8x16xf32> to vector<2x4x1x16xf32>
    %100 = arith.maximumf %98, %99 : vector<2x4x1x16xf32>
    %c0_136 = arith.constant 0 : index
    %c0_137 = arith.constant 0 : index
    %c3_138 = arith.constant 3 : index
    %c0_139 = arith.constant 0 : index
    %101 = vector.load %arg14[%c0_136, %c0_137, %c3_138, %c0_139] : memref<2x4x4x16xf32, #tpu.memory_space<vmem>>, vector<2x4x1x16xf32>
    tpu.vector_store %arg14[%c0_136, %c0_137, %c3_138, %c0_139], %100 {strides = array<i32>} : memref<2x4x4x16xf32, #tpu.memory_space<vmem>>, vector<2x4x1x16xf32>,
    %c0_140 = arith.constant 0 : index
    %c0_141 = arith.constant 0 : index
    %c0_142 = arith.constant 0 : index
    %c0_143 = arith.constant 0 : index
    %102 = vector.load %arg14[%c0_140, %c0_141, %c0_142, %c0_143] : memref<2x4x4x16xf32, #tpu.memory_space<vmem>>, vector<2x4x4x16xf32>
    %103 = vector.shape_cast %102 : vector<2x4x4x16xf32> to vector<2x2x2x4x16xf32>
    %104 = vector.extract_strided_slice %103 {offsets = [0, 0, 0, 0, 0], sizes = [2, 2, 1, 4, 16], strides = [1, 1, 1, 1, 1]} : vector<2x2x2x4x16xf32> to vector<2x2x1x4x16xf32>
    %105 = vector.shape_cast %104 : vector<2x2x1x4x16xf32> to vector<2x2x4x16xf32>
    %106 = vector.extract_strided_slice %103 {offsets = [0, 0, 1, 0, 0], sizes = [2, 2, 1, 4, 16], strides = [1, 1, 1, 1, 1]} : vector<2x2x2x4x16xf32> to vector<2x2x1x4x16xf32>
    %107 = vector.shape_cast %106 : vector<2x2x1x4x16xf32> to vector<2x2x4x16xf32>
    %108 = arith.addf %105, %107 : vector<2x2x4x16xf32>
    %cst_144 = arith.constant 5.000000e-01 : f32
    %109 = vector.broadcast %cst_144 : f32 to vector<2x2x4x16xf32>
    %110 = arith.mulf %108, %109 : vector<2x2x4x16xf32>
    %111 = vector.extract_strided_slice %110 {offsets = [0, 0, 0, 0], sizes = [2, 2, 1, 16], strides = [1, 1, 1, 1]} : vector<2x2x4x16xf32> to vector<2x2x1x16xf32>
    %112 = vector.extract_strided_slice %110 {offsets = [0, 0, 1, 0], sizes = [2, 2, 1, 16], strides = [1, 1, 1, 1]} : vector<2x2x4x16xf32> to vector<2x2x1x16xf32>
    %113 = arith.addf %111, %112 : vector<2x2x1x16xf32>
    %cst_145 = arith.constant 5.000000e-01 : f32
    %114 = vector.broadcast %cst_145 : f32 to vector<2x2x1x16xf32>
    %115 = arith.mulf %113, %114 : vector<2x2x1x16xf32>
    %c0_146 = arith.constant 0 : index
    %c0_147 = arith.constant 0 : index
    %c0_148 = arith.constant 0 : index
    %c0_149 = arith.constant 0 : index
    %116 = vector.load %arg15[%c0_146, %c0_147, %c0_148, %c0_149] : memref<2x2x2x16xf32, #tpu.memory_space<vmem>>, vector<2x2x1x16xf32>
    tpu.vector_store %arg15[%c0_146, %c0_147, %c0_148, %c0_149], %115 {strides = array<i32>} : memref<2x2x2x16xf32, #tpu.memory_space<vmem>>, vector<2x2x1x16xf32>,
    %117 = vector.extract_strided_slice %110 {offsets = [0, 0, 2, 0], sizes = [2, 2, 1, 16], strides = [1, 1, 1, 1]} : vector<2x2x4x16xf32> to vector<2x2x1x16xf32>
    %118 = vector.extract_strided_slice %110 {offsets = [0, 0, 3, 0], sizes = [2, 2, 1, 16], strides = [1, 1, 1, 1]} : vector<2x2x4x16xf32> to vector<2x2x1x16xf32>
    %119 = arith.addf %117, %118 : vector<2x2x1x16xf32>
    %cst_150 = arith.constant 5.000000e-01 : f32
    %120 = vector.broadcast %cst_150 : f32 to vector<2x2x1x16xf32>
    %121 = arith.mulf %119, %120 : vector<2x2x1x16xf32>
    %c0_151 = arith.constant 0 : index
    %c0_152 = arith.constant 0 : index
    %c1_153 = arith.constant 1 : index
    %c0_154 = arith.constant 0 : index
    %122 = vector.load %arg15[%c0_151, %c0_152, %c1_153, %c0_154] : memref<2x2x2x16xf32, #tpu.memory_space<vmem>>, vector<2x2x1x16xf32>
    tpu.vector_store %arg15[%c0_151, %c0_152, %c1_153, %c0_154], %121 {strides = array<i32>} : memref<2x2x2x16xf32, #tpu.memory_space<vmem>>, vector<2x2x1x16xf32>,
    %c0_155 = arith.constant 0 : index
    %c0_156 = arith.constant 0 : index
    %c0_157 = arith.constant 0 : index
    %c0_158 = arith.constant 0 : index
    %123 = vector.load %arg15[%c0_155, %c0_156, %c0_157, %c0_158] : memref<2x2x2x16xf32, #tpu.memory_space<vmem>>, vector<2x1x1x16xf32>
    %124 = vector.shape_cast %123 : vector<2x1x1x16xf32> to vector<2x16xf32>
    %c0_159 = arith.constant 0 : index
    %c0_160 = arith.constant 0 : index
    %c1_161 = arith.constant 1 : index
    %c0_162 = arith.constant 0 : index
    %125 = vector.load %arg15[%c0_159, %c0_160, %c1_161, %c0_162] : memref<2x2x2x16xf32, #tpu.memory_space<vmem>>, vector<2x1x1x16xf32>
    %126 = vector.shape_cast %125 : vector<2x1x1x16xf32> to vector<2x16xf32>
    %c0_163 = arith.constant 0 : index
    %c1_164 = arith.constant 1 : index
    %c0_165 = arith.constant 0 : index
    %c0_166 = arith.constant 0 : index
    %127 = vector.load %arg15[%c0_163, %c1_164, %c0_165, %c0_166] : memref<2x2x2x16xf32, #tpu.memory_space<vmem>>, vector<2x1x1x16xf32>
    %128 = vector.shape_cast %127 : vector<2x1x1x16xf32> to vector<2x16xf32>
    %c0_167 = arith.constant 0 : index
    %c1_168 = arith.constant 1 : index
    %c1_169 = arith.constant 1 : index
    %c0_170 = arith.constant 0 : index
    %129 = vector.load %arg15[%c0_167, %c1_168, %c1_169, %c0_170] : memref<2x2x2x16xf32, #tpu.memory_space<vmem>>, vector<2x1x1x16xf32>
    %130 = vector.shape_cast %129 : vector<2x1x1x16xf32> to vector<2x16xf32>
    %131 = tpu.concatenate %124, %126, %128, %130 in 1 : vector<2x16xf32>, vector<2x16xf32>, vector<2x16xf32>, vector<2x16xf32> -> vector<2x64xf32>
    %c0_171 = arith.constant 0 : index
    %c0_172 = arith.constant 0 : index
    %132 = vector.load %arg5[%c0_171, %c0_172] : memref<64x32xf32, #tpu.memory_space<vmem>>, vector<64x32xf32>
    %cst_173 = arith.constant dense<0.000000e+00> : vector<2x32xf32>
    %133 = tpu.matmul %131, %132, %cst_173 {dimension_numbers = #tpu.dot_dimension_numbers<[1], [0], [0], [1], [0, 0, 1, 1], [], []>} : vector<2x64xf32>, vector<64x32xf32>, vector<2x32xf32> -> vector<2x32xf32>
    %c0_174 = arith.constant 0 : index
    %c0_175 = arith.constant 0 : index
    %134 = vector.load %arg6[%c0_174, %c0_175] : memref<1x32xf32, #tpu.memory_space<vmem>>, vector<1x32xf32>
    %135 = vector.broadcast %134 : vector<1x32xf32> to vector<2x32xf32>
    %136 = arith.addf %133, %135 : vector<2x32xf32>
    %cst_176 = arith.constant 0.000000e+00 : f32
    %137 = vector.broadcast %cst_176 : f32 to vector<2x32xf32>
    %138 = arith.maximumf %136, %137 : vector<2x32xf32>
    %c0_177 = arith.constant 0 : index
    %c0_178 = arith.constant 0 : index
    %139 = vector.load %arg7[%c0_177, %c0_178] : memref<32x10xf32, #tpu.memory_space<vmem>>, vector<32x10xf32>
    %cst_179 = arith.constant dense<0.000000e+00> : vector<2x10xf32>
    %140 = tpu.matmul %138, %139, %cst_179 {dimension_numbers = #tpu.dot_dimension_numbers<[1], [0], [0], [1], [0, 0, 1, 1], [], []>} : vector<2x32xf32>, vector<32x10xf32>, vector<2x10xf32> -> vector<2x10xf32>
    %c0_180 = arith.constant 0 : index
    %c0_181 = arith.constant 0 : index
    %141 = vector.load %arg8[%c0_180, %c0_181] : memref<1x10xf32, #tpu.memory_space<vmem>>, vector<1x10xf32>
    %142 = vector.broadcast %141 : vector<1x10xf32> to vector<2x10xf32>
    %143 = arith.addf %140, %142 : vector<2x10xf32>
    %cst_182 = arith.constant 0.000000e+00 : f32
    %144 = vector.broadcast %cst_182 : f32 to vector<2x10xf32>
    %145 = arith.maximumf %143, %144 : vector<2x10xf32>
    %c0_183 = arith.constant 0 : index
    %c0_184 = arith.constant 0 : index
    %146 = vector.load %arg9[%c0_183, %c0_184] : memref<10x2xf32, #tpu.memory_space<vmem>>, vector<10x2xf32>
    %cst_185 = arith.constant dense<0.000000e+00> : vector<2x2xf32>
    %147 = tpu.matmul %145, %146, %cst_185 {dimension_numbers = #tpu.dot_dimension_numbers<[1], [0], [0], [1], [0, 0, 1, 1], [], []>} : vector<2x10xf32>, vector<10x2xf32>, vector<2x2xf32> -> vector<2x2xf32>
    %c0_186 = arith.constant 0 : index
    %c0_187 = arith.constant 0 : index
    %148 = vector.load %arg10[%c0_186, %c0_187] : memref<1x2xf32, #tpu.memory_space<vmem>>, vector<1x2xf32>
    %149 = vector.broadcast %148 : vector<1x2xf32> to vector<2x2xf32>
    %150 = arith.addf %147, %149 : vector<2x2xf32>
    %c0_188 = arith.constant 0 : index
    %c0_189 = arith.constant 0 : index
    %151 = vector.load %arg11[%c0_188, %c0_189] : memref<2x2xf32, #tpu.memory_space<vmem>>, vector<2x2xf32>
    tpu.vector_store %arg11[%c0_188, %c0_189], %150 {strides = array<i32>} : memref<2x2xf32, #tpu.memory_space<vmem>>, vector<2x2xf32>,
    return
  }
}

</mosaic_0001>

<llo_original>
// kernel: head_vgg_forward.1
$region0: #{head_vgg_forward.1}
  #allocation0 [shape = 'u32[]', space=smem, size = 0x4, offset = 0x4, fixed_abs, tag = 'smem constant byte address 0x4 - core index']
  #allocation1 [shape = 'u32[144,128]{1,0:T(1,128)}', space=vmem, size = 0x12000, scoped, tag = 'internal scratch']
  #allocation2 [shape = 'f32[2,18,18,3]{3,2,1,0:T(8,128)}', space=vmem, size = 0x6c000, scoped, tag = 'scratch operand']
  #allocation3 [shape = 'f32[2,10,10,8]{3,2,1,0:T(8,128)}', space=vmem, size = 0x28000, scoped, tag = 'scratch operand']
  #allocation4 [shape = 'f32[2,4,4,16]{3,2,1,0:T(4,128)}', space=vmem, size = 0x4000, scoped, tag = 'scratch operand']
  #allocation5 [shape = 'f32[2,2,2,16]{3,2,1,0:T(2,128)}', space=vmem, size = 0x1000, scoped, tag = 'scratch operand']
  %s0 = inlined_call_operand.vmem [shape: f32[2,16,16,3], index: 0, kind: input, shape index: {}]
  %s1 = inlined_call_operand.vmem [shape: f32[27,8], index: 1, kind: input, shape index: {}]
  %s2 = inlined_call_operand.vmem [shape: f32[1,8], index: 2, kind: input, shape index: {}]
  %s3 = inlined_call_operand.vmem [shape: f32[72,16], index: 3, kind: input, shape index: {}]
  %s4 = inlined_call_operand.vmem [shape: f32[1,16], index: 4, kind: input, shape index: {}]
  %s5 = inlined_call_operand.vmem [shape: f32[64,32], index: 5, kind: input, shape index: {}]
  %s6 = inlined_call_operand.vmem [shape: f32[1,32], index: 6, kind: input, shape index: {}]
  %s7 = inlined_call_operand.vmem [shape: f32[32,10], index: 7, kind: input, shape index: {}]
  %s8 = inlined_call_operand.vmem [shape: f32[1,10], index: 8, kind: input, shape index: {}]
  %s9 = inlined_call_operand.vmem [shape: f32[10,2], index: 9, kind: input, shape index: {}]
  %s10 = inlined_call_operand.vmem [shape: f32[1,2], index: 10, kind: input, shape index: {}]
  %s11 = inlined_call_operand.hbm [shape: f32[2,2], index: 11, kind: output, shape index: {}]
  %s12 = sld [smem:[#allocation0]]
  $region54: #{head_vgg_forward.1} parent=0
    _
  %s14 = ssub.s32 1, %s12
  %s15 = scalar_select 0, %s14, %s12
  $region1: #{head_vgg_forward.1} parent=0
    #allocation6 [shape = 'u8[1024]{0}', space=vmem, size = 0x400, scoped, tag = 'output window, operand 0, single buffered']
    #allocation7 [shape = 's32[1]{0}', space=sflag, size = 0x4, scoped, tag = 'scoped memory for head_vgg_forward.1']
    %16 = vsyncpa [#allocation7], 0
    // Predicated region
    $region2: #{head_vgg_forward.1} parent=1 // pred_check
      _
    $region3: #{head_vgg_forward.1} parent=1 // pred_check_branch
      %18 = sbr.rel (0) target = $region5
    $region4: #{head_vgg_forward.1} parent=1 // pred_region
      _
    $region5: #{head_vgg_forward.1} parent=1 // pred_fallthru
      _
    // Predicated region
    $region6: #{head_vgg_forward.1} parent=1 // pred_check
      _
    $region7: #{head_vgg_forward.1} parent=1 // pred_check_branch
      %20 = sbr.rel (0) target = $region9
    $region8: #{head_vgg_forward.1} parent=1 // pred_region
      _
    $region9: #{head_vgg_forward.1} parent=1 // pred_fallthru
      _
    // Predicated region
    $region10: #{head_vgg_forward.1} parent=1 // pred_check
      _
    $region11: #{head_vgg_forward.1} parent=1 // pred_check_branch
      %22 = sbr.rel (0) target = $region13
    $region12: #{head_vgg_forward.1} parent=1 // pred_region
      _
    $region13: #{head_vgg_forward.1} parent=1 // pred_fallthru
      _
    // Predicated region
    $region14: #{head_vgg_forward.1} parent=1 // pred_check
      _
    $region15: #{head_vgg_forward.1} parent=1 // pred_check_branch
      %24 = sbr.rel (0) target = $region17
    $region16: #{head_vgg_forward.1} parent=1 // pred_region
      _
    $region17: #{head_vgg_forward.1} parent=1 // pred_fallthru
      _
    // Predicated region
    $region18: #{head_vgg_forward.1} parent=1 // pred_check
      _
    $region19: #{head_vgg_forward.1} parent=1 // pred_check_branch
      %26 = sbr.rel (0) target = $region21
    $region20: #{head_vgg_forward.1} parent=1 // pred_region
      _
    $region21: #{head_vgg_forward.1} parent=1 // pred_fallthru
      _
    // Predicated region
    $region22: #{head_vgg_forward.1} parent=1 // pred_check
      _
    $region23: #{head_vgg_forward.1} parent=1 // pred_check_branch
      %28 = sbr.rel (0) target = $region25
    $region24: #{head_vgg_forward.1} parent=1 // pred_region
      _
    $region25: #{head_vgg_forward.1} parent=1 // pred_fallthru
      _
    // Predicated region
    $region26: #{head_vgg_forward.1} parent=1 // pred_check
      _
    $region27: #{head_vgg_forward.1} parent=1 // pred_check_branch
      %30 = sbr.rel (0) target = $region29
    $region28: #{head_vgg_forward.1} parent=1 // pred_region
      _
    $region29: #{head_vgg_forward.1} parent=1 // pred_fallthru
      _
    // Predicated region
    $region30: #{head_vgg_forward.1} parent=1 // pred_check
      _
    $region31: #{head_vgg_forward.1} parent=1 // pred_check_branch
      %32 = sbr.rel (0) target = $region33
    $region32: #{head_vgg_forward.1} parent=1 // pred_region
      _
    $region33: #{head_vgg_forward.1} parent=1 // pred_fallthru
      _
    // Predicated region
    $region34: #{head_vgg_forward.1} parent=1 // pred_check
      _
    $region35: #{head_vgg_forward.1} parent=1 // pred_check_branch
      %34 = sbr.rel (0) target = $region37
    $region36: #{head_vgg_forward.1} parent=1 // pred_region
      _
    $region37: #{head_vgg_forward.1} parent=1 // pred_fallthru
      _
    // Predicated region
    $region38: #{head_vgg_forward.1} parent=1 // pred_check
      _
    $region39: #{head_vgg_forward.1} parent=1 // pred_check_branch
      %36 = sbr.rel (0) target = $region41
    $region40: #{head_vgg_forward.1} parent=1 // pred_region
      _
    $region41: #{head_vgg_forward.1} parent=1 // pred_fallthru
      _
    // Predicated region
    $region42: #{head_vgg_forward.1} parent=1 // pred_check
      _
    $region43: #{head_vgg_forward.1} parent=1 // pred_check_branch
      %38 = sbr.rel (0) target = $region45
    $region44: #{head_vgg_forward.1} parent=1 // pred_region
      _
    $region45: #{head_vgg_forward.1} parent=1 // pred_fallthru
      _
    %vm39 = vcmask 23552
    %40 = vst.msk [vmem:[#allocation2] sm:$0xff] %vm39, 0.0
    %41 = vst.msk [vmem:[#allocation2 + $0x8] sm:$0xff] %vm39, 0.0
    %vm42 = vcmask 17408
    %43 = vst.msk [vmem:[#allocation2 + $0x10] sm:$0x3] %vm42, 0.0
    %44 = vst.msk [vmem:[#allocation2 + $0x18] sm:$0xff] %vm39, 0.0
    %45 = vst.msk [vmem:[#allocation2 + $0x20] sm:$0xff] %vm39, 0.0
    %46 = vst.msk [vmem:[#allocation2 + $0x28] sm:$0x3] %vm42, 0.0
    %47 = vst.msk [vmem:[#allocation2 + $0x30] sm:$0xff] %vm39, 0.0
    %48 = vst.msk [vmem:[#allocation2 + $0x38] sm:$0xff] %vm39, 0.0
    %49 = vst.msk [vmem:[#allocation2 + $0x40] sm:$0x3] %vm42, 0.0
    %50 = vst.msk [vmem:[#allocation2 + $0x48] sm:$0xff] %vm39, 0.0
    %51 = vst.msk [vmem:[#allocation2 + $0x50] sm:$0xff] %vm39, 0.0
    %52 = vst.msk [vmem:[#allocation2 + $0x58] sm:$0x3] %vm42, 0.0
    %53 = vst.msk [vmem:[#allocation2 + $0x60] sm:$0xff] %vm39, 0.0
    %54 = vst.msk [vmem:[#allocation2 + $0x68] sm:$0xff] %vm39, 0.0
    %55 = vst.msk [vmem:[#allocation2 + $0x70] sm:$0x3] %vm42, 0.0
    %56 = vst.msk [vmem:[#allocation2 + $0x78] sm:$0xff] %vm39, 0.0
    %57 = vst.msk [vmem:[#allocation2 + $0x80] sm:$0xff] %vm39, 0.0
    %58 = vst.msk [vmem:[#allocation2 + $0x88] sm:$0x3] %vm42, 0.0
    %59 = vst.msk [vmem:[#allocation2 + $0x90] sm:$0xff] %vm39, 0.0
    %60 = vst.msk [vmem:[#allocation2 + $0x98] sm:$0xff] %vm39, 0.0
    %61 = vst.msk [vmem:[#allocation2 + $0xa0] sm:$0x3] %vm42, 0.0
    %62 = vst.msk [vmem:[#allocation2 + $0xa8] sm:$0xff] %vm39, 0.0
    %63 = vst.msk [vmem:[#allocation2 + $0xb0] sm:$0xff] %vm39, 0.0
    %64 = vst.msk [vmem:[#allocation2 + $0xb8] sm:$0x3] %vm42, 0.0
    %65 = vst.msk [vmem:[#allocation2 + $0xc0] sm:$0xff] %vm39, 0.0
    %66 = vst.msk [vmem:[#allocation2 + $0xc8] sm:$0xff] %vm39, 0.0
    %67 = vst.msk [vmem:[#allocation2 + $0xd0] sm:$0x3] %vm42, 0.0
    %68 = vst.msk [vmem:[#allocation2 + $0xd8] sm:$0xff] %vm39, 0.0
    %69 = vst.msk [vmem:[#allocation2 + $0xe0] sm:$0xff] %vm39, 0.0
    %70 = vst.msk [vmem:[#allocation2 + $0xe8] sm:$0x3] %vm42, 0.0
    %71 = vst.msk [vmem:[#allocation2 + $0xf0] sm:$0xff] %vm39, 0.0
    %72 = vst.msk [vmem:[#allocation2 + $0xf8] sm:$0xff] %vm39, 0.0
    %73 = vst.msk [vmem:[#allocation2 + $0x100] sm:$0x3] %vm42, 0.0
    %74 = vst.msk [vmem:[#allocation2 + $0x108] sm:$0xff] %vm39, 0.0
    %75 = vst.msk [vmem:[#allocation2 + $0x110] sm:$0xff] %vm39, 0.0
    %76 = vst.msk [vmem:[#allocation2 + $0x118] sm:$0x3] %vm42, 0.0
    %77 = vst.msk [vmem:[#allocation2 + $0x120] sm:$0xff] %vm39, 0.0
    %78 = vst.msk [vmem:[#allocation2 + $0x128] sm:$0xff] %vm39, 0.0
    %79 = vst.msk [vmem:[#allocation2 + $0x130] sm:$0x3] %vm42, 0.0
    %80 = vst.msk [vmem:[#allocation2 + $0x138] sm:$0xff] %vm39, 0.0
    %81 = vst.msk [vmem:[#allocation2 + $0x140] sm:$0xff] %vm39, 0.0
    %82 = vst.msk [vmem:[#allocation2 + $0x148] sm:$0x3] %vm42, 0.0
    %83 = vst.msk [vmem:[#allocation2 + $0x150] sm:$0xff] %vm39, 0.0
    %84 = vst.msk [vmem:[#allocation2 + $0x158] sm:$0xff] %vm39, 0.0
    %85 = vst.msk [vmem:[#allocation2 + $0x160] sm:$0x3] %vm42, 0.0
    %86 = vst.msk [vmem:[#allocation2 + $0x168] sm:$0xff] %vm39, 0.0
    %87 = vst.msk [vmem:[#allocation2 + $0x170] sm:$0xff] %vm39, 0.0
    %88 = vst.msk [vmem:[#allocation2 + $0x178] sm:$0x3] %vm42, 0.0
    %89 = vst.msk [vmem:[#allocation2 + $0x180] sm:$0xff] %vm39, 0.0
    %90 = vst.msk [vmem:[#allocation2 + $0x188] sm:$0xff] %vm39, 0.0
    %91 = vst.msk [vmem:[#allocation2 + $0x190] sm:$0x3] %vm42, 0.0
    %92 = vst.msk [vmem:[#allocation2 + $0x198] sm:$0xff] %vm39, 0.0
    %93 = vst.msk [vmem:[#allocation2 + $0x1a0] sm:$0xff] %vm39, 0.0
    %94 = vst.msk [vmem:[#allocation2 + $0x1a8] sm:$0x3] %vm42, 0.0
    %95 = vst.msk [vmem:[#allocation2 + $0x1b0] sm:$0xff] %vm39, 0.0
    %96 = vst.msk [vmem:[#allocation2 + $0x1b8] sm:$0xff] %vm39, 0.0
    %97 = vst.msk [vmem:[#allocation2 + $0x1c0] sm:$0x3] %vm42, 0.0
    %98 = vst.msk [vmem:[#allocation2 + $0x1c8] sm:$0xff] %vm39, 0.0
    %99 = vst.msk [vmem:[#allocation2 + $0x1d0] sm:$0xff] %vm39, 0.0
    %100 = vst.msk [vmem:[#allocation2 + $0x1d8] sm:$0x3] %vm42, 0.0
    %101 = vst.msk [vmem:[#allocation2 + $0x1e0] sm:$0xff] %vm39, 0.0
    %102 = vst.msk [vmem:[#allocation2 + $0x1e8] sm:$0xff] %vm39, 0.0
    %103 = vst.msk [vmem:[#allocation2 + $0x1f0] sm:$0x3] %vm42, 0.0
    %104 = vst.msk [vmem:[#allocation2 + $0x1f8] sm:$0xff] %vm39, 0.0
    %105 = vst.msk [vmem:[#allocation2 + $0x200] sm:$0xff] %vm39, 0.0
    %106 = vst.msk [vmem:[#allocation2 + $0x208] sm:$0x3] %vm42, 0.0
    %107 = vst.msk [vmem:[#allocation2 + $0x210] sm:$0xff] %vm39, 0.0
    %108 = vst.msk [vmem:[#allocation2 + $0x218] sm:$0xff] %vm39, 0.0
    %109 = vst.msk [vmem:[#allocation2 + $0x220] sm:$0x3] %vm42, 0.0
    %110 = vst.msk [vmem:[#allocation2 + $0x228] sm:$0xff] %vm39, 0.0
    %111 = vst.msk [vmem:[#allocation2 + $0x230] sm:$0xff] %vm39, 0.0
    %112 = vst.msk [vmem:[#allocation2 + $0x238] sm:$0x3] %vm42, 0.0
    %113 = vst.msk [vmem:[#allocation2 + $0x240] sm:$0xff] %vm39, 0.0
    %114 = vst.msk [vmem:[#allocation2 + $0x248] sm:$0xff] %vm39, 0.0
    %115 = vst.msk [vmem:[#allocation2 + $0x250] sm:$0x3] %vm42, 0.0
    %116 = vst.msk [vmem:[#allocation2 + $0x258] sm:$0xff] %vm39, 0.0
    %117 = vst.msk [vmem:[#allocation2 + $0x260] sm:$0xff] %vm39, 0.0
    %118 = vst.msk [vmem:[#allocation2 + $0x268] sm:$0x3] %vm42, 0.0
    %119 = vst.msk [vmem:[#allocation2 + $0x270] sm:$0xff] %vm39, 0.0
    %120 = vst.msk [vmem:[#allocation2 + $0x278] sm:$0xff] %vm39, 0.0
    %121 = vst.msk [vmem:[#allocation2 + $0x280] sm:$0x3] %vm42, 0.0
    %122 = vst.msk [vmem:[#allocation2 + $0x288] sm:$0xff] %vm39, 0.0
    %123 = vst.msk [vmem:[#allocation2 + $0x290] sm:$0xff] %vm39, 0.0
    %124 = vst.msk [vmem:[#allocation2 + $0x298] sm:$0x3] %vm42, 0.0
    %125 = vst.msk [vmem:[#allocation2 + $0x2a0] sm:$0xff] %vm39, 0.0
    %126 = vst.msk [vmem:[#allocation2 + $0x2a8] sm:$0xff] %vm39, 0.0
    %127 = vst.msk [vmem:[#allocation2 + $0x2b0] sm:$0x3] %vm42, 0.0
    %128 = vst.msk [vmem:[#allocation2 + $0x2b8] sm:$0xff] %vm39, 0.0
    %129 = vst.msk [vmem:[#allocation2 + $0x2c0] sm:$0xff] %vm39, 0.0
    %130 = vst.msk [vmem:[#allocation2 + $0x2c8] sm:$0x3] %vm42, 0.0
    %131 = vst.msk [vmem:[#allocation2 + $0x2d0] sm:$0xff] %vm39, 0.0
    %132 = vst.msk [vmem:[#allocation2 + $0x2d8] sm:$0xff] %vm39, 0.0
    %133 = vst.msk [vmem:[#allocation2 + $0x2e0] sm:$0x3] %vm42, 0.0
    %134 = vst.msk [vmem:[#allocation2 + $0x2e8] sm:$0xff] %vm39, 0.0
    %135 = vst.msk [vmem:[#allocation2 + $0x2f0] sm:$0xff] %vm39, 0.0
    %136 = vst.msk [vmem:[#allocation2 + $0x2f8] sm:$0x3] %vm42, 0.0
    %137 = vst.msk [vmem:[#allocation2 + $0x300] sm:$0xff] %vm39, 0.0
    %138 = vst.msk [vmem:[#allocation2 + $0x308] sm:$0xff] %vm39, 0.0
    %139 = vst.msk [vmem:[#allocation2 + $0x310] sm:$0x3] %vm42, 0.0
    %140 = vst.msk [vmem:[#allocation2 + $0x318] sm:$0xff] %vm39, 0.0
    %141 = vst.msk [vmem:[#allocation2 + $0x320] sm:$0xff] %vm39, 0.0
    %142 = vst.msk [vmem:[#allocation2 + $0x328] sm:$0x3] %vm42, 0.0
    %143 = vst.msk [vmem:[#allocation2 + $0x330] sm:$0xff] %vm39, 0.0
    %144 = vst.msk [vmem:[#allocation2 + $0x338] sm:$0xff] %vm39, 0.0
    %145 = vst.msk [vmem:[#allocation2 + $0x340] sm:$0x3] %vm42, 0.0
    %146 = vst.msk [vmem:[#allocation2 + $0x348] sm:$0xff] %vm39, 0.0
    %147 = vst.msk [vmem:[#allocation2 + $0x350] sm:$0xff] %vm39, 0.0
    %148 = vst.msk [vmem:[#allocation2 + $0x358] sm:$0x3] %vm42, 0.0
    %v149 = vld [vmem:[%s0] sm:$0xff]
    %v150 = vld [vmem:[%s0 + $0x8] sm:$0xff]
    %v151 = vld [vmem:[%s0 + $0x10] sm:$0xff]
    %v152 = vld [vmem:[%s0 + $0x18] sm:$0xff]
    %v153 = vld [vmem:[%s0 + $0x20] sm:$0xff]
    %v154 = vld [vmem:[%s0 + $0x28] sm:$0xff]
    %v155 = vld [vmem:[%s0 + $0x30] sm:$0xff]
    %v156 = vld [vmem:[%s0 + $0x38] sm:$0xff]
    %v157 = vld [vmem:[%s0 + $0x40] sm:$0xff]
    %v158 = vld [vmem:[%s0 + $0x48] sm:$0xff]
    %v159 = vld [vmem:[%s0 + $0x50] sm:$0xff]
    %v160 = vld [vmem:[%s0 + $0x58] sm:$0xff]
    %v161 = vld [vmem:[%s0 + $0x60] sm:$0xff]
    %v162 = vld [vmem:[%s0 + $0x68] sm:$0xff]
    %v163 = vld [vmem:[%s0 + $0x70] sm:$0xff]
    %v164 = vld [vmem:[%s0 + $0x78] sm:$0xff]
    %v165 = vld [vmem:[%s0 + $0x80] sm:$0xff]
    %v166 = vld [vmem:[%s0 + $0x88] sm:$0xff]
    %v167 = vld [vmem:[%s0 + $0x90] sm:$0xff]
    %v168 = vld [vmem:[%s0 + $0x98] sm:$0xff]
    %v169 = vld [vmem:[%s0 + $0xa0] sm:$0xff]
    %v170 = vld [vmem:[%s0 + $0xa8] sm:$0xff]
    %v171 = vld [vmem:[%s0 + $0xb0] sm:$0xff]
    %v172 = vld [vmem:[%s0 + $0xb8] sm:$0xff]
    %v173 = vld [vmem:[%s0 + $0xc0] sm:$0xff]
    %v174 = vld [vmem:[%s0 + $0xc8] sm:$0xff]
    %v175 = vld [vmem:[%s0 + $0xd0] sm:$0xff]
    %v176 = vld [vmem:[%s0 + $0xd8] sm:$0xff]
    %v177 = vld [vmem:[%s0 + $0xe0] sm:$0xff]
    %v178 = vld [vmem:[%s0 + $0xe8] sm:$0xff]
    %v179 = vld [vmem:[%s0 + $0xf0] sm:$0xff]
    %v180 = vld [vmem:[%s0 + $0xf8] sm:$0xff]
    %v181 = vld [vmem:[%s0 + $0x100] sm:$0xff]
    %v182 = vld [vmem:[%s0 + $0x108] sm:$0xff]
    %v183 = vld [vmem:[%s0 + $0x110] sm:$0xff]
    %v184 = vld [vmem:[%s0 + $0x118] sm:$0xff]
    %v185 = vld [vmem:[%s0 + $0x120] sm:$0xff]
    %v186 = vld [vmem:[%s0 + $0x128] sm:$0xff]
    %v187 = vld [vmem:[%s0 + $0x130] sm:$0xff]
    %v188 = vld [vmem:[%s0 + $0x138] sm:$0xff]
    %v189 = vld [vmem:[%s0 + $0x140] sm:$0xff]
    %v190 = vld [vmem:[%s0 + $0x148] sm:$0xff]
    %v191 = vld [vmem:[%s0 + $0x150] sm:$0xff]
    %v192 = vld [vmem:[%s0 + $0x158] sm:$0xff]
    %v193 = vld [vmem:[%s0 + $0x160] sm:$0xff]
    %v194 = vld [vmem:[%s0 + $0x168] sm:$0xff]
    %v195 = vld [vmem:[%s0 + $0x170] sm:$0xff]
    %v196 = vld [vmem:[%s0 + $0x178] sm:$0xff]
    %v197 = vld [vmem:[%s0 + $0x180] sm:$0xff]
    %v198 = vld [vmem:[%s0 + $0x188] sm:$0xff]
    %v199 = vld [vmem:[%s0 + $0x190] sm:$0xff]
    %v200 = vld [vmem:[%s0 + $0x198] sm:$0xff]
    %v201 = vld [vmem:[%s0 + $0x1a0] sm:$0xff]
    %v202 = vld [vmem:[%s0 + $0x1a8] sm:$0xff]
    %v203 = vld [vmem:[%s0 + $0x1b0] sm:$0xff]
    %v204 = vld [vmem:[%s0 + $0x1b8] sm:$0xff]
    %v205 = vld [vmem:[%s0 + $0x1c0] sm:$0xff]
    %v206 = vld [vmem:[%s0 + $0x1c8] sm:$0xff]
    %v207 = vld [vmem:[%s0 + $0x1d0] sm:$0xff]
    %v208 = vld [vmem:[%s0 + $0x1d8] sm:$0xff]
    %v209 = vld [vmem:[%s0 + $0x1e0] sm:$0xff]
    %v210 = vld [vmem:[%s0 + $0x1e8] sm:$0xff]
    %v211 = vld [vmem:[%s0 + $0x1f0] sm:$0xff]
    %v212 = vld [vmem:[%s0 + $0x1f8] sm:$0xff]
    %s213 = scalar_lea.vmem [#allocation2], 24
    %214 = vst.msk [vmem:[%s213 + $0x1] sm:$0xff] %vm39, %v149
    %215 = vst.msk [vmem:[%s213 + $0x9] sm:$0xff] %vm39, %v150
    %216 = vst.msk [vmem:[%s213 + $0x19] sm:$0xff] %vm39, %v151
    %217 = vst.msk [vmem:[%s213 + $0x21] sm:$0xff] %vm39, %v152
    %218 = vst.msk [vmem:[%s213 + $0x31] sm:$0xff] %vm39, %v153
    %219 = vst.msk [vmem:[%s213 + $0x39] sm:$0xff] %vm39, %v154
    %220 = vst.msk [vmem:[%s213 + $0x49] sm:$0xff] %vm39, %v155
    %221 = vst.msk [vmem:[%s213 + $0x51] sm:$0xff] %vm39, %v156
    %222 = vst.msk [vmem:[%s213 + $0x61] sm:$0xff] %vm39, %v157
    %223 = vst.msk [vmem:[%s213 + $0x69] sm:$0xff] %vm39, %v158
    %224 = vst.msk [vmem:[%s213 + $0x79] sm:$0xff] %vm39, %v159
    %225 = vst.msk [vmem:[%s213 + $0x81] sm:$0xff] %vm39, %v160
    %226 = vst.msk [vmem:[%s213 + $0x91] sm:$0xff] %vm39, %v161
    %227 = vst.msk [vmem:[%s213 + $0x99] sm:$0xff] %vm39, %v162
    %228 = vst.msk [vmem:[%s213 + $0xa9] sm:$0xff] %vm39, %v163
    %229 = vst.msk [vmem:[%s213 + $0xb1] sm:$0xff] %vm39, %v164
    %230 = vst.msk [vmem:[%s213 + $0xc1] sm:$0xff] %vm39, %v165
    %231 = vst.msk [vmem:[%s213 + $0xc9] sm:$0xff] %vm39, %v166
    %232 = vst.msk [vmem:[%s213 + $0xd9] sm:$0xff] %vm39, %v167
    %233 = vst.msk [vmem:[%s213 + $0xe1] sm:$0xff] %vm39, %v168
    %234 = vst.msk [vmem:[%s213 + $0xf1] sm:$0xff] %vm39, %v169
    %235 = vst.msk [vmem:[%s213 + $0xf9] sm:$0xff] %vm39, %v170
    %236 = vst.msk [vmem:[%s213 + $0x109] sm:$0xff] %vm39, %v171
    %237 = vst.msk [vmem:[%s213 + $0x111] sm:$0xff] %vm39, %v172
    %238 = vst.msk [vmem:[%s213 + $0x121] sm:$0xff] %vm39, %v173
    %239 = vst.msk [vmem:[%s213 + $0x129] sm:$0xff] %vm39, %v174
    %240 = vst.msk [vmem:[%s213 + $0x139] sm:$0xff] %vm39, %v175
    %241 = vst.msk [vmem:[%s213 + $0x141] sm:$0xff] %vm39, %v176
    %242 = vst.msk [vmem:[%s213 + $0x151] sm:$0xff] %vm39, %v177
    %243 = vst.msk [vmem:[%s213 + $0x159] sm:$0xff] %vm39, %v178
    %244 = vst.msk [vmem:[%s213 + $0x169] sm:$0xff] %vm39, %v179
    %245 = vst.msk [vmem:[%s213 + $0x171] sm:$0xff] %vm39, %v180
    %246 = vst.msk [vmem:[%s213 + $0x1b1] sm:$0xff] %vm39, %v181
    %247 = vst.msk [vmem:[%s213 + $0x1b9] sm:$0xff] %vm39, %v182
    %248 = vst.msk [vmem:[%s213 + $0x1c9] sm:$0xff] %vm39, %v183
    %249 = vst.msk [vmem:[%s213 + $0x1d1] sm:$0xff] %vm39, %v184
    %250 = vst.msk [vmem:[%s213 + $0x1e1] sm:$0xff] %vm39, %v185
    %251 = vst.msk [vmem:[%s213 + $0x1e9] sm:$0xff] %vm39, %v186
    %252 = vst.msk [vmem:[%s213 + $0x1f9] sm:$0xff] %vm39, %v187
    %253 = vst.msk [vmem:[%s213 + $0x201] sm:$0xff] %vm39, %v188
    %254 = vst.msk [vmem:[%s213 + $0x211] sm:$0xff] %vm39, %v189
    %255 = vst.msk [vmem:[%s213 + $0x219] sm:$0xff] %vm39, %v190
    %256 = vst.msk [vmem:[%s213 + $0x229] sm:$0xff] %vm39, %v191
    %257 = vst.msk [vmem:[%s213 + $0x231] sm:$0xff] %vm39, %v192
    %258 = vst.msk [vmem:[%s213 + $0x241] sm:$0xff] %vm39, %v193
    %259 = vst.msk [vmem:[%s213 + $0x249] sm:$0xff] %vm39, %v194
    %260 = vst.msk [vmem:[%s213 + $0x259] sm:$0xff] %vm39, %v195
    %261 = vst.msk [vmem:[%s213 + $0x261] sm:$0xff] %vm39, %v196
    %262 = vst.msk [vmem:[%s213 + $0x271] sm:$0xff] %vm39, %v197
    %263 = vst.msk [vmem:[%s213 + $0x279] sm:$0xff] %vm39, %v198
    %264 = vst.msk [vmem:[%s213 + $0x289] sm:$0xff] %vm39, %v199
    %265 = vst.msk [vmem:[%s213 + $0x291] sm:$0xff] %vm39, %v200
    %266 = vst.msk [vmem:[%s213 + $0x2a1] sm:$0xff] %vm39, %v201
    %267 = vst.msk [vmem:[%s213 + $0x2a9] sm:$0xff] %vm39, %v202
    %268 = vst.msk [vmem:[%s213 + $0x2b9] sm:$0xff] %vm39, %v203
    %269 = vst.msk [vmem:[%s213 + $0x2c1] sm:$0xff] %vm39, %v204
    %270 = vst.msk [vmem:[%s213 + $0x2d1] sm:$0xff] %vm39, %v205
    %271 = vst.msk [vmem:[%s213 + $0x2d9] sm:$0xff] %vm39, %v206
    %272 = vst.msk [vmem:[%s213 + $0x2e9] sm:$0xff] %vm39, %v207
    %273 = vst.msk [vmem:[%s213 + $0x2f1] sm:$0xff] %vm39, %v208
    %274 = vst.msk [vmem:[%s213 + $0x301] sm:$0xff] %vm39, %v209
    %275 = vst.msk [vmem:[%s213 + $0x309] sm:$0xff] %vm39, %v210
    %276 = vst.msk [vmem:[%s213 + $0x319] sm:$0xff] %vm39, %v211
    %277 = vst.msk [vmem:[%s213 + $0x321] sm:$0xff] %vm39, %v212
    %v278 = vld [vmem:[#allocation2] sm:$0xff]
    %v279 = vld [vmem:[#allocation2 + $0x8] sm:$0xff]
    %v280 = vld [vmem:[#allocation2 + $0x18] sm:$0xff]
    %v281 = vld [vmem:[#allocation2 + $0x20] sm:$0xff]
    %v282 = vld [vmem:[#allocation2 + $0x30] sm:$0xff]
    %v283 = vld [vmem:[#allocation2 + $0x38] sm:$0xff]
    %v284 = vld [vmem:[#allocation2 + $0x48] sm:$0xff]
    %v285 = vld [vmem:[#allocation2 + $0x50] sm:$0xff]
    %v286 = vld [vmem:[#allocation2 + $0x60] sm:$0xff]
    %v287 = vld [vmem:[#allocation2 + $0x68] sm:$0xff]
    %v288 = vld [vmem:[#allocation2 + $0x78] sm:$0xff]
    %v289 = vld [vmem:[#allocation2 + $0x80] sm:$0xff]
    %v290 = vld [vmem:[#allocation2 + $0x90] sm:$0xff]
    %v291 = vld [vmem:[#allocation2 + $0x98] sm:$0xff]
    %v292 = vld [vmem:[#allocation2 + $0xa8] sm:$0xff]
    %v293 = vld [vmem:[#allocation2 + $0xb0] sm:$0xff]
    %v294 = vld [vmem:[#allocation2 + $0xc0] sm:$0xff]
    %v295 = vld [vmem:[#allocation2 + $0xc8] sm:$0xff]
    %v296 = vld [vmem:[#allocation2 + $0xd8] sm:$0xff]
    %v297 = vld [vmem:[#allocation2 + $0xe0] sm:$0xff]
    %v298 = vld [vmem:[#allocation2 + $0xf0] sm:$0xff]
    %v299 = vld [vmem:[#allocation2 + $0xf8] sm:$0xff]
    %v300 = vld [vmem:[#allocation2 + $0x108] sm:$0xff]
    %v301 = vld [vmem:[#allocation2 + $0x110] sm:$0xff]
    %v302 = vld [vmem:[#allocation2 + $0x120] sm:$0xff]
    %v303 = vld [vmem:[#allocation2 + $0x128] sm:$0xff]
    %v304 = vld [vmem:[#allocation2 + $0x138] sm:$0xff]
    %v305 = vld [vmem:[#allocation2 + $0x140] sm:$0xff]
    %v306 = vld [vmem:[#allocation2 + $0x150] sm:$0xff]
    %v307 = vld [vmem:[#allocation2 + $0x158] sm:$0xff]
    %v308 = vld [vmem:[#allocation2 + $0x168] sm:$0xff]
    %v309 = vld [vmem:[#allocation2 + $0x170] sm:$0xff]
    %v310 = vld [vmem:[#allocation2 + $0x1b0] sm:$0xff]
    %v311 = vld [vmem:[#allocation2 + $0x1b8] sm:$0xff]
    %v312 = vld [vmem:[#allocation2 + $0x1c8] sm:$0xff]
    %v313 = vld [vmem:[#allocation2 + $0x1d0] sm:$0xff]
    %v314 = vld [vmem:[#allocation2 + $0x1e0] sm:$0xff]
    %v315 = vld [vmem:[#allocation2 + $0x1e8] sm:$0xff]
    %v316 = vld [vmem:[#allocation2 + $0x1f8] sm:$0xff]
    %v317 = vld [vmem:[#allocation2 + $0x200] sm:$0xff]
    %v318 = vld [vmem:[#allocation2 + $0x210] sm:$0xff]
    %v319 = vld [vmem:[#allocation2 + $0x218] sm:$0xff]
    %v320 = vld [vmem:[#allocation2 + $0x228] sm:$0xff]
    %v321 = vld [vmem:[#allocation2 + $0x230] sm:$0xff]
    %v322 = vld [vmem:[#allocation2 + $0x240] sm:$0xff]
    %v323 = vld [vmem:[#allocation2 + $0x248] sm:$0xff]
    %v324 = vld [vmem:[#allocation2 + $0x258] sm:$0xff]
    %v325 = vld [vmem:[#allocation2 + $0x260] sm:$0xff]
    %v326 = vld [vmem:[#allocation2 + $0x270] sm:$0xff]
    %v327 = vld [vmem:[#allocation2 + $0x278] sm:$0xff]
    %v328 = vld [vmem:[#allocation2 + $0x288] sm:$0xff]
    %v329 = vld [vmem:[#allocation2 + $0x290] sm:$0xff]
    %v330 = vld [vmem:[#allocation2 + $0x2a0] sm:$0xff]
    %v331 = vld [vmem:[#allocation2 + $0x2a8] sm:$0xff]
    %v332 = vld [vmem:[#allocation2 + $0x2b8] sm:$0xff]
    %v333 = vld [vmem:[#allocation2 + $0x2c0] sm:$0xff]
    %v334 = vld [vmem:[#allocation2 + $0x2d0] sm:$0xff]
    %v335 = vld [vmem:[#allocation2 + $0x2d8] sm:$0xff]
    %v336 = vld [vmem:[#allocation2 + $0x2e8] sm:$0xff]
    %v337 = vld [vmem:[#allocation2 + $0x2f0] sm:$0xff]
    %v338 = vld [vmem:[#allocation2 + $0x300] sm:$0xff]
    %v339 = vld [vmem:[#allocation2 + $0x308] sm:$0xff]
    %v340 = vld [vmem:[#allocation2 + $0x318] sm:$0xff]
    %v341 = vld [vmem:[#allocation2 + $0x320] sm:$0xff]
    %v342 = vld [vmem:[#allocation2 + $0x1] sm:$0xff]
    %v343 = vld [vmem:[#allocation2 + $0x9] sm:$0xff]
    %v344 = vld [vmem:[#allocation2 + $0x19] sm:$0xff]
    %v345 = vld [vmem:[#allocation2 + $0x21] sm:$0xff]
    %v346 = vld [vmem:[#allocation2 + $0x31] sm:$0xff]
    %v347 = vld [vmem:[#allocation2 + $0x39] sm:$0xff]
    %v348 = vld [vmem:[#allocation2 + $0x49] sm:$0xff]
    %v349 = vld [vmem:[#allocation2 + $0x51] sm:$0xff]
    %v350 = vld [vmem:[#allocation2 + $0x61] sm:$0xff]
    %v351 = vld [vmem:[#allocation2 + $0x69] sm:$0xff]
    %v352 = vld [vmem:[#allocation2 + $0x79] sm:$0xff]
    %v353 = vld [vmem:[#allocation2 + $0x81] sm:$0xff]
    %v354 = vld [vmem:[#allocation2 + $0x91] sm:$0xff]
    %v355 = vld [vmem:[#allocation2 + $0x99] sm:$0xff]
    %v356 = vld [vmem:[#allocation2 + $0xa9] sm:$0xff]
    %v357 = vld [vmem:[#allocation2 + $0xb1] sm:$0xff]
    %v358 = vld [vmem:[#allocation2 + $0xc1] sm:$0xff]
    %v359 = vld [vmem:[#allocation2 + $0xc9] sm:$0xff]
    %v360 = vld [vmem:[#allocation2 + $0xd9] sm:$0xff]
    %v361 = vld [vmem:[#allocation2 + $0xe1] sm:$0xff]
    %v362 = vld [vmem:[#allocation2 + $0xf1] sm:$0xff]
    %v363 = vld [vmem:[#allocation2 + $0xf9] sm:$0xff]
    %v364 = vld [vmem:[#allocation2 + $0x109] sm:$0xff]
    %v365 = vld [vmem:[#allocation2 + $0x111] sm:$0xff]
    %v366 = vld [vmem:[#allocation2 + $0x121] sm:$0xff]
    %v367 = vld [vmem:[#allocation2 + $0x129] sm:$0xff]
    %v368 = vld [vmem:[#allocation2 + $0x139] sm:$0xff]
    %v369 = vld [vmem:[#allocation2 + $0x141] sm:$0xff]
    %v370 = vld [vmem:[#allocation2 + $0x151] sm:$0xff]
    %v371 = vld [vmem:[#allocation2 + $0x159] sm:$0xff]
    %v372 = vld [vmem:[#allocation2 + $0x169] sm:$0xff]
    %v373 = vld [vmem:[#allocation2 + $0x171] sm:$0xff]
    %v374 = vld [vmem:[#allocation2 + $0x1b1] sm:$0xff]
    %v375 = vld [vmem:[#allocation2 + $0x1b9] sm:$0xff]
    %v376 = vld [vmem:[#allocation2 + $0x1c9] sm:$0xff]
    %v377 = vld [vmem:[#allocation2 + $0x1d1] sm:$0xff]
    %v378 = vld [vmem:[#allocation2 + $0x1e1] sm:$0xff]
    %v379 = vld [vmem:[#allocation2 + $0x1e9] sm:$0xff]
    %v380 = vld [vmem:[#allocation2 + $0x1f9] sm:$0xff]
    %v381 = vld [vmem:[#allocation2 + $0x201] sm:$0xff]
    %v382 = vld [vmem:[#allocation2 + $0x211] sm:$0xff]
    %v383 = vld [vmem:[#allocation2 + $0x219] sm:$0xff]
    %v384 = vld [vmem:[#allocation2 + $0x229] sm:$0xff]
    %v385 = vld [vmem:[#allocation2 + $0x231] sm:$0xff]
    %v386 = vld [vmem:[#allocation2 + $0x241] sm:$0xff]
    %v387 = vld [vmem:[#allocation2 + $0x249] sm:$0xff]
    %v388 = vld [vmem:[#allocation2 + $0x259] sm:$0xff]
    %v389 = vld [vmem:[#allocation2 + $0x261] sm:$0xff]
    %v390 = vld [vmem:[#allocation2 + $0x271] sm:$0xff]
    %v391 = vld [vmem:[#allocation2 + $0x279] sm:$0xff]
    %v392 = vld [vmem:[#allocation2 + $0x289] sm:$0xff]
    %v393 = vld [vmem:[#allocation2 + $0x291] sm:$0xff]
    %v394 = vld [vmem:[#allocation2 + $0x2a1] sm:$0xff]
    %v395 = vld [vmem:[#allocation2 + $0x2a9] sm:$0xff]
    %v396 = vld [vmem:[#allocation2 + $0x2b9] sm:$0xff]
    %v397 = vld [vmem:[#allocation2 + $0x2c1] sm:$0xff]
    %v398 = vld [vmem:[#allocation2 + $0x2d1] sm:$0xff]
    %v399 = vld [vmem:[#allocation2 + $0x2d9] sm:$0xff]
    %v400 = vld [vmem:[#allocation2 + $0x2e9] sm:$0xff]
    %v401 = vld [vmem:[#allocation2 + $0x2f1] sm:$0xff]
    %v402 = vld [vmem:[#allocation2 + $0x301] sm:$0xff]
    %v403 = vld [vmem:[#allocation2 + $0x309] sm:$0xff]
    %v404 = vld [vmem:[#allocation2 + $0x319] sm:$0xff]
    %v405 = vld [vmem:[#allocation2 + $0x321] sm:$0xff]
    %v406 = vld [vmem:[#allocation2 + $0x2] sm:$0xff]
    %v407 = vld [vmem:[#allocation2 + $0xa] sm:$0xff]
    %v408 = vld [vmem:[#allocation2 + $0x1a] sm:$0xff]
    %v409 = vld [vmem:[#allocation2 + $0x22] sm:$0xff]
    %v410 = vld [vmem:[#allocation2 + $0x32] sm:$0xff]
    %v411 = vld [vmem:[#allocation2 + $0x3a] sm:$0xff]
    %v412 = vld [vmem:[#allocation2 + $0x4a] sm:$0xff]
    %v413 = vld [vmem:[#allocation2 + $0x52] sm:$0xff]
    %v414 = vld [vmem:[#allocation2 + $0x62] sm:$0xff]
    %v415 = vld [vmem:[#allocation2 + $0x6a] sm:$0xff]
    %v416 = vld [vmem:[#allocation2 + $0x7a] sm:$0xff]
    %v417 = vld [vmem:[#allocation2 + $0x82] sm:$0xff]
    %v418 = vld [vmem:[#allocation2 + $0x92] sm:$0xff]
    %v419 = vld [vmem:[#allocation2 + $0x9a] sm:$0xff]
    %v420 = vld [vmem:[#allocation2 + $0xaa] sm:$0xff]
    %v421 = vld [vmem:[#allocation2 + $0xb2] sm:$0xff]
    %v422 = vld [vmem:[#allocation2 + $0xc2] sm:$0xff]
    %v423 = vld [vmem:[#allocation2 + $0xca] sm:$0xff]
    %v424 = vld [vmem:[#allocation2 + $0xda] sm:$0xff]
    %v425 = vld [vmem:[#allocation2 + $0xe2] sm:$0xff]
    %v426 = vld [vmem:[#allocation2 + $0xf2] sm:$0xff]
    %v427 = vld [vmem:[#allocation2 + $0xfa] sm:$0xff]
    %v428 = vld [vmem:[#allocation2 + $0x10a] sm:$0xff]
    %v429 = vld [vmem:[#allocation2 + $0x112] sm:$0xff]
    %v430 = vld [vmem:[#allocation2 + $0x122] sm:$0xff]
    %v431 = vld [vmem:[#allocation2 + $0x12a] sm:$0xff]
    %v432 = vld [vmem:[#allocation2 + $0x13a] sm:$0xff]
    %v433 = vld [vmem:[#allocation2 + $0x142] sm:$0xff]
    %v434 = vld [vmem:[#allocation2 + $0x152] sm:$0xff]
    %v435 = vld [vmem:[#allocation2 + $0x15a] sm:$0xff]
    %v436 = vld [vmem:[#allocation2 + $0x16a] sm:$0xff]
    %v437 = vld [vmem:[#allocation2 + $0x172] sm:$0xff]
    %v438 = vld [vmem:[#allocation2 + $0x1b2] sm:$0xff]
    %v439 = vld [vmem:[#allocation2 + $0x1ba] sm:$0xff]
    %v440 = vld [vmem:[#allocation2 + $0x1ca] sm:$0xff]
    %v441 = vld [vmem:[#allocation2 + $0x1d2] sm:$0xff]
    %v442 = vld [vmem:[#allocation2 + $0x1e2] sm:$0xff]
    %v443 = vld [vmem:[#allocation2 + $0x1ea] sm:$0xff]
    %v444 = vld [vmem:[#allocation2 + $0x1fa] sm:$0xff]
    %v445 = vld [vmem:[#allocation2 + $0x202] sm:$0xff]
    %v446 = vld [vmem:[#allocation2 + $0x212] sm:$0xff]
    %v447 = vld [vmem:[#allocation2 + $0x21a] sm:$0xff]
    %v448 = vld [vmem:[#allocation2 + $0x22a] sm:$0xff]
    %v449 = vld [vmem:[#allocation2 + $0x232] sm:$0xff]
    %v450 = vld [vmem:[#allocation2 + $0x242] sm:$0xff]
    %v451 = vld [vmem:[#allocation2 + $0x24a] sm:$0xff]
    %v452 = vld [vmem:[#allocation2 + $0x25a] sm:$0xff]
    %v453 = vld [vmem:[#allocation2 + $0x262] sm:$0xff]
    %v454 = vld [vmem:[#allocation2 + $0x272] sm:$0xff]
    %v455 = vld [vmem:[#allocation2 + $0x27a] sm:$0xff]
    %v456 = vld [vmem:[#allocation2 + $0x28a] sm:$0xff]
    %v457 = vld [vmem:[#allocation2 + $0x292] sm:$0xff]
    %v458 = vld [vmem:[#allocation2 + $0x2a2] sm:$0xff]
    %v459 = vld [vmem:[#allocation2 + $0x2aa] sm:$0xff]
    %v460 = vld [vmem:[#allocation2 + $0x2ba] sm:$0xff]
    %v461 = vld [vmem:[#allocation2 + $0x2c2] sm:$0xff]
    %v462 = vld [vmem:[#allocation2 + $0x2d2] sm:$0xff]
    %v463 = vld [vmem:[#allocation2 + $0x2da] sm:$0xff]
    %v464 = vld [vmem:[#allocation2 + $0x2ea] sm:$0xff]
    %v465 = vld [vmem:[#allocation2 + $0x2f2] sm:$0xff]
    %v466 = vld [vmem:[#allocation2 + $0x302] sm:$0xff]
    %v467 = vld [vmem:[#allocation2 + $0x30a] sm:$0xff]
    %v468 = vld [vmem:[#allocation2 + $0x31a] sm:$0xff]
    %v469 = vld [vmem:[#allocation2 + $0x322] sm:$0xff]
    %v470 = vld [vmem:[%s213] sm:$0xff]
    %v471 = vld [vmem:[%s213 + $0x8] sm:$0xff]
    %v472 = vld [vmem:[%s213 + $0x18] sm:$0xff]
    %v473 = vld [vmem:[%s213 + $0x20] sm:$0xff]
    %v474 = vld [vmem:[%s213 + $0x30] sm:$0xff]
    %v475 = vld [vmem:[%s213 + $0x38] sm:$0xff]
    %v476 = vld [vmem:[%s213 + $0x48] sm:$0xff]
    %v477 = vld [vmem:[%s213 + $0x50] sm:$0xff]
    %v478 = vld [vmem:[%s213 + $0x60] sm:$0xff]
    %v479 = vld [vmem:[%s213 + $0x68] sm:$0xff]
    %v480 = vld [vmem:[%s213 + $0x78] sm:$0xff]
    %v481 = vld [vmem:[%s213 + $0x80] sm:$0xff]
    %v482 = vld [vmem:[%s213 + $0x90] sm:$0xff]
    %v483 = vld [vmem:[%s213 + $0x98] sm:$0xff]
    %v484 = vld [vmem:[%s213 + $0xa8] sm:$0xff]
    %v485 = vld [vmem:[%s213 + $0xb0] sm:$0xff]
    %v486 = vld [vmem:[%s213 + $0xc0] sm:$0xff]
    %v487 = vld [vmem:[%s213 + $0xc8] sm:$0xff]
    %v488 = vld [vmem:[%s213 + $0xd8] sm:$0xff]
    %v489 = vld [vmem:[%s213 + $0xe0] sm:$0xff]
    %v490 = vld [vmem:[%s213 + $0xf0] sm:$0xff]
    %v491 = vld [vmem:[%s213 + $0xf8] sm:$0xff]
    %v492 = vld [vmem:[%s213 + $0x108] sm:$0xff]
    %v493 = vld [vmem:[%s213 + $0x110] sm:$0xff]
    %v494 = vld [vmem:[%s213 + $0x120] sm:$0xff]
    %v495 = vld [vmem:[%s213 + $0x128] sm:$0xff]
    %v496 = vld [vmem:[%s213 + $0x138] sm:$0xff]
    %v497 = vld [vmem:[%s213 + $0x140] sm:$0xff]
    %v498 = vld [vmem:[%s213 + $0x150] sm:$0xff]
    %v499 = vld [vmem:[%s213 + $0x158] sm:$0xff]
    %v500 = vld [vmem:[%s213 + $0x168] sm:$0xff]
    %v501 = vld [vmem:[%s213 + $0x170] sm:$0xff]
    %v502 = vld [vmem:[%s213 + $0x1b0] sm:$0xff]
    %v503 = vld [vmem:[%s213 + $0x1b8] sm:$0xff]
    %v504 = vld [vmem:[%s213 + $0x1c8] sm:$0xff]
    %v505 = vld [vmem:[%s213 + $0x1d0] sm:$0xff]
    %v506 = vld [vmem:[%s213 + $0x1e0] sm:$0xff]
    %v507 = vld [vmem:[%s213 + $0x1e8] sm:$0xff]
    %v508 = vld [vmem:[%s213 + $0x1f8] sm:$0xff]
    %v509 = vld [vmem:[%s213 + $0x200] sm:$0xff]
    %v510 = vld [vmem:[%s213 + $0x210] sm:$0xff]
    %v511 = vld [vmem:[%s213 + $0x218] sm:$0xff]
    %v512 = vld [vmem:[%s213 + $0x228] sm:$0xff]
    %v513 = vld [vmem:[%s213 + $0x230] sm:$0xff]
    %v514 = vld [vmem:[%s213 + $0x240] sm:$0xff]
    %v515 = vld [vmem:[%s213 + $0x248] sm:$0xff]
    %v516 = vld [vmem:[%s213 + $0x258] sm:$0xff]
    %v517 = vld [vmem:[%s213 + $0x260] sm:$0xff]
    %v518 = vld [vmem:[%s213 + $0x270] sm:$0xff]
    %v519 = vld [vmem:[%s213 + $0x278] sm:$0xff]
    %v520 = vld [vmem:[%s213 + $0x288] sm:$0xff]
    %v521 = vld [vmem:[%s213 + $0x290] sm:$0xff]
    %v522 = vld [vmem:[%s213 + $0x2a0] sm:$0xff]
    %v523 = vld [vmem:[%s213 + $0x2a8] sm:$0xff]
    %v524 = vld [vmem:[%s213 + $0x2b8] sm:$0xff]
    %v525 = vld [vmem:[%s213 + $0x2c0] sm:$0xff]
    %v526 = vld [vmem:[%s213 + $0x2d0] sm:$0xff]
    %v527 = vld [vmem:[%s213 + $0x2d8] sm:$0xff]
    %v528 = vld [vmem:[%s213 + $0x2e8] sm:$0xff]
    %v529 = vld [vmem:[%s213 + $0x2f0] sm:$0xff]
    %v530 = vld [vmem:[%s213 + $0x300] sm:$0xff]
    %v531 = vld [vmem:[%s213 + $0x308] sm:$0xff]
    %v532 = vld [vmem:[%s213 + $0x318] sm:$0xff]
    %v533 = vld [vmem:[%s213 + $0x320] sm:$0xff]
    %v534 = vld [vmem:[%s213 + $0x1] sm:$0xff]
    %v535 = vld [vmem:[%s213 + $0x9] sm:$0xff]
    %v536 = vld [vmem:[%s213 + $0x19] sm:$0xff]
    %v537 = vld [vmem:[%s213 + $0x21] sm:$0xff]
    %v538 = vld [vmem:[%s213 + $0x31] sm:$0xff]
    %v539 = vld [vmem:[%s213 + $0x39] sm:$0xff]
    %v540 = vld [vmem:[%s213 + $0x49] sm:$0xff]
    %v541 = vld [vmem:[%s213 + $0x51] sm:$0xff]
    %v542 = vld [vmem:[%s213 + $0x61] sm:$0xff]
    %v543 = vld [vmem:[%s213 + $0x69] sm:$0xff]
    %v544 = vld [vmem:[%s213 + $0x79] sm:$0xff]
    %v545 = vld [vmem:[%s213 + $0x81] sm:$0xff]
    %v546 = vld [vmem:[%s213 + $0x91] sm:$0xff]
    %v547 = vld [vmem:[%s213 + $0x99] sm:$0xff]
    %v548 = vld [vmem:[%s213 + $0xa9] sm:$0xff]
    %v549 = vld [vmem:[%s213 + $0xb1] sm:$0xff]
    %v550 = vld [vmem:[%s213 + $0xc1] sm:$0xff]
    %v551 = vld [vmem:[%s213 + $0xc9] sm:$0xff]
    %v552 = vld [vmem:[%s213 + $0xd9] sm:$0xff]
    %v553 = vld [vmem:[%s213 + $0xe1] sm:$0xff]
    %v554 = vld [vmem:[%s213 + $0xf1] sm:$0xff]
    %v555 = vld [vmem:[%s213 + $0xf9] sm:$0xff]
    %v556 = vld [vmem:[%s213 + $0x109] sm:$0xff]
    %v557 = vld [vmem:[%s213 + $0x111] sm:$0xff]
    %v558 = vld [vmem:[%s213 + $0x121] sm:$0xff]
    %v559 = vld [vmem:[%s213 + $0x129] sm:$0xff]
    %v560 = vld [vmem:[%s213 + $0x139] sm:$0xff]
    %v561 = vld [vmem:[%s213 + $0x141] sm:$0xff]
    %v562 = vld [vmem:[%s213 + $0x151] sm:$0xff]
    %v563 = vld [vmem:[%s213 + $0x159] sm:$0xff]
    %v564 = vld [vmem:[%s213 + $0x169] sm:$0xff]
    %v565 = vld [vmem:[%s213 + $0x171] sm:$0xff]
    %v566 = vld [vmem:[%s213 + $0x1b1] sm:$0xff]
    %v567 = vld [vmem:[%s213 + $0x1b9] sm:$0xff]
    %v568 = vld [vmem:[%s213 + $0x1c9] sm:$0xff]
    %v569 = vld [vmem:[%s213 + $0x1d1] sm:$0xff]
    %v570 = vld [vmem:[%s213 + $0x1e1] sm:$0xff]
    %v571 = vld [vmem:[%s213 + $0x1e9] sm:$0xff]
    %v572 = vld [vmem:[%s213 + $0x1f9] sm:$0xff]
    %v573 = vld [vmem:[%s213 + $0x201] sm:$0xff]
    %v574 = vld [vmem:[%s213 + $0x211] sm:$0xff]
    %v575 = vld [vmem:[%s213 + $0x219] sm:$0xff]
    %v576 = vld [vmem:[%s213 + $0x229] sm:$0xff]
    %v577 = vld [vmem:[%s213 + $0x231] sm:$0xff]
    %v578 = vld [vmem:[%s213 + $0x241] sm:$0xff]
    %v579 = vld [vmem:[%s213 + $0x249] sm:$0xff]
    %v580 = vld [vmem:[%s213 + $0x259] sm:$0xff]
    %v581 = vld [vmem:[%s213 + $0x261] sm:$0xff]
    %v582 = vld [vmem:[%s213 + $0x271] sm:$0xff]
    %v583 = vld [vmem:[%s213 + $0x279] sm:$0xff]
    %v584 = vld [vmem:[%s213 + $0x289] sm:$0xff]
    %v585 = vld [vmem:[%s213 + $0x291] sm:$0xff]
    %v586 = vld [vmem:[%s213 + $0x2a1] sm:$0xff]
    %v587 = vld [vmem:[%s213 + $0x2a9] sm:$0xff]
    %v588 = vld [vmem:[%s213 + $0x2b9] sm:$0xff]
    %v589 = vld [vmem:[%s213 + $0x2c1] sm:$0xff]
    %v590 = vld [vmem:[%s213 + $0x2d1] sm:$0xff]
    %v591 = vld [vmem:[%s213 + $0x2d9] sm:$0xff]
    %v592 = vld [vmem:[%s213 + $0x2e9] sm:$0xff]
    %v593 = vld [vmem:[%s213 + $0x2f1] sm:$0xff]
    %v594 = vld [vmem:[%s213 + $0x301] sm:$0xff]
    %v595 = vld [vmem:[%s213 + $0x309] sm:$0xff]
    %v596 = vld [vmem:[%s213 + $0x319] sm:$0xff]
    %v597 = vld [vmem:[%s213 + $0x321] sm:$0xff]
    %v598 = vld [vmem:[%s213 + $0x2] sm:$0xff]
    %v599 = vld [vmem:[%s213 + $0xa] sm:$0xff]
    %v600 = vld [vmem:[%s213 + $0x1a] sm:$0xff]
    %v601 = vld [vmem:[%s213 + $0x22] sm:$0xff]
    %v602 = vld [vmem:[%s213 + $0x32] sm:$0xff]
    %v603 = vld [vmem:[%s213 + $0x3a] sm:$0xff]
    %v604 = vld [vmem:[%s213 + $0x4a] sm:$0xff]
    %v605 = vld [vmem:[%s213 + $0x52] sm:$0xff]
    %v606 = vld [vmem:[%s213 + $0x62] sm:$0xff]
    %v607 = vld [vmem:[%s213 + $0x6a] sm:$0xff]
    %v608 = vld [vmem:[%s213 + $0x7a] sm:$0xff]
    %v609 = vld [vmem:[%s213 + $0x82] sm:$0xff]
    %v610 = vld [vmem:[%s213 + $0x92] sm:$0xff]
    %v611 = vld [vmem:[%s213 + $0x9a] sm:$0xff]
    %v612 = vld [vmem:[%s213 + $0xaa] sm:$0xff]
    %v613 = vld [vmem:[%s213 + $0xb2] sm:$0xff]
    %v614 = vld [vmem:[%s213 + $0xc2] sm:$0xff]
    %v615 = vld [vmem:[%s213 + $0xca] sm:$0xff]
    %v616 = vld [vmem:[%s213 + $0xda] sm:$0xff]
    %v617 = vld [vmem:[%s213 + $0xe2] sm:$0xff]
    %v618 = vld [vmem:[%s213 + $0xf2] sm:$0xff]
    %v619 = vld [vmem:[%s213 + $0xfa] sm:$0xff]
    %v620 = vld [vmem:[%s213 + $0x10a] sm:$0xff]
    %v621 = vld [vmem:[%s213 + $0x112] sm:$0xff]
    %v622 = vld [vmem:[%s213 + $0x122] sm:$0xff]
    %v623 = vld [vmem:[%s213 + $0x12a] sm:$0xff]
    %v624 = vld [vmem:[%s213 + $0x13a] sm:$0xff]
    %v625 = vld [vmem:[%s213 + $0x142] sm:$0xff]
    %v626 = vld [vmem:[%s213 + $0x152] sm:$0xff]
    %v627 = vld [vmem:[%s213 + $0x15a] sm:$0xff]
    %v628 = vld [vmem:[%s213 + $0x16a] sm:$0xff]
    %v629 = vld [vmem:[%s213 + $0x172] sm:$0xff]
    %v630 = vld [vmem:[%s213 + $0x1b2] sm:$0xff]
    %v631 = vld [vmem:[%s213 + $0x1ba] sm:$0xff]
    %v632 = vld [vmem:[%s213 + $0x1ca] sm:$0xff]
    %v633 = vld [vmem:[%s213 + $0x1d2] sm:$0xff]
    %v634 = vld [vmem:[%s213 + $0x1e2] sm:$0xff]
    %v635 = vld [vmem:[%s213 + $0x1ea] sm:$0xff]
    %v636 = vld [vmem:[%s213 + $0x1fa] sm:$0xff]
    %v637 = vld [vmem:[%s213 + $0x202] sm:$0xff]
    %v638 = vld [vmem:[%s213 + $0x212] sm:$0xff]
    %v639 = vld [vmem:[%s213 + $0x21a] sm:$0xff]
    %v640 = vld [vmem:[%s213 + $0x22a] sm:$0xff]
    %v641 = vld [vmem:[%s213 + $0x232] sm:$0xff]
    %v642 = vld [vmem:[%s213 + $0x242] sm:$0xff]
    %v643 = vld [vmem:[%s213 + $0x24a] sm:$0xff]
    %v644 = vld [vmem:[%s213 + $0x25a] sm:$0xff]
    %v645 = vld [vmem:[%s213 + $0x262] sm:$0xff]
    %v646 = vld [vmem:[%s213 + $0x272] sm:$0xff]
    %v647 = vld [vmem:[%s213 + $0x27a] sm:$0xff]
    %v648 = vld [vmem:[%s213 + $0x28a] sm:$0xff]
    %v649 = vld [vmem:[%s213 + $0x292] sm:$0xff]
    %v650 = vld [vmem:[%s213 + $0x2a2] sm:$0xff]
    %v651 = vld [vmem:[%s213 + $0x2aa] sm:$0xff]
    %v652 = vld [vmem:[%s213 + $0x2ba] sm:$0xff]
    %v653 = vld [vmem:[%s213 + $0x2c2] sm:$0xff]
    %v654 = vld [vmem:[%s213 + $0x2d2] sm:$0xff]
    %v655 = vld [vmem:[%s213 + $0x2da] sm:$0xff]
    %v656 = vld [vmem:[%s213 + $0x2ea] sm:$0xff]
    %v657 = vld [vmem:[%s213 + $0x2f2] sm:$0xff]
    %v658 = vld [vmem:[%s213 + $0x302] sm:$0xff]
    %v659 = vld [vmem:[%s213 + $0x30a] sm:$0xff]
    %v660 = vld [vmem:[%s213 + $0x31a] sm:$0xff]
    %v661 = vld [vmem:[%s213 + $0x322] sm:$0xff]
    %s662 = scalar_lea.vmem [#allocation2], 48
    %v663 = vld [vmem:[%s662] sm:$0xff]
    %v664 = vld [vmem:[%s662 + $0x8] sm:$0xff]
    %v665 = vld [vmem:[%s662 + $0x18] sm:$0xff]
    %v666 = vld [vmem:[%s662 + $0x20] sm:$0xff]
    %v667 = vld [vmem:[%s662 + $0x30] sm:$0xff]
    %v668 = vld [vmem:[%s662 + $0x38] sm:$0xff]
    %v669 = vld [vmem:[%s662 + $0x48] sm:$0xff]
    %v670 = vld [vmem:[%s662 + $0x50] sm:$0xff]
    %v671 = vld [vmem:[%s662 + $0x60] sm:$0xff]
    %v672 = vld [vmem:[%s662 + $0x68] sm:$0xff]
    %v673 = vld [vmem:[%s662 + $0x78] sm:$0xff]
    %v674 = vld [vmem:[%s662 + $0x80] sm:$0xff]
    %v675 = vld [vmem:[%s662 + $0x90] sm:$0xff]
    %v676 = vld [vmem:[%s662 + $0x98] sm:$0xff]
    %v677 = vld [vmem:[%s662 + $0xa8] sm:$0xff]
    %v678 = vld [vmem:[%s662 + $0xb0] sm:$0xff]
    %v679 = vld [vmem:[%s662 + $0xc0] sm:$0xff]
    %v680 = vld [vmem:[%s662 + $0xc8] sm:$0xff]
    %v681 = vld [vmem:[%s662 + $0xd8] sm:$0xff]
    %v682 = vld [vmem:[%s662 + $0xe0] sm:$0xff]
    %v683 = vld [vmem:[%s662 + $0xf0] sm:$0xff]
    %v684 = vld [vmem:[%s662 + $0xf8] sm:$0xff]
    %v685 = vld [vmem:[%s662 + $0x108] sm:$0xff]
    %v686 = vld [vmem:[%s662 + $0x110] sm:$0xff]
    %v687 = vld [vmem:[%s662 + $0x120] sm:$0xff]
    %v688 = vld [vmem:[%s662 + $0x128] sm:$0xff]
    %v689 = vld [vmem:[%s662 + $0x138] sm:$0xff]
    %v690 = vld [vmem:[%s662 + $0x140] sm:$0xff]
    %v691 = vld [vmem:[%s662 + $0x150] sm:$0xff]
    %v692 = vld [vmem:[%s662 + $0x158] sm:$0xff]
    %v693 = vld [vmem:[%s662 + $0x168] sm:$0xff]
    %v694 = vld [vmem:[%s662 + $0x170] sm:$0xff]
    %v695 = vld [vmem:[%s662 + $0x1b0] sm:$0xff]
    %v696 = vld [vmem:[%s662 + $0x1b8] sm:$0xff]
    %v697 = vld [vmem:[%s662 + $0x1c8] sm:$0xff]
    %v698 = vld [vmem:[%s662 + $0x1d0] sm:$0xff]
    %v699 = vld [vmem:[%s662 + $0x1e0] sm:$0xff]
    %v700 = vld [vmem:[%s662 + $0x1e8] sm:$0xff]
    %v701 = vld [vmem:[%s662 + $0x1f8] sm:$0xff]
    %v702 = vld [vmem:[%s662 + $0x200] sm:$0xff]
    %v703 = vld [vmem:[%s662 + $0x210] sm:$0xff]
    %v704 = vld [vmem:[%s662 + $0x218] sm:$0xff]
    %v705 = vld [vmem:[%s662 + $0x228] sm:$0xff]
    %v706 = vld [vmem:[%s662 + $0x230] sm:$0xff]
    %v707 = vld [vmem:[%s662 + $0x240] sm:$0xff]
    %v708 = vld [vmem:[%s662 + $0x248] sm:$0xff]
    %v709 = vld [vmem:[%s662 + $0x258] sm:$0xff]
    %v710 = vld [vmem:[%s662 + $0x260] sm:$0xff]
    %v711 = vld [vmem:[%s662 + $0x270] sm:$0xff]
    %v712 = vld [vmem:[%s662 + $0x278] sm:$0xff]
    %v713 = vld [vmem:[%s662 + $0x288] sm:$0xff]
    %v714 = vld [vmem:[%s662 + $0x290] sm:$0xff]
    %v715 = vld [vmem:[%s662 + $0x2a0] sm:$0xff]
    %v716 = vld [vmem:[%s662 + $0x2a8] sm:$0xff]
    %v717 = vld [vmem:[%s662 + $0x2b8] sm:$0xff]
    %v718 = vld [vmem:[%s662 + $0x2c0] sm:$0xff]
    %v719 = vld [vmem:[%s662 + $0x2d0] sm:$0xff]
    %v720 = vld [vmem:[%s662 + $0x2d8] sm:$0xff]
    %v721 = vld [vmem:[%s662 + $0x2e8] sm:$0xff]
    %v722 = vld [vmem:[%s662 + $0x2f0] sm:$0xff]
    %v723 = vld [vmem:[%s662 + $0x300] sm:$0xff]
    %v724 = vld [vmem:[%s662 + $0x308] sm:$0xff]
    %v725 = vld [vmem:[%s662 + $0x318] sm:$0xff]
    %v726 = vld [vmem:[%s662 + $0x320] sm:$0xff]
    %v727 = vld [vmem:[%s662 + $0x1] sm:$0xff]
    %v728 = vld [vmem:[%s662 + $0x9] sm:$0xff]
    %v729 = vld [vmem:[%s662 + $0x19] sm:$0xff]
    %v730 = vld [vmem:[%s662 + $0x21] sm:$0xff]
    %v731 = vld [vmem:[%s662 + $0x31] sm:$0xff]
    %v732 = vld [vmem:[%s662 + $0x39] sm:$0xff]
    %v733 = vld [vmem:[%s662 + $0x49] sm:$0xff]
    %v734 = vld [vmem:[%s662 + $0x51] sm:$0xff]
    %v735 = vld [vmem:[%s662 + $0x61] sm:$0xff]
    %v736 = vld [vmem:[%s662 + $0x69] sm:$0xff]
    %v737 = vld [vmem:[%s662 + $0x79] sm:$0xff]
    %v738 = vld [vmem:[%s662 + $0x81] sm:$0xff]
    %v739 = vld [vmem:[%s662 + $0x91] sm:$0xff]
    %v740 = vld [vmem:[%s662 + $0x99] sm:$0xff]
    %v741 = vld [vmem:[%s662 + $0xa9] sm:$0xff]
    %v742 = vld [vmem:[%s662 + $0xb1] sm:$0xff]
    %v743 = vld [vmem:[%s662 + $0xc1] sm:$0xff]
    %v744 = vld [vmem:[%s662 + $0xc9] sm:$0xff]
    %v745 = vld [vmem:[%s662 + $0xd9] sm:$0xff]
    %v746 = vld [vmem:[%s662 + $0xe1] sm:$0xff]
    %v747 = vld [vmem:[%s662 + $0xf1] sm:$0xff]
    %v748 = vld [vmem:[%s662 + $0xf9] sm:$0xff]
    %v749 = vld [vmem:[%s662 + $0x109] sm:$0xff]
    %v750 = vld [vmem:[%s662 + $0x111] sm:$0xff]
    %v751 = vld [vmem:[%s662 + $0x121] sm:$0xff]
    %v752 = vld [vmem:[%s662 + $0x129] sm:$0xff]
    %v753 = vld [vmem:[%s662 + $0x139] sm:$0xff]
    %v754 = vld [vmem:[%s662 + $0x141] sm:$0xff]
    %v755 = vld [vmem:[%s662 + $0x151] sm:$0xff]
    %v756 = vld [vmem:[%s662 + $0x159] sm:$0xff]
    %v757 = vld [vmem:[%s662 + $0x169] sm:$0xff]
    %v758 = vld [vmem:[%s662 + $0x171] sm:$0xff]
    %v759 = vld [vmem:[%s662 + $0x1b1] sm:$0xff]
    %v760 = vld [vmem:[%s662 + $0x1b9] sm:$0xff]
    %v761 = vld [vmem:[%s662 + $0x1c9] sm:$0xff]
    %v762 = vld [vmem:[%s662 + $0x1d1] sm:$0xff]
    %v763 = vld [vmem:[%s662 + $0x1e1] sm:$0xff]
    %v764 = vld [vmem:[%s662 + $0x1e9] sm:$0xff]
    %v765 = vld [vmem:[%s662 + $0x1f9] sm:$0xff]
    %v766 = vld [vmem:[%s662 + $0x201] sm:$0xff]
    %v767 = vld [vmem:[%s662 + $0x211] sm:$0xff]
    %v768 = vld [vmem:[%s662 + $0x219] sm:$0xff]
    %v769 = vld [vmem:[%s662 + $0x229] sm:$0xff]
    %v770 = vld [vmem:[%s662 + $0x231] sm:$0xff]
    %v771 = vld [vmem:[%s662 + $0x241] sm:$0xff]
    %v772 = vld [vmem:[%s662 + $0x249] sm:$0xff]
    %v773 = vld [vmem:[%s662 + $0x259] sm:$0xff]
    %v774 = vld [vmem:[%s662 + $0x261] sm:$0xff]
    %v775 = vld [vmem:[%s662 + $0x271] sm:$0xff]
    %v776 = vld [vmem:[%s662 + $0x279] sm:$0xff]
    %v777 = vld [vmem:[%s662 + $0x289] sm:$0xff]
    %v778 = vld [vmem:[%s662 + $0x291] sm:$0xff]
    %v779 = vld [vmem:[%s662 + $0x2a1] sm:$0xff]
    %v780 = vld [vmem:[%s662 + $0x2a9] sm:$0xff]
    %v781 = vld [vmem:[%s662 + $0x2b9] sm:$0xff]
    %v782 = vld [vmem:[%s662 + $0x2c1] sm:$0xff]
    %v783 = vld [vmem:[%s662 + $0x2d1] sm:$0xff]
    %v784 = vld [vmem:[%s662 + $0x2d9] sm:$0xff]
    %v785 = vld [vmem:[%s662 + $0x2e9] sm:$0xff]
    %v786 = vld [vmem:[%s662 + $0x2f1] sm:$0xff]
    %v787 = vld [vmem:[%s662 + $0x301] sm:$0xff]
    %v788 = vld [vmem:[%s662 + $0x309] sm:$0xff]
    %v789 = vld [vmem:[%s662 + $0x319] sm:$0xff]
    %v790 = vld [vmem:[%s662 + $0x321] sm:$0xff]
    %v791 = vld [vmem:[%s662 + $0x2] sm:$0xff]
    %v792 = vld [vmem:[%s662 + $0xa] sm:$0xff]
    %v793 = vld [vmem:[%s662 + $0x1a] sm:$0xff]
    %v794 = vld [vmem:[%s662 + $0x22] sm:$0xff]
    %v795 = vld [vmem:[%s662 + $0x32] sm:$0xff]
    %v796 = vld [vmem:[%s662 + $0x3a] sm:$0xff]
    %v797 = vld [vmem:[%s662 + $0x4a] sm:$0xff]
    %v798 = vld [vmem:[%s662 + $0x52] sm:$0xff]
    %v799 = vld [vmem:[%s662 + $0x62] sm:$0xff]
    %v800 = vld [vmem:[%s662 + $0x6a] sm:$0xff]
    %v801 = vld [vmem:[%s662 + $0x7a] sm:$0xff]
    %v802 = vld [vmem:[%s662 + $0x82] sm:$0xff]
    %v803 = vld [vmem:[%s662 + $0x92] sm:$0xff]
    %v804 = vld [vmem:[%s662 + $0x9a] sm:$0xff]
    %v805 = vld [vmem:[%s662 + $0xaa] sm:$0xff]
    %v806 = vld [vmem:[%s662 + $0xb2] sm:$0xff]
    %v807 = vld [vmem:[%s662 + $0xc2] sm:$0xff]
    %v808 = vld [vmem:[%s662 + $0xca] sm:$0xff]
    %v809 = vld [vmem:[%s662 + $0xda] sm:$0xff]
    %v810 = vld [vmem:[%s662 + $0xe2] sm:$0xff]
    %v811 = vld [vmem:[%s662 + $0xf2] sm:$0xff]
    %v812 = vld [vmem:[%s662 + $0xfa] sm:$0xff]
    %v813 = vld [vmem:[%s662 + $0x10a] sm:$0xff]
    %v814 = vld [vmem:[%s662 + $0x112] sm:$0xff]
    %v815 = vld [vmem:[%s662 + $0x122] sm:$0xff]
    %v816 = vld [vmem:[%s662 + $0x12a] sm:$0xff]
    %v817 = vld [vmem:[%s662 + $0x13a] sm:$0xff]
    %v818 = vld [vmem:[%s662 + $0x142] sm:$0xff]
    %v819 = vld [vmem:[%s662 + $0x152] sm:$0xff]
    %v820 = vld [vmem:[%s662 + $0x15a] sm:$0xff]
    %v821 = vld [vmem:[%s662 + $0x16a] sm:$0xff]
    %v822 = vld [vmem:[%s662 + $0x172] sm:$0xff]
    %v823 = vld [vmem:[%s662 + $0x1b2] sm:$0xff]
    %v824 = vld [vmem:[%s662 + $0x1ba] sm:$0xff]
    %v825 = vld [vmem:[%s662 + $0x1ca] sm:$0xff]
    %v826 = vld [vmem:[%s662 + $0x1d2] sm:$0xff]
    %v827 = vld [vmem:[%s662 + $0x1e2] sm:$0xff]
    %v828 = vld [vmem:[%s662 + $0x1ea] sm:$0xff]
    %v829 = vld [vmem:[%s662 + $0x1fa] sm:$0xff]
    %v830 = vld [vmem:[%s662 + $0x202] sm:$0xff]
    %v831 = vld [vmem:[%s662 + $0x212] sm:$0xff]
    %v832 = vld [vmem:[%s662 + $0x21a] sm:$0xff]
    %v833 = vld [vmem:[%s662 + $0x22a] sm:$0xff]
    %v834 = vld [vmem:[%s662 + $0x232] sm:$0xff]
    %v835 = vld [vmem:[%s662 + $0x242] sm:$0xff]
    %v836 = vld [vmem:[%s662 + $0x24a] sm:$0xff]
    %v837 = vld [vmem:[%s662 + $0x25a] sm:$0xff]
    %v838 = vld [vmem:[%s662 + $0x262] sm:$0xff]
    %v839 = vld [vmem:[%s662 + $0x272] sm:$0xff]
    %v840 = vld [vmem:[%s662 + $0x27a] sm:$0xff]
    %v841 = vld [vmem:[%s662 + $0x28a] sm:$0xff]
    %v842 = vld [vmem:[%s662 + $0x292] sm:$0xff]
    %v843 = vld [vmem:[%s662 + $0x2a2] sm:$0xff]
    %v844 = vld [vmem:[%s662 + $0x2aa] sm:$0xff]
    %v845 = vld [vmem:[%s662 + $0x2ba] sm:$0xff]
    %v846 = vld [vmem:[%s662 + $0x2c2] sm:$0xff]
    %v847 = vld [vmem:[%s662 + $0x2d2] sm:$0xff]
    %v848 = vld [vmem:[%s662 + $0x2da] sm:$0xff]
    %v849 = vld [vmem:[%s662 + $0x2ea] sm:$0xff]
    %v850 = vld [vmem:[%s662 + $0x2f2] sm:$0xff]
    %v851 = vld [vmem:[%s662 + $0x302] sm:$0xff]
    %v852 = vld [vmem:[%s662 + $0x30a] sm:$0xff]
    %v853 = vld [vmem:[%s662 + $0x31a] sm:$0xff]
    %v854 = vld [vmem:[%s662 + $0x322] sm:$0xff]
    %919 = vrot.lane.b32.xlu0 %v342, 3
    %v920 = vpop.permute.xlu0 %919
    %921 = vrot.lane.b32.xlu0 %v343, 3
    %v922 = vpop.permute.xlu0 %921
    %923 = vrot.lane.b32.xlu0 %v344, 3
    %v924 = vpop.permute.xlu0 %923
    %925 = vrot.lane.b32.xlu0 %v345, 3
    %v926 = vpop.permute.xlu0 %925
    %927 = vrot.lane.b32.xlu0 %v346, 3
    %v928 = vpop.permute.xlu0 %927
    %929 = vrot.lane.b32.xlu0 %v347, 3
    %v930 = vpop.permute.xlu0 %929
    %931 = vrot.lane.b32.xlu0 %v348, 3
    %v932 = vpop.permute.xlu0 %931
    %933 = vrot.lane.b32.xlu0 %v349, 3
    %v934 = vpop.permute.xlu0 %933
    %935 = vrot.lane.b32.xlu0 %v350, 3
    %v936 = vpop.permute.xlu0 %935
    %937 = vrot.lane.b32.xlu0 %v351, 3
    %v938 = vpop.permute.xlu0 %937
    %939 = vrot.lane.b32.xlu0 %v352, 3
    %v940 = vpop.permute.xlu0 %939
    %941 = vrot.lane.b32.xlu0 %v353, 3
    %v942 = vpop.permute.xlu0 %941
    %943 = vrot.lane.b32.xlu0 %v354, 3
    %v944 = vpop.permute.xlu0 %943
    %945 = vrot.lane.b32.xlu0 %v355, 3
    %v946 = vpop.permute.xlu0 %945
    %947 = vrot.lane.b32.xlu0 %v356, 3
    %v948 = vpop.permute.xlu0 %947
    %949 = vrot.lane.b32.xlu0 %v357, 3
    %v950 = vpop.permute.xlu0 %949
    %951 = vrot.lane.b32.xlu0 %v358, 3
    %v952 = vpop.permute.xlu0 %951
    %953 = vrot.lane.b32.xlu0 %v359, 3
    %v954 = vpop.permute.xlu0 %953
    %955 = vrot.lane.b32.xlu0 %v360, 3
    %v956 = vpop.permute.xlu0 %955
    %957 = vrot.lane.b32.xlu0 %v361, 3
    %v958 = vpop.permute.xlu0 %957
    %959 = vrot.lane.b32.xlu0 %v362, 3
    %v960 = vpop.permute.xlu0 %959
    %961 = vrot.lane.b32.xlu0 %v363, 3
    %v962 = vpop.permute.xlu0 %961
    %963 = vrot.lane.b32.xlu0 %v364, 3
    %v964 = vpop.permute.xlu0 %963
    %965 = vrot.lane.b32.xlu0 %v365, 3
    %v966 = vpop.permute.xlu0 %965
    %967 = vrot.lane.b32.xlu0 %v366, 3
    %v968 = vpop.permute.xlu0 %967
    %969 = vrot.lane.b32.xlu0 %v367, 3
    %v970 = vpop.permute.xlu0 %969
    %971 = vrot.lane.b32.xlu0 %v368, 3
    %v972 = vpop.permute.xlu0 %971
    %973 = vrot.lane.b32.xlu0 %v369, 3
    %v974 = vpop.permute.xlu0 %973
    %975 = vrot.lane.b32.xlu0 %v370, 3
    %v976 = vpop.permute.xlu0 %975
    %977 = vrot.lane.b32.xlu0 %v371, 3
    %v978 = vpop.permute.xlu0 %977
    %979 = vrot.lane.b32.xlu0 %v372, 3
    %v980 = vpop.permute.xlu0 %979
    %981 = vrot.lane.b32.xlu0 %v373, 3
    %v982 = vpop.permute.xlu0 %981
    %983 = vrot.lane.b32.xlu0 %v374, 3
    %v984 = vpop.permute.xlu0 %983
    %985 = vrot.lane.b32.xlu0 %v375, 3
    %v986 = vpop.permute.xlu0 %985
    %987 = vrot.lane.b32.xlu0 %v376, 3
    %v988 = vpop.permute.xlu0 %987
    %989 = vrot.lane.b32.xlu0 %v377, 3
    %v990 = vpop.permute.xlu0 %989
    %991 = vrot.lane.b32.xlu0 %v378, 3
    %v992 = vpop.permute.xlu0 %991
    %993 = vrot.lane.b32.xlu0 %v379, 3
    %v994 = vpop.permute.xlu0 %993
    %995 = vrot.lane.b32.xlu0 %v380, 3
    %v996 = vpop.permute.xlu0 %995
    %997 = vrot.lane.b32.xlu0 %v381, 3
    %v998 = vpop.permute.xlu0 %997
    %999 = vrot.lane.b32.xlu0 %v382, 3
    %v1000 = vpop.permute.xlu0 %999
    %1001 = vrot.lane.b32.xlu0 %v383, 3
    %v1002 = vpop.permute.xlu0 %1001
    %1003 = vrot.lane.b32.xlu0 %v384, 3
    %v1004 = vpop.permute.xlu0 %1003
    %1005 = vrot.lane.b32.xlu0 %v385, 3
    %v1006 = vpop.permute.xlu0 %1005
    %1007 = vrot.lane.b32.xlu0 %v386, 3
    %v1008 = vpop.permute.xlu0 %1007
    %1009 = vrot.lane.b32.xlu0 %v387, 3
    %v1010 = vpop.permute.xlu0 %1009
    %1011 = vrot.lane.b32.xlu0 %v388, 3
    %v1012 = vpop.permute.xlu0 %1011
    %1013 = vrot.lane.b32.xlu0 %v389, 3
    %v1014 = vpop.permute.xlu0 %1013
    %1015 = vrot.lane.b32.xlu0 %v390, 3
    %v1016 = vpop.permute.xlu0 %1015
    %1017 = vrot.lane.b32.xlu0 %v391, 3
    %v1018 = vpop.permute.xlu0 %1017
    %1019 = vrot.lane.b32.xlu0 %v392, 3
    %v1020 = vpop.permute.xlu0 %1019
    %1021 = vrot.lane.b32.xlu0 %v393, 3
    %v1022 = vpop.permute.xlu0 %1021
    %1023 = vrot.lane.b32.xlu0 %v394, 3
    %v1024 = vpop.permute.xlu0 %1023
    %1025 = vrot.lane.b32.xlu0 %v395, 3
    %v1026 = vpop.permute.xlu0 %1025
    %1027 = vrot.lane.b32.xlu0 %v396, 3
    %v1028 = vpop.permute.xlu0 %1027
    %1029 = vrot.lane.b32.xlu0 %v397, 3
    %v1030 = vpop.permute.xlu0 %1029
    %1031 = vrot.lane.b32.xlu0 %v398, 3
    %v1032 = vpop.permute.xlu0 %1031
    %1033 = vrot.lane.b32.xlu0 %v399, 3
    %v1034 = vpop.permute.xlu0 %1033
    %1035 = vrot.lane.b32.xlu0 %v400, 3
    %v1036 = vpop.permute.xlu0 %1035
    %1037 = vrot.lane.b32.xlu0 %v401, 3
    %v1038 = vpop.permute.xlu0 %1037
    %1039 = vrot.lane.b32.xlu0 %v402, 3
    %v1040 = vpop.permute.xlu0 %1039
    %1041 = vrot.lane.b32.xlu0 %v403, 3
    %v1042 = vpop.permute.xlu0 %1041
    %1043 = vrot.lane.b32.xlu0 %v404, 3
    %v1044 = vpop.permute.xlu0 %1043
    %1045 = vrot.lane.b32.xlu0 %v405, 3
    %v1046 = vpop.permute.xlu0 %1045
    %1175 = vrot.lane.b32.xlu0 %v406, 6
    %v1176 = vpop.permute.xlu0 %1175
    %1177 = vrot.lane.b32.xlu0 %v407, 6
    %v1178 = vpop.permute.xlu0 %1177
    %1179 = vrot.lane.b32.xlu0 %v408, 6
    %v1180 = vpop.permute.xlu0 %1179
    %1181 = vrot.lane.b32.xlu0 %v409, 6
    %v1182 = vpop.permute.xlu0 %1181
    %1183 = vrot.lane.b32.xlu0 %v410, 6
    %v1184 = vpop.permute.xlu0 %1183
    %1185 = vrot.lane.b32.xlu0 %v411, 6
    %v1186 = vpop.permute.xlu0 %1185
    %1187 = vrot.lane.b32.xlu0 %v412, 6
    %v1188 = vpop.permute.xlu0 %1187
    %1189 = vrot.lane.b32.xlu0 %v413, 6
    %v1190 = vpop.permute.xlu0 %1189
    %1191 = vrot.lane.b32.xlu0 %v414, 6
    %v1192 = vpop.permute.xlu0 %1191
    %1193 = vrot.lane.b32.xlu0 %v415, 6
    %v1194 = vpop.permute.xlu0 %1193
    %1195 = vrot.lane.b32.xlu0 %v416, 6
    %v1196 = vpop.permute.xlu0 %1195
    %1197 = vrot.lane.b32.xlu0 %v417, 6
    %v1198 = vpop.permute.xlu0 %1197
    %1199 = vrot.lane.b32.xlu0 %v418, 6
    %v1200 = vpop.permute.xlu0 %1199
    %1201 = vrot.lane.b32.xlu0 %v419, 6
    %v1202 = vpop.permute.xlu0 %1201
    %1203 = vrot.lane.b32.xlu0 %v420, 6
    %v1204 = vpop.permute.xlu0 %1203
    %1205 = vrot.lane.b32.xlu0 %v421, 6
    %v1206 = vpop.permute.xlu0 %1205
    %1207 = vrot.lane.b32.xlu0 %v422, 6
    %v1208 = vpop.permute.xlu0 %1207
    %1209 = vrot.lane.b32.xlu0 %v423, 6
    %v1210 = vpop.permute.xlu0 %1209
    %1211 = vrot.lane.b32.xlu0 %v424, 6
    %v1212 = vpop.permute.xlu0 %1211
    %1213 = vrot.lane.b32.xlu0 %v425, 6
    %v1214 = vpop.permute.xlu0 %1213
    %1215 = vrot.lane.b32.xlu0 %v426, 6
    %v1216 = vpop.permute.xlu0 %1215
    %1217 = vrot.lane.b32.xlu0 %v427, 6
    %v1218 = vpop.permute.xlu0 %1217
    %1219 = vrot.lane.b32.xlu0 %v428, 6
    %v1220 = vpop.permute.xlu0 %1219
    %1221 = vrot.lane.b32.xlu0 %v429, 6
    %v1222 = vpop.permute.xlu0 %1221
    %1223 = vrot.lane.b32.xlu0 %v430, 6
    %v1224 = vpop.permute.xlu0 %1223
    %1225 = vrot.lane.b32.xlu0 %v431, 6
    %v1226 = vpop.permute.xlu0 %1225
    %1227 = vrot.lane.b32.xlu0 %v432, 6
    %v1228 = vpop.permute.xlu0 %1227
    %1229 = vrot.lane.b32.xlu0 %v433, 6
    %v1230 = vpop.permute.xlu0 %1229
    %1231 = vrot.lane.b32.xlu0 %v434, 6
    %v1232 = vpop.permute.xlu0 %1231
    %1233 = vrot.lane.b32.xlu0 %v435, 6
    %v1234 = vpop.permute.xlu0 %1233
    %1235 = vrot.lane.b32.xlu0 %v436, 6
    %v1236 = vpop.permute.xlu0 %1235
    %1237 = vrot.lane.b32.xlu0 %v437, 6
    %v1238 = vpop.permute.xlu0 %1237
    %1239 = vrot.lane.b32.xlu0 %v438, 6
    %v1240 = vpop.permute.xlu0 %1239
    %1241 = vrot.lane.b32.xlu0 %v439, 6
    %v1242 = vpop.permute.xlu0 %1241
    %1243 = vrot.lane.b32.xlu0 %v440, 6
    %v1244 = vpop.permute.xlu0 %1243
    %1245 = vrot.lane.b32.xlu0 %v441, 6
    %v1246 = vpop.permute.xlu0 %1245
    %1247 = vrot.lane.b32.xlu0 %v442, 6
    %v1248 = vpop.permute.xlu0 %1247
    %1249 = vrot.lane.b32.xlu0 %v443, 6
    %v1250 = vpop.permute.xlu0 %1249
    %1251 = vrot.lane.b32.xlu0 %v444, 6
    %v1252 = vpop.permute.xlu0 %1251
    %1253 = vrot.lane.b32.xlu0 %v445, 6
    %v1254 = vpop.permute.xlu0 %1253
    %1255 = vrot.lane.b32.xlu0 %v446, 6
    %v1256 = vpop.permute.xlu0 %1255
    %1257 = vrot.lane.b32.xlu0 %v447, 6
    %v1258 = vpop.permute.xlu0 %1257
    %1259 = vrot.lane.b32.xlu0 %v448, 6
    %v1260 = vpop.permute.xlu0 %1259
    %1261 = vrot.lane.b32.xlu0 %v449, 6
    %v1262 = vpop.permute.xlu0 %1261
    %1263 = vrot.lane.b32.xlu0 %v450, 6
    %v1264 = vpop.permute.xlu0 %1263
    %1265 = vrot.lane.b32.xlu0 %v451, 6
    %v1266 = vpop.permute.xlu0 %1265
    %1267 = vrot.lane.b32.xlu0 %v452, 6
    %v1268 = vpop.permute.xlu0 %1267
    %1269 = vrot.lane.b32.xlu0 %v453, 6
    %v1270 = vpop.permute.xlu0 %1269
    %1271 = vrot.lane.b32.xlu0 %v454, 6
    %v1272 = vpop.permute.xlu0 %1271
    %1273 = vrot.lane.b32.xlu0 %v455, 6
    %v1274 = vpop.permute.xlu0 %1273
    %1275 = vrot.lane.b32.xlu0 %v456, 6
    %v1276 = vpop.permute.xlu0 %1275
    %1277 = vrot.lane.b32.xlu0 %v457, 6
    %v1278 = vpop.permute.xlu0 %1277
    %1279 = vrot.lane.b32.xlu0 %v458, 6
    %v1280 = vpop.permute.xlu0 %1279
    %1281 = vrot.lane.b32.xlu0 %v459, 6
    %v1282 = vpop.permute.xlu0 %1281
    %1283 = vrot.lane.b32.xlu0 %v460, 6
    %v1284 = vpop.permute.xlu0 %1283
    %1285 = vrot.lane.b32.xlu0 %v461, 6
    %v1286 = vpop.permute.xlu0 %1285
    %1287 = vrot.lane.b32.xlu0 %v462, 6
    %v1288 = vpop.permute.xlu0 %1287
    %1289 = vrot.lane.b32.xlu0 %v463, 6
    %v1290 = vpop.permute.xlu0 %1289
    %1291 = vrot.lane.b32.xlu0 %v464, 6
    %v1292 = vpop.permute.xlu0 %1291
    %1293 = vrot.lane.b32.xlu0 %v465, 6
    %v1294 = vpop.permute.xlu0 %1293
    %1295 = vrot.lane.b32.xlu0 %v466, 6
    %v1296 = vpop.permute.xlu0 %1295
    %1297 = vrot.lane.b32.xlu0 %v467, 6
    %v1298 = vpop.permute.xlu0 %1297
    %1299 = vrot.lane.b32.xlu0 %v468, 6
    %v1300 = vpop.permute.xlu0 %1299
    %1301 = vrot.lane.b32.xlu0 %v469, 6
    %v1302 = vpop.permute.xlu0 %1301
    %1431 = vrot.lane.b32.xlu0 %v470, 9
    %v1432 = vpop.permute.xlu0 %1431
    %1433 = vrot.lane.b32.xlu0 %v471, 9
    %v1434 = vpop.permute.xlu0 %1433
    %1435 = vrot.lane.b32.xlu0 %v472, 9
    %v1436 = vpop.permute.xlu0 %1435
    %1437 = vrot.lane.b32.xlu0 %v473, 9
    %v1438 = vpop.permute.xlu0 %1437
    %1439 = vrot.lane.b32.xlu0 %v474, 9
    %v1440 = vpop.permute.xlu0 %1439
    %1441 = vrot.lane.b32.xlu0 %v475, 9
    %v1442 = vpop.permute.xlu0 %1441
    %1443 = vrot.lane.b32.xlu0 %v476, 9
    %v1444 = vpop.permute.xlu0 %1443
    %1445 = vrot.lane.b32.xlu0 %v477, 9
    %v1446 = vpop.permute.xlu0 %1445
    %1447 = vrot.lane.b32.xlu0 %v478, 9
    %v1448 = vpop.permute.xlu0 %1447
    %1449 = vrot.lane.b32.xlu0 %v479, 9
    %v1450 = vpop.permute.xlu0 %1449
    %1451 = vrot.lane.b32.xlu0 %v480, 9
    %v1452 = vpop.permute.xlu0 %1451
    %1453 = vrot.lane.b32.xlu0 %v481, 9
    %v1454 = vpop.permute.xlu0 %1453
    %1455 = vrot.lane.b32.xlu0 %v482, 9
    %v1456 = vpop.permute.xlu0 %1455
    %1457 = vrot.lane.b32.xlu0 %v483, 9
    %v1458 = vpop.permute.xlu0 %1457
    %1459 = vrot.lane.b32.xlu0 %v484, 9
    %v1460 = vpop.permute.xlu0 %1459
    %1461 = vrot.lane.b32.xlu0 %v485, 9
    %v1462 = vpop.permute.xlu0 %1461
    %1463 = vrot.lane.b32.xlu0 %v486, 9
    %v1464 = vpop.permute.xlu0 %1463
    %1465 = vrot.lane.b32.xlu0 %v487, 9
    %v1466 = vpop.permute.xlu0 %1465
    %1467 = vrot.lane.b32.xlu0 %v488, 9
    %v1468 = vpop.permute.xlu0 %1467
    %1469 = vrot.lane.b32.xlu0 %v489, 9
    %v1470 = vpop.permute.xlu0 %1469
    %1471 = vrot.lane.b32.xlu0 %v490, 9
    %v1472 = vpop.permute.xlu0 %1471
    %1473 = vrot.lane.b32.xlu0 %v491, 9
    %v1474 = vpop.permute.xlu0 %1473
    %1475 = vrot.lane.b32.xlu0 %v492, 9
    %v1476 = vpop.permute.xlu0 %1475
    %1477 = vrot.lane.b32.xlu0 %v493, 9
    %v1478 = vpop.permute.xlu0 %1477
    %1479 = vrot.lane.b32.xlu0 %v494, 9
    %v1480 = vpop.permute.xlu0 %1479
    %1481 = vrot.lane.b32.xlu0 %v495, 9
    %v1482 = vpop.permute.xlu0 %1481
    %1483 = vrot.lane.b32.xlu0 %v496, 9
    %v1484 = vpop.permute.xlu0 %1483
    %1485 = vrot.lane.b32.xlu0 %v497, 9
    %v1486 = vpop.permute.xlu0 %1485
    %1487 = vrot.lane.b32.xlu0 %v498, 9
    %v1488 = vpop.permute.xlu0 %1487
    %1489 = vrot.lane.b32.xlu0 %v499, 9
    %v1490 = vpop.permute.xlu0 %1489
    %1491 = vrot.lane.b32.xlu0 %v500, 9
    %v1492 = vpop.permute.xlu0 %1491
    %1493 = vrot.lane.b32.xlu0 %v501, 9
    %v1494 = vpop.permute.xlu0 %1493
    %1495 = vrot.lane.b32.xlu0 %v502, 9
    %v1496 = vpop.permute.xlu0 %1495
    %1497 = vrot.lane.b32.xlu0 %v503, 9
    %v1498 = vpop.permute.xlu0 %1497
    %1499 = vrot.lane.b32.xlu0 %v504, 9
    %v1500 = vpop.permute.xlu0 %1499
    %1501 = vrot.lane.b32.xlu0 %v505, 9
    %v1502 = vpop.permute.xlu0 %1501
    %1503 = vrot.lane.b32.xlu0 %v506, 9
    %v1504 = vpop.permute.xlu0 %1503
    %1505 = vrot.lane.b32.xlu0 %v507, 9
    %v1506 = vpop.permute.xlu0 %1505
    %1507 = vrot.lane.b32.xlu0 %v508, 9
    %v1508 = vpop.permute.xlu0 %1507
    %1509 = vrot.lane.b32.xlu0 %v509, 9
    %v1510 = vpop.permute.xlu0 %1509
    %1511 = vrot.lane.b32.xlu0 %v510, 9
    %v1512 = vpop.permute.xlu0 %1511
    %1513 = vrot.lane.b32.xlu0 %v511, 9
    %v1514 = vpop.permute.xlu0 %1513
    %1515 = vrot.lane.b32.xlu0 %v512, 9
    %v1516 = vpop.permute.xlu0 %1515
    %1517 = vrot.lane.b32.xlu0 %v513, 9
    %v1518 = vpop.permute.xlu0 %1517
    %1519 = vrot.lane.b32.xlu0 %v514, 9
    %v1520 = vpop.permute.xlu0 %1519
    %1521 = vrot.lane.b32.xlu0 %v515, 9
    %v1522 = vpop.permute.xlu0 %1521
    %1523 = vrot.lane.b32.xlu0 %v516, 9
    %v1524 = vpop.permute.xlu0 %1523
    %1525 = vrot.lane.b32.xlu0 %v517, 9
    %v1526 = vpop.permute.xlu0 %1525
    %1527 = vrot.lane.b32.xlu0 %v518, 9
    %v1528 = vpop.permute.xlu0 %1527
    %1529 = vrot.lane.b32.xlu0 %v519, 9
    %v1530 = vpop.permute.xlu0 %1529
    %1531 = vrot.lane.b32.xlu0 %v520, 9
    %v1532 = vpop.permute.xlu0 %1531
    %1533 = vrot.lane.b32.xlu0 %v521, 9
    %v1534 = vpop.permute.xlu0 %1533
    %1535 = vrot.lane.b32.xlu0 %v522, 9
    %v1536 = vpop.permute.xlu0 %1535
    %1537 = vrot.lane.b32.xlu0 %v523, 9
    %v1538 = vpop.permute.xlu0 %1537
    %1539 = vrot.lane.b32.xlu0 %v524, 9
    %v1540 = vpop.permute.xlu0 %1539
    %1541 = vrot.lane.b32.xlu0 %v525, 9
    %v1542 = vpop.permute.xlu0 %1541
    %1543 = vrot.lane.b32.xlu0 %v526, 9
    %v1544 = vpop.permute.xlu0 %1543
    %1545 = vrot.lane.b32.xlu0 %v527, 9
    %v1546 = vpop.permute.xlu0 %1545
    %1547 = vrot.lane.b32.xlu0 %v528, 9
    %v1548 = vpop.permute.xlu0 %1547
    %1549 = vrot.lane.b32.xlu0 %v529, 9
    %v1550 = vpop.permute.xlu0 %1549
    %1551 = vrot.lane.b32.xlu0 %v530, 9
    %v1552 = vpop.permute.xlu0 %1551
    %1553 = vrot.lane.b32.xlu0 %v531, 9
    %v1554 = vpop.permute.xlu0 %1553
    %1555 = vrot.lane.b32.xlu0 %v532, 9
    %v1556 = vpop.permute.xlu0 %1555
    %1557 = vrot.lane.b32.xlu0 %v533, 9
    %v1558 = vpop.permute.xlu0 %1557
    %1687 = vrot.lane.b32.xlu0 %v534, 12
    %v1688 = vpop.permute.xlu0 %1687
    %1689 = vrot.lane.b32.xlu0 %v535, 12
    %v1690 = vpop.permute.xlu0 %1689
    %1691 = vrot.lane.b32.xlu0 %v536, 12
    %v1692 = vpop.permute.xlu0 %1691
    %1693 = vrot.lane.b32.xlu0 %v537, 12
    %v1694 = vpop.permute.xlu0 %1693
    %1695 = vrot.lane.b32.xlu0 %v538, 12
    %v1696 = vpop.permute.xlu0 %1695
    %1697 = vrot.lane.b32.xlu0 %v539, 12
    %v1698 = vpop.permute.xlu0 %1697
    %1699 = vrot.lane.b32.xlu0 %v540, 12
    %v1700 = vpop.permute.xlu0 %1699
    %1701 = vrot.lane.b32.xlu0 %v541, 12
    %v1702 = vpop.permute.xlu0 %1701
    %1703 = vrot.lane.b32.xlu0 %v542, 12
    %v1704 = vpop.permute.xlu0 %1703
    %1705 = vrot.lane.b32.xlu0 %v543, 12
    %v1706 = vpop.permute.xlu0 %1705
    %1707 = vrot.lane.b32.xlu0 %v544, 12
    %v1708 = vpop.permute.xlu0 %1707
    %1709 = vrot.lane.b32.xlu0 %v545, 12
    %v1710 = vpop.permute.xlu0 %1709
    %1711 = vrot.lane.b32.xlu0 %v546, 12
    %v1712 = vpop.permute.xlu0 %1711
    %1713 = vrot.lane.b32.xlu0 %v547, 12
    %v1714 = vpop.permute.xlu0 %1713
    %1715 = vrot.lane.b32.xlu0 %v548, 12
    %v1716 = vpop.permute.xlu0 %1715
    %1717 = vrot.lane.b32.xlu0 %v549, 12
    %v1718 = vpop.permute.xlu0 %1717
    %1719 = vrot.lane.b32.xlu0 %v550, 12
    %v1720 = vpop.permute.xlu0 %1719
    %1721 = vrot.lane.b32.xlu0 %v551, 12
    %v1722 = vpop.permute.xlu0 %1721
    %1723 = vrot.lane.b32.xlu0 %v552, 12
    %v1724 = vpop.permute.xlu0 %1723
    %1725 = vrot.lane.b32.xlu0 %v553, 12
    %v1726 = vpop.permute.xlu0 %1725
    %1727 = vrot.lane.b32.xlu0 %v554, 12
    %v1728 = vpop.permute.xlu0 %1727
    %1729 = vrot.lane.b32.xlu0 %v555, 12
    %v1730 = vpop.permute.xlu0 %1729
    %1731 = vrot.lane.b32.xlu0 %v556, 12
    %v1732 = vpop.permute.xlu0 %1731
    %1733 = vrot.lane.b32.xlu0 %v557, 12
    %v1734 = vpop.permute.xlu0 %1733
    %1735 = vrot.lane.b32.xlu0 %v558, 12
    %v1736 = vpop.permute.xlu0 %1735
    %1737 = vrot.lane.b32.xlu0 %v559, 12
    %v1738 = vpop.permute.xlu0 %1737
    %1739 = vrot.lane.b32.xlu0 %v560, 12
    %v1740 = vpop.permute.xlu0 %1739
    %1741 = vrot.lane.b32.xlu0 %v561, 12
    %v1742 = vpop.permute.xlu0 %1741
    %1743 = vrot.lane.b32.xlu0 %v562, 12
    %v1744 = vpop.permute.xlu0 %1743
    %1745 = vrot.lane.b32.xlu0 %v563, 12
    %v1746 = vpop.permute.xlu0 %1745
    %1747 = vrot.lane.b32.xlu0 %v564, 12
    %v1748 = vpop.permute.xlu0 %1747
    %1749 = vrot.lane.b32.xlu0 %v565, 12
    %v1750 = vpop.permute.xlu0 %1749
    %1751 = vrot.lane.b32.xlu0 %v566, 12
    %v1752 = vpop.permute.xlu0 %1751
    %1753 = vrot.lane.b32.xlu0 %v567, 12
    %v1754 = vpop.permute.xlu0 %1753
    %1755 = vrot.lane.b32.xlu0 %v568, 12
    %v1756 = vpop.permute.xlu0 %1755
    %1757 = vrot.lane.b32.xlu0 %v569, 12
    %v1758 = vpop.permute.xlu0 %1757
    %1759 = vrot.lane.b32.xlu0 %v570, 12
    %v1760 = vpop.permute.xlu0 %1759
    %1761 = vrot.lane.b32.xlu0 %v571, 12
    %v1762 = vpop.permute.xlu0 %1761
    %1763 = vrot.lane.b32.xlu0 %v572, 12
    %v1764 = vpop.permute.xlu0 %1763
    %1765 = vrot.lane.b32.xlu0 %v573, 12
    %v1766 = vpop.permute.xlu0 %1765
    %1767 = vrot.lane.b32.xlu0 %v574, 12
    %v1768 = vpop.permute.xlu0 %1767
    %1769 = vrot.lane.b32.xlu0 %v575, 12
    %v1770 = vpop.permute.xlu0 %1769
    %1771 = vrot.lane.b32.xlu0 %v576, 12
    %v1772 = vpop.permute.xlu0 %1771
    %1773 = vrot.lane.b32.xlu0 %v577, 12
    %v1774 = vpop.permute.xlu0 %1773
    %1775 = vrot.lane.b32.xlu0 %v578, 12
    %v1776 = vpop.permute.xlu0 %1775
    %1777 = vrot.lane.b32.xlu0 %v579, 12
    %v1778 = vpop.permute.xlu0 %1777
    %1779 = vrot.lane.b32.xlu0 %v580, 12
    %v1780 = vpop.permute.xlu0 %1779
    %1781 = vrot.lane.b32.xlu0 %v581, 12
    %v1782 = vpop.permute.xlu0 %1781
    %1783 = vrot.lane.b32.xlu0 %v582, 12
    %v1784 = vpop.permute.xlu0 %1783
    %1785 = vrot.lane.b32.xlu0 %v583, 12
    %v1786 = vpop.permute.xlu0 %1785
    %1787 = vrot.lane.b32.xlu0 %v584, 12
    %v1788 = vpop.permute.xlu0 %1787
    %1789 = vrot.lane.b32.xlu0 %v585, 12
    %v1790 = vpop.permute.xlu0 %1789
    %1791 = vrot.lane.b32.xlu0 %v586, 12
    %v1792 = vpop.permute.xlu0 %1791
    %1793 = vrot.lane.b32.xlu0 %v587, 12
    %v1794 = vpop.permute.xlu0 %1793
    %1795 = vrot.lane.b32.xlu0 %v588, 12
    %v1796 = vpop.permute.xlu0 %1795
    %1797 = vrot.lane.b32.xlu0 %v589, 12
    %v1798 = vpop.permute.xlu0 %1797
    %1799 = vrot.lane.b32.xlu0 %v590, 12
    %v1800 = vpop.permute.xlu0 %1799
    %1801 = vrot.lane.b32.xlu0 %v591, 12
    %v1802 = vpop.permute.xlu0 %1801
    %1803 = vrot.lane.b32.xlu0 %v592, 12
    %v1804 = vpop.permute.xlu0 %1803
    %1805 = vrot.lane.b32.xlu0 %v593, 12
    %v1806 = vpop.permute.xlu0 %1805
    %1807 = vrot.lane.b32.xlu0 %v594, 12
    %v1808 = vpop.permute.xlu0 %1807
    %1809 = vrot.lane.b32.xlu0 %v595, 12
    %v1810 = vpop.permute.xlu0 %1809
    %1811 = vrot.lane.b32.xlu0 %v596, 12
    %v1812 = vpop.permute.xlu0 %1811
    %1813 = vrot.lane.b32.xlu0 %v597, 12
    %v1814 = vpop.permute.xlu0 %1813
    %1943 = vrot.lane.b32.xlu0 %v598, 15
    %v1944 = vpop.permute.xlu0 %1943
    %1945 = vrot.lane.b32.xlu0 %v599, 15
    %v1946 = vpop.permute.xlu0 %1945
    %1947 = vrot.lane.b32.xlu0 %v600, 15
    %v1948 = vpop.permute.xlu0 %1947
    %1949 = vrot.lane.b32.xlu0 %v601, 15
    %v1950 = vpop.permute.xlu0 %1949
    %1951 = vrot.lane.b32.xlu0 %v602, 15
    %v1952 = vpop.permute.xlu0 %1951
    %1953 = vrot.lane.b32.xlu0 %v603, 15
    %v1954 = vpop.permute.xlu0 %1953
    %1955 = vrot.lane.b32.xlu0 %v604, 15
    %v1956 = vpop.permute.xlu0 %1955
    %1957 = vrot.lane.b32.xlu0 %v605, 15
    %v1958 = vpop.permute.xlu0 %1957
    %1959 = vrot.lane.b32.xlu0 %v606, 15
    %v1960 = vpop.permute.xlu0 %1959
    %1961 = vrot.lane.b32.xlu0 %v607, 15
    %v1962 = vpop.permute.xlu0 %1961
    %1963 = vrot.lane.b32.xlu0 %v608, 15
    %v1964 = vpop.permute.xlu0 %1963
    %1965 = vrot.lane.b32.xlu0 %v609, 15
    %v1966 = vpop.permute.xlu0 %1965
    %1967 = vrot.lane.b32.xlu0 %v610, 15
    %v1968 = vpop.permute.xlu0 %1967
    %1969 = vrot.lane.b32.xlu0 %v611, 15
    %v1970 = vpop.permute.xlu0 %1969
    %1971 = vrot.lane.b32.xlu0 %v612, 15
    %v1972 = vpop.permute.xlu0 %1971
    %1973 = vrot.lane.b32.xlu0 %v613, 15
    %v1974 = vpop.permute.xlu0 %1973
    %1975 = vrot.lane.b32.xlu0 %v614, 15
    %v1976 = vpop.permute.xlu0 %1975
    %1977 = vrot.lane.b32.xlu0 %v615, 15
    %v1978 = vpop.permute.xlu0 %1977
    %1979 = vrot.lane.b32.xlu0 %v616, 15
    %v1980 = vpop.permute.xlu0 %1979
    %1981 = vrot.lane.b32.xlu0 %v617, 15
    %v1982 = vpop.permute.xlu0 %1981
    %1983 = vrot.lane.b32.xlu0 %v618, 15
    %v1984 = vpop.permute.xlu0 %1983
    %1985 = vrot.lane.b32.xlu0 %v619, 15
    %v1986 = vpop.permute.xlu0 %1985
    %1987 = vrot.lane.b32.xlu0 %v620, 15
    %v1988 = vpop.permute.xlu0 %1987
    %1989 = vrot.lane.b32.xlu0 %v621, 15
    %v1990 = vpop.permute.xlu0 %1989
    %1991 = vrot.lane.b32.xlu0 %v622, 15
    %v1992 = vpop.permute.xlu0 %1991
    %1993 = vrot.lane.b32.xlu0 %v623, 15
    %v1994 = vpop.permute.xlu0 %1993
    %1995 = vrot.lane.b32.xlu0 %v624, 15
    %v1996 = vpop.permute.xlu0 %1995
    %1997 = vrot.lane.b32.xlu0 %v625, 15
    %v1998 = vpop.permute.xlu0 %1997
    %1999 = vrot.lane.b32.xlu0 %v626, 15
    %v2000 = vpop.permute.xlu0 %1999
    %2001 = vrot.lane.b32.xlu0 %v627, 15
    %v2002 = vpop.permute.xlu0 %2001
    %2003 = vrot.lane.b32.xlu0 %v628, 15
    %v2004 = vpop.permute.xlu0 %2003
    %2005 = vrot.lane.b32.xlu0 %v629, 15
    %v2006 = vpop.permute.xlu0 %2005
    %2007 = vrot.lane.b32.xlu0 %v630, 15
    %v2008 = vpop.permute.xlu0 %2007
    %2009 = vrot.lane.b32.xlu0 %v631, 15
    %v2010 = vpop.permute.xlu0 %2009
    %2011 = vrot.lane.b32.xlu0 %v632, 15
    %v2012 = vpop.permute.xlu0 %2011
    %2013 = vrot.lane.b32.xlu0 %v633, 15
    %v2014 = vpop.permute.xlu0 %2013
    %2015 = vrot.lane.b32.xlu0 %v634, 15
    %v2016 = vpop.permute.xlu0 %2015
    %2017 = vrot.lane.b32.xlu0 %v635, 15
    %v2018 = vpop.permute.xlu0 %2017
    %2019 = vrot.lane.b32.xlu0 %v636, 15
    %v2020 = vpop.permute.xlu0 %2019
    %2021 = vrot.lane.b32.xlu0 %v637, 15
    %v2022 = vpop.permute.xlu0 %2021
    %2023 = vrot.lane.b32.xlu0 %v638, 15
    %v2024 = vpop.permute.xlu0 %2023
    %2025 = vrot.lane.b32.xlu0 %v639, 15
    %v2026 = vpop.permute.xlu0 %2025
    %2027 = vrot.lane.b32.xlu0 %v640, 15
    %v2028 = vpop.permute.xlu0 %2027
    %2029 = vrot.lane.b32.xlu0 %v641, 15
    %v2030 = vpop.permute.xlu0 %2029
    %2031 = vrot.lane.b32.xlu0 %v642, 15
    %v2032 = vpop.permute.xlu0 %2031
    %2033 = vrot.lane.b32.xlu0 %v643, 15
    %v2034 = vpop.permute.xlu0 %2033
    %2035 = vrot.lane.b32.xlu0 %v644, 15
    %v2036 = vpop.permute.xlu0 %2035
    %2037 = vrot.lane.b32.xlu0 %v645, 15
    %v2038 = vpop.permute.xlu0 %2037
    %2039 = vrot.lane.b32.xlu0 %v646, 15
    %v2040 = vpop.permute.xlu0 %2039
    %2041 = vrot.lane.b32.xlu0 %v647, 15
    %v2042 = vpop.permute.xlu0 %2041
    %2043 = vrot.lane.b32.xlu0 %v648, 15
    %v2044 = vpop.permute.xlu0 %2043
    %2045 = vrot.lane.b32.xlu0 %v649, 15
    %v2046 = vpop.permute.xlu0 %2045
    %2047 = vrot.lane.b32.xlu0 %v650, 15
    %v2048 = vpop.permute.xlu0 %2047
    %2049 = vrot.lane.b32.xlu0 %v651, 15
    %v2050 = vpop.permute.xlu0 %2049
    %2051 = vrot.lane.b32.xlu0 %v652, 15
    %v2052 = vpop.permute.xlu0 %2051
    %2053 = vrot.lane.b32.xlu0 %v653, 15
    %v2054 = vpop.permute.xlu0 %2053
    %2055 = vrot.lane.b32.xlu0 %v654, 15
    %v2056 = vpop.permute.xlu0 %2055
    %2057 = vrot.lane.b32.xlu0 %v655, 15
    %v2058 = vpop.permute.xlu0 %2057
    %2059 = vrot.lane.b32.xlu0 %v656, 15
    %v2060 = vpop.permute.xlu0 %2059
    %2061 = vrot.lane.b32.xlu0 %v657, 15
    %v2062 = vpop.permute.xlu0 %2061
    %2063 = vrot.lane.b32.xlu0 %v658, 15
    %v2064 = vpop.permute.xlu0 %2063
    %2065 = vrot.lane.b32.xlu0 %v659, 15
    %v2066 = vpop.permute.xlu0 %2065
    %2067 = vrot.lane.b32.xlu0 %v660, 15
    %v2068 = vpop.permute.xlu0 %2067
    %2069 = vrot.lane.b32.xlu0 %v661, 15
    %v2070 = vpop.permute.xlu0 %2069
    %2199 = vrot.lane.b32.xlu0 %v663, 18
    %v2200 = vpop.permute.xlu0 %2199
    %2201 = vrot.lane.b32.xlu0 %v664, 18
    %v2202 = vpop.permute.xlu0 %2201
    %2203 = vrot.lane.b32.xlu0 %v665, 18
    %v2204 = vpop.permute.xlu0 %2203
    %2205 = vrot.lane.b32.xlu0 %v666, 18
    %v2206 = vpop.permute.xlu0 %2205
    %2207 = vrot.lane.b32.xlu0 %v667, 18
    %v2208 = vpop.permute.xlu0 %2207
    %2209 = vrot.lane.b32.xlu0 %v668, 18
    %v2210 = vpop.permute.xlu0 %2209
    %2211 = vrot.lane.b32.xlu0 %v669, 18
    %v2212 = vpop.permute.xlu0 %2211
    %2213 = vrot.lane.b32.xlu0 %v670, 18
    %v2214 = vpop.permute.xlu0 %2213
    %2215 = vrot.lane.b32.xlu0 %v671, 18
    %v2216 = vpop.permute.xlu0 %2215
    %2217 = vrot.lane.b32.xlu0 %v672, 18
    %v2218 = vpop.permute.xlu0 %2217
    %2219 = vrot.lane.b32.xlu0 %v673, 18
    %v2220 = vpop.permute.xlu0 %2219
    %2221 = vrot.lane.b32.xlu0 %v674, 18
    %v2222 = vpop.permute.xlu0 %2221
    %2223 = vrot.lane.b32.xlu0 %v675, 18
    %v2224 = vpop.permute.xlu0 %2223
    %2225 = vrot.lane.b32.xlu0 %v676, 18
    %v2226 = vpop.permute.xlu0 %2225
    %2227 = vrot.lane.b32.xlu0 %v677, 18
    %v2228 = vpop.permute.xlu0 %2227
    %2229 = vrot.lane.b32.xlu0 %v678, 18
    %v2230 = vpop.permute.xlu0 %2229
    %2231 = vrot.lane.b32.xlu0 %v679, 18
    %v2232 = vpop.permute.xlu0 %2231
    %2233 = vrot.lane.b32.xlu0 %v680, 18
    %v2234 = vpop.permute.xlu0 %2233
    %2235 = vrot.lane.b32.xlu0 %v681, 18
    %v2236 = vpop.permute.xlu0 %2235
    %2237 = vrot.lane.b32.xlu0 %v682, 18
    %v2238 = vpop.permute.xlu0 %2237
    %2239 = vrot.lane.b32.xlu0 %v683, 18
    %v2240 = vpop.permute.xlu0 %2239
    %2241 = vrot.lane.b32.xlu0 %v684, 18
    %v2242 = vpop.permute.xlu0 %2241
    %2243 = vrot.lane.b32.xlu0 %v685, 18
    %v2244 = vpop.permute.xlu0 %2243
    %2245 = vrot.lane.b32.xlu0 %v686, 18
    %v2246 = vpop.permute.xlu0 %2245
    %2247 = vrot.lane.b32.xlu0 %v687, 18
    %v2248 = vpop.permute.xlu0 %2247
    %2249 = vrot.lane.b32.xlu0 %v688, 18
    %v2250 = vpop.permute.xlu0 %2249
    %2251 = vrot.lane.b32.xlu0 %v689, 18
    %v2252 = vpop.permute.xlu0 %2251
    %2253 = vrot.lane.b32.xlu0 %v690, 18
    %v2254 = vpop.permute.xlu0 %2253
    %2255 = vrot.lane.b32.xlu0 %v691, 18
    %v2256 = vpop.permute.xlu0 %2255
    %2257 = vrot.lane.b32.xlu0 %v692, 18
    %v2258 = vpop.permute.xlu0 %2257
    %2259 = vrot.lane.b32.xlu0 %v693, 18
    %v2260 = vpop.permute.xlu0 %2259
    %2261 = vrot.lane.b32.xlu0 %v694, 18
    %v2262 = vpop.permute.xlu0 %2261
    %2263 = vrot.lane.b32.xlu0 %v695, 18
    %v2264 = vpop.permute.xlu0 %2263
    %2265 = vrot.lane.b32.xlu0 %v696, 18
    %v2266 = vpop.permute.xlu0 %2265
    %2267 = vrot.lane.b32.xlu0 %v697, 18
    %v2268 = vpop.permute.xlu0 %2267
    %2269 = vrot.lane.b32.xlu0 %v698, 18
    %v2270 = vpop.permute.xlu0 %2269
    %2271 = vrot.lane.b32.xlu0 %v699, 18
    %v2272 = vpop.permute.xlu0 %2271
    %2273 = vrot.lane.b32.xlu0 %v700, 18
    %v2274 = vpop.permute.xlu0 %2273
    %2275 = vrot.lane.b32.xlu0 %v701, 18
    %v2276 = vpop.permute.xlu0 %2275
    %2277 = vrot.lane.b32.xlu0 %v702, 18
    %v2278 = vpop.permute.xlu0 %2277
    %2279 = vrot.lane.b32.xlu0 %v703, 18
    %v2280 = vpop.permute.xlu0 %2279
    %2281 = vrot.lane.b32.xlu0 %v704, 18
    %v2282 = vpop.permute.xlu0 %2281
    %2283 = vrot.lane.b32.xlu0 %v705, 18
    %v2284 = vpop.permute.xlu0 %2283
    %2285 = vrot.lane.b32.xlu0 %v706, 18
    %v2286 = vpop.permute.xlu0 %2285
    %2287 = vrot.lane.b32.xlu0 %v707, 18
    %v2288 = vpop.permute.xlu0 %2287
    %2289 = vrot.lane.b32.xlu0 %v708, 18
    %v2290 = vpop.permute.xlu0 %2289
    %2291 = vrot.lane.b32.xlu0 %v709, 18
    %v2292 = vpop.permute.xlu0 %2291
    %2293 = vrot.lane.b32.xlu0 %v710, 18
    %v2294 = vpop.permute.xlu0 %2293
    %2295 = vrot.lane.b32.xlu0 %v711, 18
    %v2296 = vpop.permute.xlu0 %2295
    %2297 = vrot.lane.b32.xlu0 %v712, 18
    %v2298 = vpop.permute.xlu0 %2297
    %2299 = vrot.lane.b32.xlu0 %v713, 18
    %v2300 = vpop.permute.xlu0 %2299
    %2301 = vrot.lane.b32.xlu0 %v714, 18
    %v2302 = vpop.permute.xlu0 %2301
    %2303 = vrot.lane.b32.xlu0 %v715, 18
    %v2304 = vpop.permute.xlu0 %2303
    %2305 = vrot.lane.b32.xlu0 %v716, 18
    %v2306 = vpop.permute.xlu0 %2305
    %2307 = vrot.lane.b32.xlu0 %v717, 18
    %v2308 = vpop.permute.xlu0 %2307
    %2309 = vrot.lane.b32.xlu0 %v718, 18
    %v2310 = vpop.permute.xlu0 %2309
    %2311 = vrot.lane.b32.xlu0 %v719, 18
    %v2312 = vpop.permute.xlu0 %2311
    %2313 = vrot.lane.b32.xlu0 %v720, 18
    %v2314 = vpop.permute.xlu0 %2313
    %2315 = vrot.lane.b32.xlu0 %v721, 18
    %v2316 = vpop.permute.xlu0 %2315
    %2317 = vrot.lane.b32.xlu0 %v722, 18
    %v2318 = vpop.permute.xlu0 %2317
    %2319 = vrot.lane.b32.xlu0 %v723, 18
    %v2320 = vpop.permute.xlu0 %2319
    %2321 = vrot.lane.b32.xlu0 %v724, 18
    %v2322 = vpop.permute.xlu0 %2321
    %2323 = vrot.lane.b32.xlu0 %v725, 18
    %v2324 = vpop.permute.xlu0 %2323
    %2325 = vrot.lane.b32.xlu0 %v726, 18
    %v2326 = vpop.permute.xlu0 %2325
    %2455 = vrot.lane.b32.xlu0 %v727, 21
    %v2456 = vpop.permute.xlu0 %2455
    %2457 = vrot.lane.b32.xlu0 %v728, 21
    %v2458 = vpop.permute.xlu0 %2457
    %2459 = vrot.lane.b32.xlu0 %v729, 21
    %v2460 = vpop.permute.xlu0 %2459
    %2461 = vrot.lane.b32.xlu0 %v730, 21
    %v2462 = vpop.permute.xlu0 %2461
    %2463 = vrot.lane.b32.xlu0 %v731, 21
    %v2464 = vpop.permute.xlu0 %2463
    %2465 = vrot.lane.b32.xlu0 %v732, 21
    %v2466 = vpop.permute.xlu0 %2465
    %2467 = vrot.lane.b32.xlu0 %v733, 21
    %v2468 = vpop.permute.xlu0 %2467
    %2469 = vrot.lane.b32.xlu0 %v734, 21
    %v2470 = vpop.permute.xlu0 %2469
    %2471 = vrot.lane.b32.xlu0 %v735, 21
    %v2472 = vpop.permute.xlu0 %2471
    %2473 = vrot.lane.b32.xlu0 %v736, 21
    %v2474 = vpop.permute.xlu0 %2473
    %2475 = vrot.lane.b32.xlu0 %v737, 21
    %v2476 = vpop.permute.xlu0 %2475
    %2477 = vrot.lane.b32.xlu0 %v738, 21
    %v2478 = vpop.permute.xlu0 %2477
    %2479 = vrot.lane.b32.xlu0 %v739, 21
    %v2480 = vpop.permute.xlu0 %2479
    %2481 = vrot.lane.b32.xlu0 %v740, 21
    %v2482 = vpop.permute.xlu0 %2481
    %2483 = vrot.lane.b32.xlu0 %v741, 21
    %v2484 = vpop.permute.xlu0 %2483
    %2485 = vrot.lane.b32.xlu0 %v742, 21
    %v2486 = vpop.permute.xlu0 %2485
    %2487 = vrot.lane.b32.xlu0 %v743, 21
    %v2488 = vpop.permute.xlu0 %2487
    %2489 = vrot.lane.b32.xlu0 %v744, 21
    %v2490 = vpop.permute.xlu0 %2489
    %2491 = vrot.lane.b32.xlu0 %v745, 21
    %v2492 = vpop.permute.xlu0 %2491
    %2493 = vrot.lane.b32.xlu0 %v746, 21
    %v2494 = vpop.permute.xlu0 %2493
    %2495 = vrot.lane.b32.xlu0 %v747, 21
    %v2496 = vpop.permute.xlu0 %2495
    %2497 = vrot.lane.b32.xlu0 %v748, 21
    %v2498 = vpop.permute.xlu0 %2497
    %2499 = vrot.lane.b32.xlu0 %v749, 21
    %v2500 = vpop.permute.xlu0 %2499
    %2501 = vrot.lane.b32.xlu0 %v750, 21
    %v2502 = vpop.permute.xlu0 %2501
    %2503 = vrot.lane.b32.xlu0 %v751, 21
    %v2504 = vpop.permute.xlu0 %2503
    %2505 = vrot.lane.b32.xlu0 %v752, 21
    %v2506 = vpop.permute.xlu0 %2505
    %2507 = vrot.lane.b32.xlu0 %v753, 21
    %v2508 = vpop.permute.xlu0 %2507
    %2509 = vrot.lane.b32.xlu0 %v754, 21
    %v2510 = vpop.permute.xlu0 %2509
    %2511 = vrot.lane.b32.xlu0 %v755, 21
    %v2512 = vpop.permute.xlu0 %2511
    %2513 = vrot.lane.b32.xlu0 %v756, 21
    %v2514 = vpop.permute.xlu0 %2513
    %2515 = vrot.lane.b32.xlu0 %v757, 21
    %v2516 = vpop.permute.xlu0 %2515
    %2517 = vrot.lane.b32.xlu0 %v758, 21
    %v2518 = vpop.permute.xlu0 %2517
    %2519 = vrot.lane.b32.xlu0 %v759, 21
    %v2520 = vpop.permute.xlu0 %2519
    %2521 = vrot.lane.b32.xlu0 %v760, 21
    %v2522 = vpop.permute.xlu0 %2521
    %2523 = vrot.lane.b32.xlu0 %v761, 21
    %v2524 = vpop.permute.xlu0 %2523
    %2525 = vrot.lane.b32.xlu0 %v762, 21
    %v2526 = vpop.permute.xlu0 %2525
    %2527 = vrot.lane.b32.xlu0 %v763, 21
    %v2528 = vpop.permute.xlu0 %2527
    %2529 = vrot.lane.b32.xlu0 %v764, 21
    %v2530 = vpop.permute.xlu0 %2529
    %2531 = vrot.lane.b32.xlu0 %v765, 21
    %v2532 = vpop.permute.xlu0 %2531
    %2533 = vrot.lane.b32.xlu0 %v766, 21
    %v2534 = vpop.permute.xlu0 %2533
    %2535 = vrot.lane.b32.xlu0 %v767, 21
    %v2536 = vpop.permute.xlu0 %2535
    %2537 = vrot.lane.b32.xlu0 %v768, 21
    %v2538 = vpop.permute.xlu0 %2537
    %2539 = vrot.lane.b32.xlu0 %v769, 21
    %v2540 = vpop.permute.xlu0 %2539
    %2541 = vrot.lane.b32.xlu0 %v770, 21
    %v2542 = vpop.permute.xlu0 %2541
    %2543 = vrot.lane.b32.xlu0 %v771, 21
    %v2544 = vpop.permute.xlu0 %2543
    %2545 = vrot.lane.b32.xlu0 %v772, 21
    %v2546 = vpop.permute.xlu0 %2545
    %2547 = vrot.lane.b32.xlu0 %v773, 21
    %v2548 = vpop.permute.xlu0 %2547
    %2549 = vrot.lane.b32.xlu0 %v774, 21
    %v2550 = vpop.permute.xlu0 %2549
    %2551 = vrot.lane.b32.xlu0 %v775, 21
    %v2552 = vpop.permute.xlu0 %2551
    %2553 = vrot.lane.b32.xlu0 %v776, 21
    %v2554 = vpop.permute.xlu0 %2553
    %2555 = vrot.lane.b32.xlu0 %v777, 21
    %v2556 = vpop.permute.xlu0 %2555
    %2557 = vrot.lane.b32.xlu0 %v778, 21
    %v2558 = vpop.permute.xlu0 %2557
    %2559 = vrot.lane.b32.xlu0 %v779, 21
    %v2560 = vpop.permute.xlu0 %2559
    %2561 = vrot.lane.b32.xlu0 %v780, 21
    %v2562 = vpop.permute.xlu0 %2561
    %2563 = vrot.lane.b32.xlu0 %v781, 21
    %v2564 = vpop.permute.xlu0 %2563
    %2565 = vrot.lane.b32.xlu0 %v782, 21
    %v2566 = vpop.permute.xlu0 %2565
    %2567 = vrot.lane.b32.xlu0 %v783, 21
    %v2568 = vpop.permute.xlu0 %2567
    %2569 = vrot.lane.b32.xlu0 %v784, 21
    %v2570 = vpop.permute.xlu0 %2569
    %2571 = vrot.lane.b32.xlu0 %v785, 21
    %v2572 = vpop.permute.xlu0 %2571
    %2573 = vrot.lane.b32.xlu0 %v786, 21
    %v2574 = vpop.permute.xlu0 %2573
    %2575 = vrot.lane.b32.xlu0 %v787, 21
    %v2576 = vpop.permute.xlu0 %2575
    %2577 = vrot.lane.b32.xlu0 %v788, 21
    %v2578 = vpop.permute.xlu0 %2577
    %2579 = vrot.lane.b32.xlu0 %v789, 21
    %v2580 = vpop.permute.xlu0 %2579
    %2581 = vrot.lane.b32.xlu0 %v790, 21
    %v2582 = vpop.permute.xlu0 %2581
    %2711 = vrot.lane.b32.xlu0 %v791, 24
    %v2712 = vpop.permute.xlu0 %2711
    %2713 = vrot.lane.b32.xlu0 %v792, 24
    %v2714 = vpop.permute.xlu0 %2713
    %2715 = vrot.lane.b32.xlu0 %v793, 24
    %v2716 = vpop.permute.xlu0 %2715
    %2717 = vrot.lane.b32.xlu0 %v794, 24
    %v2718 = vpop.permute.xlu0 %2717
    %2719 = vrot.lane.b32.xlu0 %v795, 24
    %v2720 = vpop.permute.xlu0 %2719
    %2721 = vrot.lane.b32.xlu0 %v796, 24
    %v2722 = vpop.permute.xlu0 %2721
    %2723 = vrot.lane.b32.xlu0 %v797, 24
    %v2724 = vpop.permute.xlu0 %2723
    %2725 = vrot.lane.b32.xlu0 %v798, 24
    %v2726 = vpop.permute.xlu0 %2725
    %2727 = vrot.lane.b32.xlu0 %v799, 24
    %v2728 = vpop.permute.xlu0 %2727
    %2729 = vrot.lane.b32.xlu0 %v800, 24
    %v2730 = vpop.permute.xlu0 %2729
    %2731 = vrot.lane.b32.xlu0 %v801, 24
    %v2732 = vpop.permute.xlu0 %2731
    %2733 = vrot.lane.b32.xlu0 %v802, 24
    %v2734 = vpop.permute.xlu0 %2733
    %2735 = vrot.lane.b32.xlu0 %v803, 24
    %v2736 = vpop.permute.xlu0 %2735
    %2737 = vrot.lane.b32.xlu0 %v804, 24
    %v2738 = vpop.permute.xlu0 %2737
    %2739 = vrot.lane.b32.xlu0 %v805, 24
    %v2740 = vpop.permute.xlu0 %2739
    %2741 = vrot.lane.b32.xlu0 %v806, 24
    %v2742 = vpop.permute.xlu0 %2741
    %2743 = vrot.lane.b32.xlu0 %v807, 24
    %v2744 = vpop.permute.xlu0 %2743
    %2745 = vrot.lane.b32.xlu0 %v808, 24
    %v2746 = vpop.permute.xlu0 %2745
    %2747 = vrot.lane.b32.xlu0 %v809, 24
    %v2748 = vpop.permute.xlu0 %2747
    %2749 = vrot.lane.b32.xlu0 %v810, 24
    %v2750 = vpop.permute.xlu0 %2749
    %2751 = vrot.lane.b32.xlu0 %v811, 24
    %v2752 = vpop.permute.xlu0 %2751
    %2753 = vrot.lane.b32.xlu0 %v812, 24
    %v2754 = vpop.permute.xlu0 %2753
    %2755 = vrot.lane.b32.xlu0 %v813, 24
    %v2756 = vpop.permute.xlu0 %2755
    %2757 = vrot.lane.b32.xlu0 %v814, 24
    %v2758 = vpop.permute.xlu0 %2757
    %2759 = vrot.lane.b32.xlu0 %v815, 24
    %v2760 = vpop.permute.xlu0 %2759
    %2761 = vrot.lane.b32.xlu0 %v816, 24
    %v2762 = vpop.permute.xlu0 %2761
    %2763 = vrot.lane.b32.xlu0 %v817, 24
    %v2764 = vpop.permute.xlu0 %2763
    %2765 = vrot.lane.b32.xlu0 %v818, 24
    %v2766 = vpop.permute.xlu0 %2765
    %2767 = vrot.lane.b32.xlu0 %v819, 24
    %v2768 = vpop.permute.xlu0 %2767
    %2769 = vrot.lane.b32.xlu0 %v820, 24
    %v2770 = vpop.permute.xlu0 %2769
    %2771 = vrot.lane.b32.xlu0 %v821, 24
    %v2772 = vpop.permute.xlu0 %2771
    %2773 = vrot.lane.b32.xlu0 %v822, 24
    %v2774 = vpop.permute.xlu0 %2773
    %2775 = vrot.lane.b32.xlu0 %v823, 24
    %v2776 = vpop.permute.xlu0 %2775
    %2777 = vrot.lane.b32.xlu0 %v824, 24
    %v2778 = vpop.permute.xlu0 %2777
    %2779 = vrot.lane.b32.xlu0 %v825, 24
    %v2780 = vpop.permute.xlu0 %2779
    %2781 = vrot.lane.b32.xlu0 %v826, 24
    %v2782 = vpop.permute.xlu0 %2781
    %2783 = vrot.lane.b32.xlu0 %v827, 24
    %v2784 = vpop.permute.xlu0 %2783
    %2785 = vrot.lane.b32.xlu0 %v828, 24
    %v2786 = vpop.permute.xlu0 %2785
    %2787 = vrot.lane.b32.xlu0 %v829, 24
    %v2788 = vpop.permute.xlu0 %2787
    %2789 = vrot.lane.b32.xlu0 %v830, 24
    %v2790 = vpop.permute.xlu0 %2789
    %2791 = vrot.lane.b32.xlu0 %v831, 24
    %v2792 = vpop.permute.xlu0 %2791
    %2793 = vrot.lane.b32.xlu0 %v832, 24
    %v2794 = vpop.permute.xlu0 %2793
    %2795 = vrot.lane.b32.xlu0 %v833, 24
    %v2796 = vpop.permute.xlu0 %2795
    %2797 = vrot.lane.b32.xlu0 %v834, 24
    %v2798 = vpop.permute.xlu0 %2797
    %2799 = vrot.lane.b32.xlu0 %v835, 24
    %v2800 = vpop.permute.xlu0 %2799
    %2801 = vrot.lane.b32.xlu0 %v836, 24
    %v2802 = vpop.permute.xlu0 %2801
    %2803 = vrot.lane.b32.xlu0 %v837, 24
    %v2804 = vpop.permute.xlu0 %2803
    %2805 = vrot.lane.b32.xlu0 %v838, 24
    %v2806 = vpop.permute.xlu0 %2805
    %2807 = vrot.lane.b32.xlu0 %v839, 24
    %v2808 = vpop.permute.xlu0 %2807
    %2809 = vrot.lane.b32.xlu0 %v840, 24
    %v2810 = vpop.permute.xlu0 %2809
    %2811 = vrot.lane.b32.xlu0 %v841, 24
    %v2812 = vpop.permute.xlu0 %2811
    %2813 = vrot.lane.b32.xlu0 %v842, 24
    %v2814 = vpop.permute.xlu0 %2813
    %2815 = vrot.lane.b32.xlu0 %v843, 24
    %v2816 = vpop.permute.xlu0 %2815
    %2817 = vrot.lane.b32.xlu0 %v844, 24
    %v2818 = vpop.permute.xlu0 %2817
    %2819 = vrot.lane.b32.xlu0 %v845, 24
    %v2820 = vpop.permute.xlu0 %2819
    %2821 = vrot.lane.b32.xlu0 %v846, 24
    %v2822 = vpop.permute.xlu0 %2821
    %2823 = vrot.lane.b32.xlu0 %v847, 24
    %v2824 = vpop.permute.xlu0 %2823
    %2825 = vrot.lane.b32.xlu0 %v848, 24
    %v2826 = vpop.permute.xlu0 %2825
    %2827 = vrot.lane.b32.xlu0 %v849, 24
    %v2828 = vpop.permute.xlu0 %2827
    %2829 = vrot.lane.b32.xlu0 %v850, 24
    %v2830 = vpop.permute.xlu0 %2829
    %2831 = vrot.lane.b32.xlu0 %v851, 24
    %v2832 = vpop.permute.xlu0 %2831
    %2833 = vrot.lane.b32.xlu0 %v852, 24
    %v2834 = vpop.permute.xlu0 %2833
    %2835 = vrot.lane.b32.xlu0 %v853, 24
    %v2836 = vpop.permute.xlu0 %2835
    %2837 = vrot.lane.b32.xlu0 %v854, 24
    %v2838 = vpop.permute.xlu0 %2837
    %v2903 = vsel %vm39, %v278, %v920
    %v2904 = vsel %vm39, %v279, %v922
    %v2905 = vsel %vm39, %v280, %v924
    %v2906 = vsel %vm39, %v281, %v926
    %v2907 = vsel %vm39, %v282, %v928
    %v2908 = vsel %vm39, %v283, %v930
    %v2909 = vsel %vm39, %v284, %v932
    %v2910 = vsel %vm39, %v285, %v934
    %v2911 = vsel %vm39, %v286, %v936
    %v2912 = vsel %vm39, %v287, %v938
    %v2913 = vsel %vm39, %v288, %v940
    %v2914 = vsel %vm39, %v289, %v942
    %v2915 = vsel %vm39, %v290, %v944
    %v2916 = vsel %vm39, %v291, %v946
    %v2917 = vsel %vm39, %v292, %v948
    %v2918 = vsel %vm39, %v293, %v950
    %v2919 = vsel %vm39, %v294, %v952
    %v2920 = vsel %vm39, %v295, %v954
    %v2921 = vsel %vm39, %v296, %v956
    %v2922 = vsel %vm39, %v297, %v958
    %v2923 = vsel %vm39, %v298, %v960
    %v2924 = vsel %vm39, %v299, %v962
    %v2925 = vsel %vm39, %v300, %v964
    %v2926 = vsel %vm39, %v301, %v966
    %v2927 = vsel %vm39, %v302, %v968
    %v2928 = vsel %vm39, %v303, %v970
    %v2929 = vsel %vm39, %v304, %v972
    %v2930 = vsel %vm39, %v305, %v974
    %v2931 = vsel %vm39, %v306, %v976
    %v2932 = vsel %vm39, %v307, %v978
    %v2933 = vsel %vm39, %v308, %v980
    %v2934 = vsel %vm39, %v309, %v982
    %v2935 = vsel %vm39, %v310, %v984
    %v2936 = vsel %vm39, %v311, %v986
    %v2937 = vsel %vm39, %v312, %v988
    %v2938 = vsel %vm39, %v313, %v990
    %v2939 = vsel %vm39, %v314, %v992
    %v2940 = vsel %vm39, %v315, %v994
    %v2941 = vsel %vm39, %v316, %v996
    %v2942 = vsel %vm39, %v317, %v998
    %v2943 = vsel %vm39, %v318, %v1000
    %v2944 = vsel %vm39, %v319, %v1002
    %v2945 = vsel %vm39, %v320, %v1004
    %v2946 = vsel %vm39, %v321, %v1006
    %v2947 = vsel %vm39, %v322, %v1008
    %v2948 = vsel %vm39, %v323, %v1010
    %v2949 = vsel %vm39, %v324, %v1012
    %v2950 = vsel %vm39, %v325, %v1014
    %v2951 = vsel %vm39, %v326, %v1016
    %v2952 = vsel %vm39, %v327, %v1018
    %v2953 = vsel %vm39, %v328, %v1020
    %v2954 = vsel %vm39, %v329, %v1022
    %v2955 = vsel %vm39, %v330, %v1024
    %v2956 = vsel %vm39, %v331, %v1026
    %v2957 = vsel %vm39, %v332, %v1028
    %v2958 = vsel %vm39, %v333, %v1030
    %v2959 = vsel %vm39, %v334, %v1032
    %v2960 = vsel %vm39, %v335, %v1034
    %v2961 = vsel %vm39, %v336, %v1036
    %v2962 = vsel %vm39, %v337, %v1038
    %v2963 = vsel %vm39, %v338, %v1040
    %v2964 = vsel %vm39, %v339, %v1042
    %v2965 = vsel %vm39, %v340, %v1044
    %v2966 = vsel %vm39, %v341, %v1046
    %vm2967 = vcmask 48128
    %v2968 = vsel %vm2967, %v2903, %v1176
    %v2969 = vsel %vm2967, %v2904, %v1178
    %v2970 = vsel %vm2967, %v2905, %v1180
    %v2971 = vsel %vm2967, %v2906, %v1182
    %v2972 = vsel %vm2967, %v2907, %v1184
    %v2973 = vsel %vm2967, %v2908, %v1186
    %v2974 = vsel %vm2967, %v2909, %v1188
    %v2975 = vsel %vm2967, %v2910, %v1190
    %v2976 = vsel %vm2967, %v2911, %v1192
    %v2977 = vsel %vm2967, %v2912, %v1194
    %v2978 = vsel %vm2967, %v2913, %v1196
    %v2979 = vsel %vm2967, %v2914, %v1198
    %v2980 = vsel %vm2967, %v2915, %v1200
    %v2981 = vsel %vm2967, %v2916, %v1202
    %v2982 = vsel %vm2967, %v2917, %v1204
    %v2983 = vsel %vm2967, %v2918, %v1206
    %v2984 = vsel %vm2967, %v2919, %v1208
    %v2985 = vsel %vm2967, %v2920, %v1210
    %v2986 = vsel %vm2967, %v2921, %v1212
    %v2987 = vsel %vm2967, %v2922, %v1214
    %v2988 = vsel %vm2967, %v2923, %v1216
    %v2989 = vsel %vm2967, %v2924, %v1218
    %v2990 = vsel %vm2967, %v2925, %v1220
    %v2991 = vsel %vm2967, %v2926, %v1222
    %v2992 = vsel %vm2967, %v2927, %v1224
    %v2993 = vsel %vm2967, %v2928, %v1226
    %v2994 = vsel %vm2967, %v2929, %v1228
    %v2995 = vsel %vm2967, %v2930, %v1230
    %v2996 = vsel %vm2967, %v2931, %v1232
    %v2997 = vsel %vm2967, %v2932, %v1234
    %v2998 = vsel %vm2967, %v2933, %v1236
    %v2999 = vsel %vm2967, %v2934, %v1238
    %v3000 = vsel %vm2967, %v2935, %v1240
    %v3001 = vsel %vm2967, %v2936, %v1242
    %v3002 = vsel %vm2967, %v2937, %v1244
    %v3003 = vsel %vm2967, %v2938, %v1246
    %v3004 = vsel %vm2967, %v2939, %v1248
    %v3005 = vsel %vm2967, %v2940, %v1250
    %v3006 = vsel %vm2967, %v2941, %v1252
    %v3007 = vsel %vm2967, %v2942, %v1254
    %v3008 = vsel %vm2967, %v2943, %v1256
    %v3009 = vsel %vm2967, %v2944, %v1258
    %v3010 = vsel %vm2967, %v2945, %v1260
    %v3011 = vsel %vm2967, %v2946, %v1262
    %v3012 = vsel %vm2967, %v2947, %v1264
    %v3013 = vsel %vm2967, %v2948, %v1266
    %v3014 = vsel %vm2967, %v2949, %v1268
    %v3015 = vsel %vm2967, %v2950, %v1270
    %v3016 = vsel %vm2967, %v2951, %v1272
    %v3017 = vsel %vm2967, %v2952, %v1274
    %v3018 = vsel %vm2967, %v2953, %v1276
    %v3019 = vsel %vm2967, %v2954, %v1278
    %v3020 = vsel %vm2967, %v2955, %v1280
    %v3021 = vsel %vm2967, %v2956, %v1282
    %v3022 = vsel %vm2967, %v2957, %v1284
    %v3023 = vsel %vm2967, %v2958, %v1286
    %v3024 = vsel %vm2967, %v2959, %v1288
    %v3025 = vsel %vm2967, %v2960, %v1290
    %v3026 = vsel %vm2967, %v2961, %v1292
    %v3027 = vsel %vm2967, %v2962, %v1294
    %v3028 = vsel %vm2967, %v2963, %v1296
    %v3029 = vsel %vm2967, %v2964, %v1298
    %v3030 = vsel %vm2967, %v2965, %v1300
    %v3031 = vsel %vm2967, %v2966, %v1302
    %vm3032 = vcmask 72704
    %v3033 = vsel %vm3032, %v2968, %v1432
    %v3034 = vsel %vm3032, %v2969, %v1434
    %v3035 = vsel %vm3032, %v2970, %v1436
    %v3036 = vsel %vm3032, %v2971, %v1438
    %v3037 = vsel %vm3032, %v2972, %v1440
    %v3038 = vsel %vm3032, %v2973, %v1442
    %v3039 = vsel %vm3032, %v2974, %v1444
    %v3040 = vsel %vm3032, %v2975, %v1446
    %v3041 = vsel %vm3032, %v2976, %v1448
    %v3042 = vsel %vm3032, %v2977, %v1450
    %v3043 = vsel %vm3032, %v2978, %v1452
    %v3044 = vsel %vm3032, %v2979, %v1454
    %v3045 = vsel %vm3032, %v2980, %v1456
    %v3046 = vsel %vm3032, %v2981, %v1458
    %v3047 = vsel %vm3032, %v2982, %v1460
    %v3048 = vsel %vm3032, %v2983, %v1462
    %v3049 = vsel %vm3032, %v2984, %v1464
    %v3050 = vsel %vm3032, %v2985, %v1466
    %v3051 = vsel %vm3032, %v2986, %v1468
    %v3052 = vsel %vm3032, %v2987, %v1470
    %v3053 = vsel %vm3032, %v2988, %v1472
    %v3054 = vsel %vm3032, %v2989, %v1474
    %v3055 = vsel %vm3032, %v2990, %v1476
    %v3056 = vsel %vm3032, %v2991, %v1478
    %v3057 = vsel %vm3032, %v2992, %v1480
    %v3058 = vsel %vm3032, %v2993, %v1482
    %v3059 = vsel %vm3032, %v2994, %v1484
    %v3060 = vsel %vm3032, %v2995, %v1486
    %v3061 = vsel %vm3032, %v2996, %v1488
    %v3062 = vsel %vm3032, %v2997, %v1490
    %v3063 = vsel %vm3032, %v2998, %v1492
    %v3064 = vsel %vm3032, %v2999, %v1494
    %v3065 = vsel %vm3032, %v3000, %v1496
    %v3066 = vsel %vm3032, %v3001, %v1498
    %v3067 = vsel %vm3032, %v3002, %v1500
    %v3068 = vsel %vm3032, %v3003, %v1502
    %v3069 = vsel %vm3032, %v3004, %v1504
    %v3070 = vsel %vm3032, %v3005, %v1506
    %v3071 = vsel %vm3032, %v3006, %v1508
    %v3072 = vsel %vm3032, %v3007, %v1510
    %v3073 = vsel %vm3032, %v3008, %v1512
    %v3074 = vsel %vm3032, %v3009, %v1514
    %v3075 = vsel %vm3032, %v3010, %v1516
    %v3076 = vsel %vm3032, %v3011, %v1518
    %v3077 = vsel %vm3032, %v3012, %v1520
    %v3078 = vsel %vm3032, %v3013, %v1522
    %v3079 = vsel %vm3032, %v3014, %v1524
    %v3080 = vsel %vm3032, %v3015, %v1526
    %v3081 = vsel %vm3032, %v3016, %v1528
    %v3082 = vsel %vm3032, %v3017, %v1530
    %v3083 = vsel %vm3032, %v3018, %v1532
    %v3084 = vsel %vm3032, %v3019, %v1534
    %v3085 = vsel %vm3032, %v3020, %v1536
    %v3086 = vsel %vm3032, %v3021, %v1538
    %v3087 = vsel %vm3032, %v3022, %v1540
    %v3088 = vsel %vm3032, %v3023, %v1542
    %v3089 = vsel %vm3032, %v3024, %v1544
    %v3090 = vsel %vm3032, %v3025, %v1546
    %v3091 = vsel %vm3032, %v3026, %v1548
    %v3092 = vsel %vm3032, %v3027, %v1550
    %v3093 = vsel %vm3032, %v3028, %v1552
    %v3094 = vsel %vm3032, %v3029, %v1554
    %v3095 = vsel %vm3032, %v3030, %v1556
    %v3096 = vsel %vm3032, %v3031, %v1558
    %vm3097 = vcmask 97280
    %v3098 = vsel %vm3097, %v3033, %v1688
    %v3099 = vsel %vm3097, %v3034, %v1690
    %v3100 = vsel %vm3097, %v3035, %v1692
    %v3101 = vsel %vm3097, %v3036, %v1694
    %v3102 = vsel %vm3097, %v3037, %v1696
    %v3103 = vsel %vm3097, %v3038, %v1698
    %v3104 = vsel %vm3097, %v3039, %v1700
    %v3105 = vsel %vm3097, %v3040, %v1702
    %v3106 = vsel %vm3097, %v3041, %v1704
    %v3107 = vsel %vm3097, %v3042, %v1706
    %v3108 = vsel %vm3097, %v3043, %v1708
    %v3109 = vsel %vm3097, %v3044, %v1710
    %v3110 = vsel %vm3097, %v3045, %v1712
    %v3111 = vsel %vm3097, %v3046, %v1714
    %v3112 = vsel %vm3097, %v3047, %v1716
    %v3113 = vsel %vm3097, %v3048, %v1718
    %v3114 = vsel %vm3097, %v3049, %v1720
    %v3115 = vsel %vm3097, %v3050, %v1722
    %v3116 = vsel %vm3097, %v3051, %v1724
    %v3117 = vsel %vm3097, %v3052, %v1726
    %v3118 = vsel %vm3097, %v3053, %v1728
    %v3119 = vsel %vm3097, %v3054, %v1730
    %v3120 = vsel %vm3097, %v3055, %v1732
    %v3121 = vsel %vm3097, %v3056, %v1734
    %v3122 = vsel %vm3097, %v3057, %v1736
    %v3123 = vsel %vm3097, %v3058, %v1738
    %v3124 = vsel %vm3097, %v3059, %v1740
    %v3125 = vsel %vm3097, %v3060, %v1742
    %v3126 = vsel %vm3097, %v3061, %v1744
    %v3127 = vsel %vm3097, %v3062, %v1746
    %v3128 = vsel %vm3097, %v3063, %v1748
    %v3129 = vsel %vm3097, %v3064, %v1750
    %v3130 = vsel %vm3097, %v3065, %v1752
    %v3131 = vsel %vm3097, %v3066, %v1754
    %v3132 = vsel %vm3097, %v3067, %v1756
    %v3133 = vsel %vm3097, %v3068, %v1758
    %v3134 = vsel %vm3097, %v3069, %v1760
    %v3135 = vsel %vm3097, %v3070, %v1762
    %v3136 = vsel %vm3097, %v3071, %v1764
    %v3137 = vsel %vm3097, %v3072, %v1766
    %v3138 = vsel %vm3097, %v3073, %v1768
    %v3139 = vsel %vm3097, %v3074, %v1770
    %v3140 = vsel %vm3097, %v3075, %v1772
    %v3141 = vsel %vm3097, %v3076, %v1774
    %v3142 = vsel %vm3097, %v3077, %v1776
    %v3143 = vsel %vm3097, %v3078, %v1778
    %v3144 = vsel %vm3097, %v3079, %v1780
    %v3145 = vsel %vm3097, %v3080, %v1782
    %v3146 = vsel %vm3097, %v3081, %v1784
    %v3147 = vsel %vm3097, %v3082, %v1786
    %v3148 = vsel %vm3097, %v3083, %v1788
    %v3149 = vsel %vm3097, %v3084, %v1790
    %v3150 = vsel %vm3097, %v3085, %v1792
    %v3151 = vsel %vm3097, %v3086, %v1794
    %v3152 = vsel %vm3097, %v3087, %v1796
    %v3153 = vsel %vm3097, %v3088, %v1798
    %v3154 = vsel %vm3097, %v3089, %v1800
    %v3155 = vsel %vm3097, %v3090, %v1802
    %v3156 = vsel %vm3097, %v3091, %v1804
    %v3157 = vsel %vm3097, %v3092, %v1806
    %v3158 = vsel %vm3097, %v3093, %v1808
    %v3159 = vsel %vm3097, %v3094, %v1810
    %v3160 = vsel %vm3097, %v3095, %v1812
    %v3161 = vsel %vm3097, %v3096, %v1814
    %vm3162 = vcmask 121856
    %v3163 = vsel %vm3162, %v3098, %v1944
    %v3164 = vsel %vm3162, %v3099, %v1946
    %v3165 = vsel %vm3162, %v3100, %v1948
    %v3166 = vsel %vm3162, %v3101, %v1950
    %v3167 = vsel %vm3162, %v3102, %v1952
    %v3168 = vsel %vm3162, %v3103, %v1954
    %v3169 = vsel %vm3162, %v3104, %v1956
    %v3170 = vsel %vm3162, %v3105, %v1958
    %v3171 = vsel %vm3162, %v3106, %v1960
    %v3172 = vsel %vm3162, %v3107, %v1962
    %v3173 = vsel %vm3162, %v3108, %v1964
    %v3174 = vsel %vm3162, %v3109, %v1966
    %v3175 = vsel %vm3162, %v3110, %v1968
    %v3176 = vsel %vm3162, %v3111, %v1970
    %v3177 = vsel %vm3162, %v3112, %v1972
    %v3178 = vsel %vm3162, %v3113, %v1974
    %v3179 = vsel %vm3162, %v3114, %v1976
    %v3180 = vsel %vm3162, %v3115, %v1978
    %v3181 = vsel %vm3162, %v3116, %v1980
    %v3182 = vsel %vm3162, %v3117, %v1982
    %v3183 = vsel %vm3162, %v3118, %v1984
    %v3184 = vsel %vm3162, %v3119, %v1986
    %v3185 = vsel %vm3162, %v3120, %v1988
    %v3186 = vsel %vm3162, %v3121, %v1990
    %v3187 = vsel %vm3162, %v3122, %v1992
    %v3188 = vsel %vm3162, %v3123, %v1994
    %v3189 = vsel %vm3162, %v3124, %v1996
    %v3190 = vsel %vm3162, %v3125, %v1998
    %v3191 = vsel %vm3162, %v3126, %v2000
    %v3192 = vsel %vm3162, %v3127, %v2002
    %v3193 = vsel %vm3162, %v3128, %v2004
    %v3194 = vsel %vm3162, %v3129, %v2006
    %v3195 = vsel %vm3162, %v3130, %v2008
    %v3196 = vsel %vm3162, %v3131, %v2010
    %v3197 = vsel %vm3162, %v3132, %v2012
    %v3198 = vsel %vm3162, %v3133, %v2014
    %v3199 = vsel %vm3162, %v3134, %v2016
    %v3200 = vsel %vm3162, %v3135, %v2018
    %v3201 = vsel %vm3162, %v3136, %v2020
    %v3202 = vsel %vm3162, %v3137, %v2022
    %v3203 = vsel %vm3162, %v3138, %v2024
    %v3204 = vsel %vm3162, %v3139, %v2026
    %v3205 = vsel %vm3162, %v3140, %v2028
    %v3206 = vsel %vm3162, %v3141, %v2030
    %v3207 = vsel %vm3162, %v3142, %v2032
    %v3208 = vsel %vm3162, %v3143, %v2034
    %v3209 = vsel %vm3162, %v3144, %v2036
    %v3210 = vsel %vm3162, %v3145, %v2038
    %v3211 = vsel %vm3162, %v3146, %v2040
    %v3212 = vsel %vm3162, %v3147, %v2042
    %v3213 = vsel %vm3162, %v3148, %v2044
    %v3214 = vsel %vm3162, %v3149, %v2046
    %v3215 = vsel %vm3162, %v3150, %v2048
    %v3216 = vsel %vm3162, %v3151, %v2050
    %v3217 = vsel %vm3162, %v3152, %v2052
    %v3218 = vsel %vm3162, %v3153, %v2054
    %v3219 = vsel %vm3162, %v3154, %v2056
    %v3220 = vsel %vm3162, %v3155, %v2058
    %v3221 = vsel %vm3162, %v3156, %v2060
    %v3222 = vsel %vm3162, %v3157, %v2062
    %v3223 = vsel %vm3162, %v3158, %v2064
    %v3224 = vsel %vm3162, %v3159, %v2066
    %v3225 = vsel %vm3162, %v3160, %v2068
    %v3226 = vsel %vm3162, %v3161, %v2070
    %vm3227 = vcmask 146432
    %v3228 = vsel %vm3227, %v3163, %v2200
    %v3229 = vsel %vm3227, %v3164, %v2202
    %v3230 = vsel %vm3227, %v3165, %v2204
    %v3231 = vsel %vm3227, %v3166, %v2206
    %v3232 = vsel %vm3227, %v3167, %v2208
    %v3233 = vsel %vm3227, %v3168, %v2210
    %v3234 = vsel %vm3227, %v3169, %v2212
    %v3235 = vsel %vm3227, %v3170, %v2214
    %v3236 = vsel %vm3227, %v3171, %v2216
    %v3237 = vsel %vm3227, %v3172, %v2218
    %v3238 = vsel %vm3227, %v3173, %v2220
    %v3239 = vsel %vm3227, %v3174, %v2222
    %v3240 = vsel %vm3227, %v3175, %v2224
    %v3241 = vsel %vm3227, %v3176, %v2226
    %v3242 = vsel %vm3227, %v3177, %v2228
    %v3243 = vsel %vm3227, %v3178, %v2230
    %v3244 = vsel %vm3227, %v3179, %v2232
    %v3245 = vsel %vm3227, %v3180, %v2234
    %v3246 = vsel %vm3227, %v3181, %v2236
    %v3247 = vsel %vm3227, %v3182, %v2238
    %v3248 = vsel %vm3227, %v3183, %v2240
    %v3249 = vsel %vm3227, %v3184, %v2242
    %v3250 = vsel %vm3227, %v3185, %v2244
    %v3251 = vsel %vm3227, %v3186, %v2246
    %v3252 = vsel %vm3227, %v3187, %v2248
    %v3253 = vsel %vm3227, %v3188, %v2250
    %v3254 = vsel %vm3227, %v3189, %v2252
    %v3255 = vsel %vm3227, %v3190, %v2254
    %v3256 = vsel %vm3227, %v3191, %v2256
    %v3257 = vsel %vm3227, %v3192, %v2258
    %v3258 = vsel %vm3227, %v3193, %v2260
    %v3259 = vsel %vm3227, %v3194, %v2262
    %v3260 = vsel %vm3227, %v3195, %v2264
    %v3261 = vsel %vm3227, %v3196, %v2266
    %v3262 = vsel %vm3227, %v3197, %v2268
    %v3263 = vsel %vm3227, %v3198, %v2270
    %v3264 = vsel %vm3227, %v3199, %v2272
    %v3265 = vsel %vm3227, %v3200, %v2274
    %v3266 = vsel %vm3227, %v3201, %v2276
    %v3267 = vsel %vm3227, %v3202, %v2278
    %v3268 = vsel %vm3227, %v3203, %v2280
    %v3269 = vsel %vm3227, %v3204, %v2282
    %v3270 = vsel %vm3227, %v3205, %v2284
    %v3271 = vsel %vm3227, %v3206, %v2286
    %v3272 = vsel %vm3227, %v3207, %v2288
    %v3273 = vsel %vm3227, %v3208, %v2290
    %v3274 = vsel %vm3227, %v3209, %v2292
    %v3275 = vsel %vm3227, %v3210, %v2294
    %v3276 = vsel %vm3227, %v3211, %v2296
    %v3277 = vsel %vm3227, %v3212, %v2298
    %v3278 = vsel %vm3227, %v3213, %v2300
    %v3279 = vsel %vm3227, %v3214, %v2302
    %v3280 = vsel %vm3227, %v3215, %v2304
    %v3281 = vsel %vm3227, %v3216, %v2306
    %v3282 = vsel %vm3227, %v3217, %v2308
    %v3283 = vsel %vm3227, %v3218, %v2310
    %v3284 = vsel %vm3227, %v3219, %v2312
    %v3285 = vsel %vm3227, %v3220, %v2314
    %v3286 = vsel %vm3227, %v3221, %v2316
    %v3287 = vsel %vm3227, %v3222, %v2318
    %v3288 = vsel %vm3227, %v3223, %v2320
    %v3289 = vsel %vm3227, %v3224, %v2322
    %v3290 = vsel %vm3227, %v3225, %v2324
    %v3291 = vsel %vm3227, %v3226, %v2326
    %vm3292 = vcmask 171008
    %v3293 = vsel %vm3292, %v3228, %v2456
    %v3294 = vsel %vm3292, %v3229, %v2458
    %v3295 = vsel %vm3292, %v3230, %v2460
    %v3296 = vsel %vm3292, %v3231, %v2462
    %v3297 = vsel %vm3292, %v3232, %v2464
    %v3298 = vsel %vm3292, %v3233, %v2466
    %v3299 = vsel %vm3292, %v3234, %v2468
    %v3300 = vsel %vm3292, %v3235, %v2470
    %v3301 = vsel %vm3292, %v3236, %v2472
    %v3302 = vsel %vm3292, %v3237, %v2474
    %v3303 = vsel %vm3292, %v3238, %v2476
    %v3304 = vsel %vm3292, %v3239, %v2478
    %v3305 = vsel %vm3292, %v3240, %v2480
    %v3306 = vsel %vm3292, %v3241, %v2482
    %v3307 = vsel %vm3292, %v3242, %v2484
    %v3308 = vsel %vm3292, %v3243, %v2486
    %v3309 = vsel %vm3292, %v3244, %v2488
    %v3310 = vsel %vm3292, %v3245, %v2490
    %v3311 = vsel %vm3292, %v3246, %v2492
    %v3312 = vsel %vm3292, %v3247, %v2494
    %v3313 = vsel %vm3292, %v3248, %v2496
    %v3314 = vsel %vm3292, %v3249, %v2498
    %v3315 = vsel %vm3292, %v3250, %v2500
    %v3316 = vsel %vm3292, %v3251, %v2502
    %v3317 = vsel %vm3292, %v3252, %v2504
    %v3318 = vsel %vm3292, %v3253, %v2506
    %v3319 = vsel %vm3292, %v3254, %v2508
    %v3320 = vsel %vm3292, %v3255, %v2510
    %v3321 = vsel %vm3292, %v3256, %v2512
    %v3322 = vsel %vm3292, %v3257, %v2514
    %v3323 = vsel %vm3292, %v3258, %v2516
    %v3324 = vsel %vm3292, %v3259, %v2518
    %v3325 = vsel %vm3292, %v3260, %v2520
    %v3326 = vsel %vm3292, %v3261, %v2522
    %v3327 = vsel %vm3292, %v3262, %v2524
    %v3328 = vsel %vm3292, %v3263, %v2526
    %v3329 = vsel %vm3292, %v3264, %v2528
    %v3330 = vsel %vm3292, %v3265, %v2530
    %v3331 = vsel %vm3292, %v3266, %v2532
    %v3332 = vsel %vm3292, %v3267, %v2534
    %v3333 = vsel %vm3292, %v3268, %v2536
    %v3334 = vsel %vm3292, %v3269, %v2538
    %v3335 = vsel %vm3292, %v3270, %v2540
    %v3336 = vsel %vm3292, %v3271, %v2542
    %v3337 = vsel %vm3292, %v3272, %v2544
    %v3338 = vsel %vm3292, %v3273, %v2546
    %v3339 = vsel %vm3292, %v3274, %v2548
    %v3340 = vsel %vm3292, %v3275, %v2550
    %v3341 = vsel %vm3292, %v3276, %v2552
    %v3342 = vsel %vm3292, %v3277, %v2554
    %v3343 = vsel %vm3292, %v3278, %v2556
    %v3344 = vsel %vm3292, %v3279, %v2558
    %v3345 = vsel %vm3292, %v3280, %v2560
    %v3346 = vsel %vm3292, %v3281, %v2562
    %v3347 = vsel %vm3292, %v3282, %v2564
    %v3348 = vsel %vm3292, %v3283, %v2566
    %v3349 = vsel %vm3292, %v3284, %v2568
    %v3350 = vsel %vm3292, %v3285, %v2570
    %v3351 = vsel %vm3292, %v3286, %v2572
    %v3352 = vsel %vm3292, %v3287, %v2574
    %v3353 = vsel %vm3292, %v3288, %v2576
    %v3354 = vsel %vm3292, %v3289, %v2578
    %v3355 = vsel %vm3292, %v3290, %v2580
    %v3356 = vsel %vm3292, %v3291, %v2582
    %vm3357 = vcmask 195584
    %v3358 = vsel %vm3357, %v3293, %v2712
    %v3359 = vsel %vm3357, %v3294, %v2714
    %v3360 = vsel %vm3357, %v3295, %v2716
    %v3361 = vsel %vm3357, %v3296, %v2718
    %v3362 = vsel %vm3357, %v3297, %v2720
    %v3363 = vsel %vm3357, %v3298, %v2722
    %v3364 = vsel %vm3357, %v3299, %v2724
    %v3365 = vsel %vm3357, %v3300, %v2726
    %v3366 = vsel %vm3357, %v3301, %v2728
    %v3367 = vsel %vm3357, %v3302, %v2730
    %v3368 = vsel %vm3357, %v3303, %v2732
    %v3369 = vsel %vm3357, %v3304, %v2734
    %v3370 = vsel %vm3357, %v3305, %v2736
    %v3371 = vsel %vm3357, %v3306, %v2738
    %v3372 = vsel %vm3357, %v3307, %v2740
    %v3373 = vsel %vm3357, %v3308, %v2742
    %v3374 = vsel %vm3357, %v3309, %v2744
    %v3375 = vsel %vm3357, %v3310, %v2746
    %v3376 = vsel %vm3357, %v3311, %v2748
    %v3377 = vsel %vm3357, %v3312, %v2750
    %v3378 = vsel %vm3357, %v3313, %v2752
    %v3379 = vsel %vm3357, %v3314, %v2754
    %v3380 = vsel %vm3357, %v3315, %v2756
    %v3381 = vsel %vm3357, %v3316, %v2758
    %v3382 = vsel %vm3357, %v3317, %v2760
    %v3383 = vsel %vm3357, %v3318, %v2762
    %v3384 = vsel %vm3357, %v3319, %v2764
    %v3385 = vsel %vm3357, %v3320, %v2766
    %v3386 = vsel %vm3357, %v3321, %v2768
    %v3387 = vsel %vm3357, %v3322, %v2770
    %v3388 = vsel %vm3357, %v3323, %v2772
    %v3389 = vsel %vm3357, %v3324, %v2774
    %v3390 = vsel %vm3357, %v3325, %v2776
    %v3391 = vsel %vm3357, %v3326, %v2778
    %v3392 = vsel %vm3357, %v3327, %v2780
    %v3393 = vsel %vm3357, %v3328, %v2782
    %v3394 = vsel %vm3357, %v3329, %v2784
    %v3395 = vsel %vm3357, %v3330, %v2786
    %v3396 = vsel %vm3357, %v3331, %v2788
    %v3397 = vsel %vm3357, %v3332, %v2790
    %v3398 = vsel %vm3357, %v3333, %v2792
    %v3399 = vsel %vm3357, %v3334, %v2794
    %v3400 = vsel %vm3357, %v3335, %v2796
    %v3401 = vsel %vm3357, %v3336, %v2798
    %v3402 = vsel %vm3357, %v3337, %v2800
    %v3403 = vsel %vm3357, %v3338, %v2802
    %v3404 = vsel %vm3357, %v3339, %v2804
    %v3405 = vsel %vm3357, %v3340, %v2806
    %v3406 = vsel %vm3357, %v3341, %v2808
    %v3407 = vsel %vm3357, %v3342, %v2810
    %v3408 = vsel %vm3357, %v3343, %v2812
    %v3409 = vsel %vm3357, %v3344, %v2814
    %v3410 = vsel %vm3357, %v3345, %v2816
    %v3411 = vsel %vm3357, %v3346, %v2818
    %v3412 = vsel %vm3357, %v3347, %v2820
    %v3413 = vsel %vm3357, %v3348, %v2822
    %v3414 = vsel %vm3357, %v3349, %v2824
    %v3415 = vsel %vm3357, %v3350, %v2826
    %v3416 = vsel %vm3357, %v3351, %v2828
    %v3417 = vsel %vm3357, %v3352, %v2830
    %v3418 = vsel %vm3357, %v3353, %v2832
    %v3419 = vsel %vm3357, %v3354, %v2834
    %v3420 = vsel %vm3357, %v3355, %v2836
    %v3421 = vsel %vm3357, %v3356, %v2838
    %v3422 = vld [vmem:[%s1] sm:$0xff]
    %v3423 = vld [vmem:[%s1 + $0x8] sm:$0xff]
    %v3424 = vld [vmem:[%s1 + $0x10] sm:$0xff]
    %v3425 = vld [vmem:[%s1 + $0x18] sm:$0x7]
    %v3426 = vld [vmem:[%s2] sm:$0x1]
    %v3428 = vlaneseq
    %v3429 = vshrl.u32 %v3428, 7
    %v3430 = vsub.s32 0, %v3429
    %v3431 = vrot.slane %v3426, %v3430
    %vm3433 = vcmask 220160
    %v3435 = vsel %vm3433, %v3358, 0
    %v3438 = vsel %vm3433, %v3359, 0
    %v3441 = vsel %vm3433, %v3360, 0
    %v3444 = vsel %vm3433, %v3361, 0
    %v3447 = vsel %vm3433, %v3362, 0
    %v3450 = vsel %vm3433, %v3363, 0
    %v3453 = vsel %vm3433, %v3364, 0
    %v3456 = vsel %vm3433, %v3365, 0
    %v3459 = vsel %vm3433, %v3366, 0
    %v3462 = vsel %vm3433, %v3367, 0
    %v3465 = vsel %vm3433, %v3368, 0
    %v3468 = vsel %vm3433, %v3369, 0
    %v3471 = vsel %vm3433, %v3370, 0
    %v3474 = vsel %vm3433, %v3371, 0
    %v3477 = vsel %vm3433, %v3372, 0
    %v3480 = vsel %vm3433, %v3373, 0
    %v3483 = vsel %vm3433, %v3374, 0
    %v3486 = vsel %vm3433, %v3375, 0
    %v3489 = vsel %vm3433, %v3376, 0
    %v3492 = vsel %vm3433, %v3377, 0
    %v3495 = vsel %vm3433, %v3378, 0
    %v3498 = vsel %vm3433, %v3379, 0
    %v3501 = vsel %vm3433, %v3380, 0
    %v3504 = vsel %vm3433, %v3381, 0
    %v3507 = vsel %vm3433, %v3382, 0
    %v3510 = vsel %vm3433, %v3383, 0
    %v3513 = vsel %vm3433, %v3384, 0
    %v3516 = vsel %vm3433, %v3385, 0
    %v3519 = vsel %vm3433, %v3386, 0
    %v3522 = vsel %vm3433, %v3387, 0
    %v3525 = vsel %vm3433, %v3388, 0
    %v3528 = vsel %vm3433, %v3389, 0
    %v3531 = vsel %vm3433, %v3390, 0
    %v3534 = vsel %vm3433, %v3391, 0
    %v3537 = vsel %vm3433, %v3392, 0
    %v3540 = vsel %vm3433, %v3393, 0
    %v3543 = vsel %vm3433, %v3394, 0
    %v3546 = vsel %vm3433, %v3395, 0
    %v3549 = vsel %vm3433, %v3396, 0
    %v3552 = vsel %vm3433, %v3397, 0
    %v3555 = vsel %vm3433, %v3398, 0
    %v3558 = vsel %vm3433, %v3399, 0
    %v3561 = vsel %vm3433, %v3400, 0
    %v3564 = vsel %vm3433, %v3401, 0
    %v3567 = vsel %vm3433, %v3402, 0
    %v3570 = vsel %vm3433, %v3403, 0
    %v3573 = vsel %vm3433, %v3404, 0
    %v3576 = vsel %vm3433, %v3405, 0
    %v3579 = vsel %vm3433, %v3406, 0
    %v3582 = vsel %vm3433, %v3407, 0
    %v3585 = vsel %vm3433, %v3408, 0
    %v3588 = vsel %vm3433, %v3409, 0
    %v3591 = vsel %vm3433, %v3410, 0
    %v3594 = vsel %vm3433, %v3411, 0
    %v3597 = vsel %vm3433, %v3412, 0
    %v3600 = vsel %vm3433, %v3413, 0
    %v3603 = vsel %vm3433, %v3414, 0
    %v3606 = vsel %vm3433, %v3415, 0
    %v3609 = vsel %vm3433, %v3416, 0
    %v3612 = vsel %vm3433, %v3417, 0
    %v3615 = vsel %vm3433, %v3418, 0
    %v3618 = vsel %vm3433, %v3419, 0
    %v3621 = vsel %vm3433, %v3420, 0
    %v3624 = vsel %vm3433, %v3421, 0
    %vm3626 = vcmask 1042432
    %v3628 = vsel %vm3626, %v3425, 0
    %3630 = vmatprep.subr.mxu0 0.0
    %3631 = vmatpush1.msra.mxu0 0.0
    %3632 = vmatprep.subr.mxu0 0.0
    %3633 = vmatpush1.msra.mxu0 0.0
    %3634 = vmatprep.subr.mxu0 0.0
    %3635 = vmatpush1.msra.mxu0 0.0
    %3636 = vmatprep.subr.mxu0 0.0
    %3637 = vmatpush1.msra.mxu0 0.0
    %3638 = vmatprep.subr.mxu0 0.0
    %3639 = vmatpush1.msra.mxu0 0.0
    %3640 = vmatprep.subr.mxu0 0.0
    %3641 = vmatpush1.msra.mxu0 0.0
    %3642 = vmatprep.subr.mxu0 0.0
    %3643 = vmatpush1.msra.mxu0 0.0
    %3644 = vmatprep.subr.mxu0 0.0
    %3645 = vmatpush1.msra.mxu0 0.0
    %3646 = vmatprep.subr.mxu0 0.0
    %3647 = vmatpush1.msra.mxu0 0.0
    %3648 = vmatprep.subr.mxu0 0.0
    %3649 = vmatpush1.msra.mxu0 0.0
    %3650 = vmatprep.subr.mxu0 0.0
    %3651 = vmatpush1.msra.mxu0 0.0
    %3652 = vmatprep.subr.mxu0 0.0
    %3653 = vmatpush1.msra.mxu0 0.0
    %3654 = vmatprep.subr.mxu0 0.0
    %3655 = vmatpush1.msra.mxu0 %v3628
    %3656 = vmatprep.subr.mxu0 0.0
    %3657 = vmatpush1.msra.mxu0 %v3424
    %3658 = vmatprep.subr.mxu0 0.0
    %3659 = vmatpush1.msra.mxu0 %v3423
    %3660 = vmatprep.subr.mxu0 0.0
    %3661 = vmatpush1.msra.mxu0 %v3422
    %3662 = vmatprep.subr.mxu0 0.0
    %3663 = vmatpush2.msra.mxu0 0.0
    %3664 = vmatprep.subr.mxu0 0.0
    %3665 = vmatpush2.msra.mxu0 0.0
    %3666 = vmatprep.subr.mxu0 0.0
    %3667 = vmatpush2.msra.mxu0 0.0
    %3668 = vmatprep.subr.mxu0 0.0
    %3669 = vmatpush2.msra.mxu0 0.0
    %3670 = vmatprep.subr.mxu0 0.0
    %3671 = vmatpush2.msra.mxu0 0.0
    %3672 = vmatprep.subr.mxu0 0.0
    %3673 = vmatpush2.msra.mxu0 0.0
    %3674 = vmatprep.subr.mxu0 0.0
    %3675 = vmatpush2.msra.mxu0 0.0
    %3676 = vmatprep.subr.mxu0 0.0
    %3677 = vmatpush2.msra.mxu0 0.0
    %3678 = vmatprep.subr.mxu0 0.0
    %3679 = vmatpush2.msra.mxu0 0.0
    %3680 = vmatprep.subr.mxu0 0.0
    %3681 = vmatpush2.msra.mxu0 0.0
    %3682 = vmatprep.subr.mxu0 0.0
    %3683 = vmatpush2.msra.mxu0 0.0
    %3684 = vmatprep.subr.mxu0 0.0
    %3685 = vmatpush2.msra.mxu0 0.0
    %3686 = vmatprep.subr.mxu0 0.0
    %3687 = vmatpush2.msra.mxu0 0.0
    %3688 = vmatprep.subr.mxu0 0.0
    %3689 = vmatpush2.msra.mxu0 0.0
    %3690 = vmatprep.subr.mxu0 0.0
    %3691 = vmatpush2.msra.mxu0 0.0
    %3692 = vmatprep.subr.mxu0 0.0
    %3693 = vmatpush2.msra.mxu0 0.0
    %3694 = vmatprep.mubr.f32.mxu0 0.0
    %3695 = vmatmul.mubr.f32.gmra.mxu0 %v3435
    %v3696 = vpop.f32.mrf.mxu0
    %v3697 = vadd.f32 %v3431, %v3696
    %v3698 = vpop.f32.mrf.mxu0
    %3699 = vmatprep.mubr.f32.mxu0 0.0
    %3700 = vmatmul.mubr.f32.gmra.mxu0 %v3438
    %v3701 = vpop.f32.mrf.mxu0
    %v3702 = vadd.f32 %v3431, %v3701
    %v3703 = vpop.f32.mrf.mxu0
    %3704 = vmatprep.mubr.f32.mxu0 0.0
    %3705 = vmatmul.mubr.f32.gmra.mxu0 %v3441
    %v3706 = vpop.f32.mrf.mxu0
    %v3707 = vadd.f32 %v3431, %v3706
    %v3708 = vpop.f32.mrf.mxu0
    %3709 = vmatprep.mubr.f32.mxu0 0.0
    %3710 = vmatmul.mubr.f32.gmra.mxu0 %v3444
    %v3711 = vpop.f32.mrf.mxu0
    %v3712 = vadd.f32 %v3431, %v3711
    %v3713 = vpop.f32.mrf.mxu0
    %3714 = vmatprep.mubr.f32.mxu0 0.0
    %3715 = vmatmul.mubr.f32.gmra.mxu0 %v3447
    %v3716 = vpop.f32.mrf.mxu0
    %v3717 = vadd.f32 %v3431, %v3716
    %v3718 = vpop.f32.mrf.mxu0
    %3719 = vmatprep.mubr.f32.mxu0 0.0
    %3720 = vmatmul.mubr.f32.gmra.mxu0 %v3450
    %v3721 = vpop.f32.mrf.mxu0
    %v3722 = vadd.f32 %v3431, %v3721
    %v3723 = vpop.f32.mrf.mxu0
    %3724 = vmatprep.mubr.f32.mxu0 0.0
    %3725 = vmatmul.mubr.f32.gmra.mxu0 %v3453
    %v3726 = vpop.f32.mrf.mxu0
    %v3727 = vadd.f32 %v3431, %v3726
    %v3728 = vpop.f32.mrf.mxu0
    %3729 = vmatprep.mubr.f32.mxu0 0.0
    %3730 = vmatmul.mubr.f32.gmra.mxu0 %v3456
    %v3731 = vpop.f32.mrf.mxu0
    %v3732 = vadd.f32 %v3431, %v3731
    %v3733 = vpop.f32.mrf.mxu0
    %3734 = vmatprep.mubr.f32.mxu0 0.0
    %3735 = vmatmul.mubr.f32.gmra.mxu0 %v3459
    %v3736 = vpop.f32.mrf.mxu0
    %v3737 = vadd.f32 %v3431, %v3736
    %v3738 = vpop.f32.mrf.mxu0
    %3739 = vmatprep.mubr.f32.mxu0 0.0
    %3740 = vmatmul.mubr.f32.gmra.mxu0 %v3462
    %v3741 = vpop.f32.mrf.mxu0
    %v3742 = vadd.f32 %v3431, %v3741
    %v3743 = vpop.f32.mrf.mxu0
    %3744 = vmatprep.mubr.f32.mxu0 0.0
    %3745 = vmatmul.mubr.f32.gmra.mxu0 %v3465
    %v3746 = vpop.f32.mrf.mxu0
    %v3747 = vadd.f32 %v3431, %v3746
    %v3748 = vpop.f32.mrf.mxu0
    %3749 = vmatprep.mubr.f32.mxu0 0.0
    %3750 = vmatmul.mubr.f32.gmra.mxu0 %v3468
    %v3751 = vpop.f32.mrf.mxu0
    %v3752 = vadd.f32 %v3431, %v3751
    %v3753 = vpop.f32.mrf.mxu0
    %3754 = vmatprep.mubr.f32.mxu0 0.0
    %3755 = vmatmul.mubr.f32.gmra.mxu0 %v3471
    %v3756 = vpop.f32.mrf.mxu0
    %v3757 = vadd.f32 %v3431, %v3756
    %v3758 = vpop.f32.mrf.mxu0
    %3759 = vmatprep.mubr.f32.mxu0 0.0
    %3760 = vmatmul.mubr.f32.gmra.mxu0 %v3474
    %v3761 = vpop.f32.mrf.mxu0
    %v3762 = vadd.f32 %v3431, %v3761
    %v3763 = vpop.f32.mrf.mxu0
    %3764 = vmatprep.mubr.f32.mxu0 0.0
    %3765 = vmatmul.mubr.f32.gmra.mxu0 %v3477
    %v3766 = vpop.f32.mrf.mxu0
    %v3767 = vadd.f32 %v3431, %v3766
    %v3768 = vpop.f32.mrf.mxu0
    %3769 = vmatprep.mubr.f32.mxu0 0.0
    %3770 = vmatmul.mubr.f32.gmra.mxu0 %v3480
    %v3771 = vpop.f32.mrf.mxu0
    %v3772 = vadd.f32 %v3431, %v3771
    %v3773 = vpop.f32.mrf.mxu0
    %3774 = vmatprep.mubr.f32.mxu0 0.0
    %3775 = vmatmul.mubr.f32.gmra.mxu0 %v3483
    %v3776 = vpop.f32.mrf.mxu0
    %v3777 = vadd.f32 %v3431, %v3776
    %v3778 = vpop.f32.mrf.mxu0
    %3779 = vmatprep.mubr.f32.mxu0 0.0
    %3780 = vmatmul.mubr.f32.gmra.mxu0 %v3486
    %v3781 = vpop.f32.mrf.mxu0
    %v3782 = vadd.f32 %v3431, %v3781
    %v3783 = vpop.f32.mrf.mxu0
    %3784 = vmatprep.mubr.f32.mxu0 0.0
    %3785 = vmatmul.mubr.f32.gmra.mxu0 %v3489
    %v3786 = vpop.f32.mrf.mxu0
    %v3787 = vadd.f32 %v3431, %v3786
    %v3788 = vpop.f32.mrf.mxu0
    %3789 = vmatprep.mubr.f32.mxu0 0.0
    %3790 = vmatmul.mubr.f32.gmra.mxu0 %v3492
    %v3791 = vpop.f32.mrf.mxu0
    %v3792 = vadd.f32 %v3431, %v3791
    %v3793 = vpop.f32.mrf.mxu0
    %3794 = vmatprep.mubr.f32.mxu0 0.0
    %3795 = vmatmul.mubr.f32.gmra.mxu0 %v3495
    %v3796 = vpop.f32.mrf.mxu0
    %v3797 = vadd.f32 %v3431, %v3796
    %v3798 = vpop.f32.mrf.mxu0
    %3799 = vmatprep.mubr.f32.mxu0 0.0
    %3800 = vmatmul.mubr.f32.gmra.mxu0 %v3498
    %v3801 = vpop.f32.mrf.mxu0
    %v3802 = vadd.f32 %v3431, %v3801
    %v3803 = vpop.f32.mrf.mxu0
    %3804 = vmatprep.mubr.f32.mxu0 0.0
    %3805 = vmatmul.mubr.f32.gmra.mxu0 %v3501
    %v3806 = vpop.f32.mrf.mxu0
    %v3807 = vadd.f32 %v3431, %v3806
    %v3808 = vpop.f32.mrf.mxu0
    %3809 = vmatprep.mubr.f32.mxu0 0.0
    %3810 = vmatmul.mubr.f32.gmra.mxu0 %v3504
    %v3811 = vpop.f32.mrf.mxu0
    %v3812 = vadd.f32 %v3431, %v3811
    %v3813 = vpop.f32.mrf.mxu0
    %3814 = vmatprep.mubr.f32.mxu0 0.0
    %3815 = vmatmul.mubr.f32.gmra.mxu0 %v3507
    %v3816 = vpop.f32.mrf.mxu0
    %v3817 = vadd.f32 %v3431, %v3816
    %v3818 = vpop.f32.mrf.mxu0
    %3819 = vmatprep.mubr.f32.mxu0 0.0
    %3820 = vmatmul.mubr.f32.gmra.mxu0 %v3510
    %v3821 = vpop.f32.mrf.mxu0
    %v3822 = vadd.f32 %v3431, %v3821
    %v3823 = vpop.f32.mrf.mxu0
    %3824 = vmatprep.mubr.f32.mxu0 0.0
    %3825 = vmatmul.mubr.f32.gmra.mxu0 %v3513
    %v3826 = vpop.f32.mrf.mxu0
    %v3827 = vadd.f32 %v3431, %v3826
    %v3828 = vpop.f32.mrf.mxu0
    %3829 = vmatprep.mubr.f32.mxu0 0.0
    %3830 = vmatmul.mubr.f32.gmra.mxu0 %v3516
    %v3831 = vpop.f32.mrf.mxu0
    %v3832 = vadd.f32 %v3431, %v3831
    %v3833 = vpop.f32.mrf.mxu0
    %3834 = vmatprep.mubr.f32.mxu0 0.0
    %3835 = vmatmul.mubr.f32.gmra.mxu0 %v3519
    %v3836 = vpop.f32.mrf.mxu0
    %v3837 = vadd.f32 %v3431, %v3836
    %v3838 = vpop.f32.mrf.mxu0
    %3839 = vmatprep.mubr.f32.mxu0 0.0
    %3840 = vmatmul.mubr.f32.gmra.mxu0 %v3522
    %v3841 = vpop.f32.mrf.mxu0
    %v3842 = vadd.f32 %v3431, %v3841
    %v3843 = vpop.f32.mrf.mxu0
    %3844 = vmatprep.mubr.f32.mxu0 0.0
    %3845 = vmatmul.mubr.f32.gmra.mxu0 %v3525
    %v3846 = vpop.f32.mrf.mxu0
    %v3847 = vadd.f32 %v3431, %v3846
    %v3848 = vpop.f32.mrf.mxu0
    %3849 = vmatprep.mubr.f32.mxu0 0.0
    %3850 = vmatmul.mubr.f32.gmra.mxu0 %v3528
    %v3851 = vpop.f32.mrf.mxu0
    %v3852 = vadd.f32 %v3431, %v3851
    %v3853 = vpop.f32.mrf.mxu0
    %3854 = vmatprep.mubr.f32.mxu0 0.0
    %3855 = vmatmul.mubr.f32.gmra.mxu0 %v3531
    %v3856 = vpop.f32.mrf.mxu0
    %v3857 = vadd.f32 %v3431, %v3856
    %v3858 = vpop.f32.mrf.mxu0
    %3859 = vmatprep.mubr.f32.mxu0 0.0
    %3860 = vmatmul.mubr.f32.gmra.mxu0 %v3534
    %v3861 = vpop.f32.mrf.mxu0
    %v3862 = vadd.f32 %v3431, %v3861
    %v3863 = vpop.f32.mrf.mxu0
    %3864 = vmatprep.mubr.f32.mxu0 0.0
    %3865 = vmatmul.mubr.f32.gmra.mxu0 %v3537
    %v3866 = vpop.f32.mrf.mxu0
    %v3867 = vadd.f32 %v3431, %v3866
    %v3868 = vpop.f32.mrf.mxu0
    %3869 = vmatprep.mubr.f32.mxu0 0.0
    %3870 = vmatmul.mubr.f32.gmra.mxu0 %v3540
    %v3871 = vpop.f32.mrf.mxu0
    %v3872 = vadd.f32 %v3431, %v3871
    %v3873 = vpop.f32.mrf.mxu0
    %3874 = vmatprep.mubr.f32.mxu0 0.0
    %3875 = vmatmul.mubr.f32.gmra.mxu0 %v3543
    %v3876 = vpop.f32.mrf.mxu0
    %v3877 = vadd.f32 %v3431, %v3876
    %v3878 = vpop.f32.mrf.mxu0
    %3879 = vmatprep.mubr.f32.mxu0 0.0
    %3880 = vmatmul.mubr.f32.gmra.mxu0 %v3546
    %v3881 = vpop.f32.mrf.mxu0
    %v3882 = vadd.f32 %v3431, %v3881
    %v3883 = vpop.f32.mrf.mxu0
    %3884 = vmatprep.mubr.f32.mxu0 0.0
    %3885 = vmatmul.mubr.f32.gmra.mxu0 %v3549
    %v3886 = vpop.f32.mrf.mxu0
    %v3887 = vadd.f32 %v3431, %v3886
    %v3888 = vpop.f32.mrf.mxu0
    %3889 = vmatprep.mubr.f32.mxu0 0.0
    %3890 = vmatmul.mubr.f32.gmra.mxu0 %v3552
    %v3891 = vpop.f32.mrf.mxu0
    %v3892 = vadd.f32 %v3431, %v3891
    %v3893 = vpop.f32.mrf.mxu0
    %3894 = vmatprep.mubr.f32.mxu0 0.0
    %3895 = vmatmul.mubr.f32.gmra.mxu0 %v3555
    %v3896 = vpop.f32.mrf.mxu0
    %v3897 = vadd.f32 %v3431, %v3896
    %v3898 = vpop.f32.mrf.mxu0
    %3899 = vmatprep.mubr.f32.mxu0 0.0
    %3900 = vmatmul.mubr.f32.gmra.mxu0 %v3558
    %v3901 = vpop.f32.mrf.mxu0
    %v3902 = vadd.f32 %v3431, %v3901
    %v3903 = vpop.f32.mrf.mxu0
    %3904 = vmatprep.mubr.f32.mxu0 0.0
    %3905 = vmatmul.mubr.f32.gmra.mxu0 %v3561
    %v3906 = vpop.f32.mrf.mxu0
    %v3907 = vadd.f32 %v3431, %v3906
    %v3908 = vpop.f32.mrf.mxu0
    %3909 = vmatprep.mubr.f32.mxu0 0.0
    %3910 = vmatmul.mubr.f32.gmra.mxu0 %v3564
    %v3911 = vpop.f32.mrf.mxu0
    %v3912 = vadd.f32 %v3431, %v3911
    %v3913 = vpop.f32.mrf.mxu0
    %3914 = vmatprep.mubr.f32.mxu0 0.0
    %3915 = vmatmul.mubr.f32.gmra.mxu0 %v3567
    %v3916 = vpop.f32.mrf.mxu0
    %v3917 = vadd.f32 %v3431, %v3916
    %v3918 = vpop.f32.mrf.mxu0
    %3919 = vmatprep.mubr.f32.mxu0 0.0
    %3920 = vmatmul.mubr.f32.gmra.mxu0 %v3570
    %v3921 = vpop.f32.mrf.mxu0
    %v3922 = vadd.f32 %v3431, %v3921
    %v3923 = vpop.f32.mrf.mxu0
    %3924 = vmatprep.mubr.f32.mxu0 0.0
    %3925 = vmatmul.mubr.f32.gmra.mxu0 %v3573
    %v3926 = vpop.f32.mrf.mxu0
    %v3927 = vadd.f32 %v3431, %v3926
    %v3928 = vpop.f32.mrf.mxu0
    %3929 = vmatprep.mubr.f32.mxu0 0.0
    %3930 = vmatmul.mubr.f32.gmra.mxu0 %v3576
    %v3931 = vpop.f32.mrf.mxu0
    %v3932 = vadd.f32 %v3431, %v3931
    %v3933 = vpop.f32.mrf.mxu0
    %3934 = vmatprep.mubr.f32.mxu0 0.0
    %3935 = vmatmul.mubr.f32.gmra.mxu0 %v3579
    %v3936 = vpop.f32.mrf.mxu0
    %v3937 = vadd.f32 %v3431, %v3936
    %v3938 = vpop.f32.mrf.mxu0
    %3939 = vmatprep.mubr.f32.mxu0 0.0
    %3940 = vmatmul.mubr.f32.gmra.mxu0 %v3582
    %v3941 = vpop.f32.mrf.mxu0
    %v3942 = vadd.f32 %v3431, %v3941
    %v3943 = vpop.f32.mrf.mxu0
    %3944 = vmatprep.mubr.f32.mxu0 0.0
    %3945 = vmatmul.mubr.f32.gmra.mxu0 %v3585
    %v3946 = vpop.f32.mrf.mxu0
    %v3947 = vadd.f32 %v3431, %v3946
    %v3948 = vpop.f32.mrf.mxu0
    %3949 = vmatprep.mubr.f32.mxu0 0.0
    %3950 = vmatmul.mubr.f32.gmra.mxu0 %v3588
    %v3951 = vpop.f32.mrf.mxu0
    %v3952 = vadd.f32 %v3431, %v3951
    %v3953 = vpop.f32.mrf.mxu0
    %3954 = vmatprep.mubr.f32.mxu0 0.0
    %3955 = vmatmul.mubr.f32.gmra.mxu0 %v3591
    %v3956 = vpop.f32.mrf.mxu0
    %v3957 = vadd.f32 %v3431, %v3956
    %v3958 = vpop.f32.mrf.mxu0
    %3959 = vmatprep.mubr.f32.mxu0 0.0
    %3960 = vmatmul.mubr.f32.gmra.mxu0 %v3594
    %v3961 = vpop.f32.mrf.mxu0
    %v3962 = vadd.f32 %v3431, %v3961
    %v3963 = vpop.f32.mrf.mxu0
    %3964 = vmatprep.mubr.f32.mxu0 0.0
    %3965 = vmatmul.mubr.f32.gmra.mxu0 %v3597
    %v3966 = vpop.f32.mrf.mxu0
    %v3967 = vadd.f32 %v3431, %v3966
    %v3968 = vpop.f32.mrf.mxu0
    %3969 = vmatprep.mubr.f32.mxu0 0.0
    %3970 = vmatmul.mubr.f32.gmra.mxu0 %v3600
    %v3971 = vpop.f32.mrf.mxu0
    %v3972 = vadd.f32 %v3431, %v3971
    %v3973 = vpop.f32.mrf.mxu0
    %3974 = vmatprep.mubr.f32.mxu0 0.0
    %3975 = vmatmul.mubr.f32.gmra.mxu0 %v3603
    %v3976 = vpop.f32.mrf.mxu0
    %v3977 = vadd.f32 %v3431, %v3976
    %v3978 = vpop.f32.mrf.mxu0
    %3979 = vmatprep.mubr.f32.mxu0 0.0
    %3980 = vmatmul.mubr.f32.gmra.mxu0 %v3606
    %v3981 = vpop.f32.mrf.mxu0
    %v3982 = vadd.f32 %v3431, %v3981
    %v3983 = vpop.f32.mrf.mxu0
    %3984 = vmatprep.mubr.f32.mxu0 0.0
    %3985 = vmatmul.mubr.f32.gmra.mxu0 %v3609
    %v3986 = vpop.f32.mrf.mxu0
    %v3987 = vadd.f32 %v3431, %v3986
    %v3988 = vpop.f32.mrf.mxu0
    %3989 = vmatprep.mubr.f32.mxu0 0.0
    %3990 = vmatmul.mubr.f32.gmra.mxu0 %v3612
    %v3991 = vpop.f32.mrf.mxu0
    %v3992 = vadd.f32 %v3431, %v3991
    %v3993 = vpop.f32.mrf.mxu0
    %3994 = vmatprep.mubr.f32.mxu0 0.0
    %3995 = vmatmul.mubr.f32.gmra.mxu0 %v3615
    %v3996 = vpop.f32.mrf.mxu0
    %v3997 = vadd.f32 %v3431, %v3996
    %v3998 = vpop.f32.mrf.mxu0
    %3999 = vmatprep.mubr.f32.mxu0 0.0
    %4000 = vmatmul.mubr.f32.gmra.mxu0 %v3618
    %v4001 = vpop.f32.mrf.mxu0
    %v4002 = vadd.f32 %v3431, %v4001
    %v4003 = vpop.f32.mrf.mxu0
    %4004 = vmatprep.mubr.f32.mxu0 0.0
    %4005 = vmatmul.mubr.f32.gmra.mxu0 %v3621
    %v4006 = vpop.f32.mrf.mxu0
    %v4007 = vadd.f32 %v3431, %v4006
    %v4008 = vpop.f32.mrf.mxu0
    %4009 = vmatprep.mubr.f32.mxu0 0.0
    %4010 = vmatmul.mubr.f32.gmra.mxu0 %v3624
    %v4011 = vpop.f32.mrf.mxu0
    %v4012 = vadd.f32 %v3431, %v4011
    %v4013 = vpop.f32.mrf.mxu0
    %4014 = vdwg.mxu0
    %v4015 = vmax.f32 %v3697, 0.0
    %v4016 = vmax.f32 %v3702, 0.0
    %v4017 = vmax.f32 %v3707, 0.0
    %v4018 = vmax.f32 %v3712, 0.0
    %v4019 = vmax.f32 %v3717, 0.0
    %v4020 = vmax.f32 %v3722, 0.0
    %v4021 = vmax.f32 %v3727, 0.0
    %v4022 = vmax.f32 %v3732, 0.0
    %v4023 = vmax.f32 %v3737, 0.0
    %v4024 = vmax.f32 %v3742, 0.0
    %v4025 = vmax.f32 %v3747, 0.0
    %v4026 = vmax.f32 %v3752, 0.0
    %v4027 = vmax.f32 %v3757, 0.0
    %v4028 = vmax.f32 %v3762, 0.0
    %v4029 = vmax.f32 %v3767, 0.0
    %v4030 = vmax.f32 %v3772, 0.0
    %v4031 = vmax.f32 %v3777, 0.0
    %v4032 = vmax.f32 %v3782, 0.0
    %v4033 = vmax.f32 %v3787, 0.0
    %v4034 = vmax.f32 %v3792, 0.0
    %v4035 = vmax.f32 %v3797, 0.0
    %v4036 = vmax.f32 %v3802, 0.0
    %v4037 = vmax.f32 %v3807, 0.0
    %v4038 = vmax.f32 %v3812, 0.0
    %v4039 = vmax.f32 %v3817, 0.0
    %v4040 = vmax.f32 %v3822, 0.0
    %v4041 = vmax.f32 %v3827, 0.0
    %v4042 = vmax.f32 %v3832, 0.0
    %v4043 = vmax.f32 %v3837, 0.0
    %v4044 = vmax.f32 %v3842, 0.0
    %v4045 = vmax.f32 %v3847, 0.0
    %v4046 = vmax.f32 %v3852, 0.0
    %v4047 = vmax.f32 %v3857, 0.0
    %v4048 = vmax.f32 %v3862, 0.0
    %v4049 = vmax.f32 %v3867, 0.0
    %v4050 = vmax.f32 %v3872, 0.0
    %v4051 = vmax.f32 %v3877, 0.0
    %v4052 = vmax.f32 %v3882, 0.0
    %v4053 = vmax.f32 %v3887, 0.0
    %v4054 = vmax.f32 %v3892, 0.0
    %v4055 = vmax.f32 %v3897, 0.0
    %v4056 = vmax.f32 %v3902, 0.0
    %v4057 = vmax.f32 %v3907, 0.0
    %v4058 = vmax.f32 %v3912, 0.0
    %v4059 = vmax.f32 %v3917, 0.0
    %v4060 = vmax.f32 %v3922, 0.0
    %v4061 = vmax.f32 %v3927, 0.0
    %v4062 = vmax.f32 %v3932, 0.0
    %v4063 = vmax.f32 %v3937, 0.0
    %v4064 = vmax.f32 %v3942, 0.0
    %v4065 = vmax.f32 %v3947, 0.0
    %v4066 = vmax.f32 %v3952, 0.0
    %v4067 = vmax.f32 %v3957, 0.0
    %v4068 = vmax.f32 %v3962, 0.0
    %v4069 = vmax.f32 %v3967, 0.0
    %v4070 = vmax.f32 %v3972, 0.0
    %v4071 = vmax.f32 %v3977, 0.0
    %v4072 = vmax.f32 %v3982, 0.0
    %v4073 = vmax.f32 %v3987, 0.0
    %v4074 = vmax.f32 %v3992, 0.0
    %v4075 = vmax.f32 %v3997, 0.0
    %v4076 = vmax.f32 %v4002, 0.0
    %v4077 = vmax.f32 %v4007, 0.0
    %v4078 = vmax.f32 %v4012, 0.0
    %v4079 = vmax.f32 %v4015, %v4017
    %v4080 = vmax.f32 %v4016, %v4018
    %v4081 = vmax.f32 %v4019, %v4021
    %v4082 = vmax.f32 %v4020, %v4022
    %v4083 = vmax.f32 %v4023, %v4025
    %v4084 = vmax.f32 %v4024, %v4026
    %v4085 = vmax.f32 %v4027, %v4029
    %v4086 = vmax.f32 %v4028, %v4030
    %v4087 = vmax.f32 %v4031, %v4033
    %v4088 = vmax.f32 %v4032, %v4034
    %v4089 = vmax.f32 %v4035, %v4037
    %v4090 = vmax.f32 %v4036, %v4038
    %v4091 = vmax.f32 %v4039, %v4041
    %v4092 = vmax.f32 %v4040, %v4042
    %v4093 = vmax.f32 %v4043, %v4045
    %v4094 = vmax.f32 %v4044, %v4046
    %v4095 = vmax.f32 %v4047, %v4049
    %v4096 = vmax.f32 %v4048, %v4050
    %v4097 = vmax.f32 %v4051, %v4053
    %v4098 = vmax.f32 %v4052, %v4054
    %v4099 = vmax.f32 %v4055, %v4057
    %v4100 = vmax.f32 %v4056, %v4058
    %v4101 = vmax.f32 %v4059, %v4061
    %v4102 = vmax.f32 %v4060, %v4062
    %v4103 = vmax.f32 %v4063, %v4065
    %v4104 = vmax.f32 %v4064, %v4066
    %v4105 = vmax.f32 %v4067, %v4069
    %v4106 = vmax.f32 %v4068, %v4070
    %v4107 = vmax.f32 %v4071, %v4073
    %v4108 = vmax.f32 %v4072, %v4074
    %v4109 = vmax.f32 %v4075, %v4077
    %v4110 = vmax.f32 %v4076, %v4078
    %vm4111 = vcmask 64512
    %4112 = vst.msk [vmem:[#allocation3] sm:$0xff] %vm4111, 0.0
    %vm4113 = vcmask 58368
    %4114 = vst.msk [vmem:[#allocation3 + $0x8] sm:$0x3] %vm4113, 0.0
    %4115 = vst.msk [vmem:[#allocation3 + $0x10] sm:$0xff] %vm4111, 0.0
    %4116 = vst.msk [vmem:[#allocation3 + $0x18] sm:$0x3] %vm4113, 0.0
    %4117 = vst.msk [vmem:[#allocation3 + $0x20] sm:$0xff] %vm4111, 0.0
    %4118 = vst.msk [vmem:[#allocation3 + $0x28] sm:$0x3] %vm4113, 0.0
    %4119 = vst.msk [vmem:[#allocation3 + $0x30] sm:$0xff] %vm4111, 0.0
    %4120 = vst.msk [vmem:[#allocation3 + $0x38] sm:$0x3] %vm4113, 0.0
    %4121 = vst.msk [vmem:[#allocation3 + $0x40] sm:$0xff] %vm4111, 0.0
    %4122 = vst.msk [vmem:[#allocation3 + $0x48] sm:$0x3] %vm4113, 0.0
    %4123 = vst.msk [vmem:[#allocation3 + $0x50] sm:$0xff] %vm4111, 0.0
    %4124 = vst.msk [vmem:[#allocation3 + $0x58] sm:$0x3] %vm4113, 0.0
    %4125 = vst.msk [vmem:[#allocation3 + $0x60] sm:$0xff] %vm4111, 0.0
    %4126 = vst.msk [vmem:[#allocation3 + $0x68] sm:$0x3] %vm4113, 0.0
    %4127 = vst.msk [vmem:[#allocation3 + $0x70] sm:$0xff] %vm4111, 0.0
    %4128 = vst.msk [vmem:[#allocation3 + $0x78] sm:$0x3] %vm4113, 0.0
    %4129 = vst.msk [vmem:[#allocation3 + $0x80] sm:$0xff] %vm4111, 0.0
    %4130 = vst.msk [vmem:[#allocation3 + $0x88] sm:$0x3] %vm4113, 0.0
    %4131 = vst.msk [vmem:[#allocation3 + $0x90] sm:$0xff] %vm4111, 0.0
    %4132 = vst.msk [vmem:[#allocation3 + $0x98] sm:$0x3] %vm4113, 0.0
    %4133 = vst.msk [vmem:[#allocation3 + $0xa0] sm:$0xff] %vm4111, 0.0
    %4134 = vst.msk [vmem:[#allocation3 + $0xa8] sm:$0x3] %vm4113, 0.0
    %4135 = vst.msk [vmem:[#allocation3 + $0xb0] sm:$0xff] %vm4111, 0.0
    %4136 = vst.msk [vmem:[#allocation3 + $0xb8] sm:$0x3] %vm4113, 0.0
    %4137 = vst.msk [vmem:[#allocation3 + $0xc0] sm:$0xff] %vm4111, 0.0
    %4138 = vst.msk [vmem:[#allocation3 + $0xc8] sm:$0x3] %vm4113, 0.0
    %4139 = vst.msk [vmem:[#allocation3 + $0xd0] sm:$0xff] %vm4111, 0.0
    %4140 = vst.msk [vmem:[#allocation3 + $0xd8] sm:$0x3] %vm4113, 0.0
    %4141 = vst.msk [vmem:[#allocation3 + $0xe0] sm:$0xff] %vm4111, 0.0
    %4142 = vst.msk [vmem:[#allocation3 + $0xe8] sm:$0x3] %vm4113, 0.0
    %4143 = vst.msk [vmem:[#allocation3 + $0xf0] sm:$0xff] %vm4111, 0.0
    %4144 = vst.msk [vmem:[#allocation3 + $0xf8] sm:$0x3] %vm4113, 0.0
    %4145 = vst.msk [vmem:[#allocation3 + $0x100] sm:$0xff] %vm4111, 0.0
    %4146 = vst.msk [vmem:[#allocation3 + $0x108] sm:$0x3] %vm4113, 0.0
    %4147 = vst.msk [vmem:[#allocation3 + $0x110] sm:$0xff] %vm4111, 0.0
    %4148 = vst.msk [vmem:[#allocation3 + $0x118] sm:$0x3] %vm4113, 0.0
    %4149 = vst.msk [vmem:[#allocation3 + $0x120] sm:$0xff] %vm4111, 0.0
    %4150 = vst.msk [vmem:[#allocation3 + $0x128] sm:$0x3] %vm4113, 0.0
    %4151 = vst.msk [vmem:[#allocation3 + $0x130] sm:$0xff] %vm4111, 0.0
    %4152 = vst.msk [vmem:[#allocation3 + $0x138] sm:$0x3] %vm4113, 0.0
    %v4169 = vrot.slane %v4079, 1
    %v4170 = vrot.slane %v4081, 1
    %v4171 = vrot.slane %v4083, 1
    %v4172 = vrot.slane %v4085, 1
    %v4173 = vrot.slane %v4087, 1
    %v4174 = vrot.slane %v4089, 1
    %v4175 = vrot.slane %v4091, 1
    %v4176 = vrot.slane %v4093, 1
    %v4177 = vrot.slane %v4095, 1
    %v4178 = vrot.slane %v4097, 1
    %v4179 = vrot.slane %v4099, 1
    %v4180 = vrot.slane %v4101, 1
    %v4181 = vrot.slane %v4103, 1
    %v4182 = vrot.slane %v4105, 1
    %v4183 = vrot.slane %v4107, 1
    %v4184 = vrot.slane %v4109, 1
    %v4201 = vmax.f32 %v4079, %v4169
    %v4202 = vmax.f32 %v4081, %v4170
    %v4203 = vmax.f32 %v4083, %v4171
    %v4204 = vmax.f32 %v4085, %v4172
    %v4205 = vmax.f32 %v4087, %v4173
    %v4206 = vmax.f32 %v4089, %v4174
    %v4207 = vmax.f32 %v4091, %v4175
    %v4208 = vmax.f32 %v4093, %v4176
    %v4209 = vmax.f32 %v4095, %v4177
    %v4210 = vmax.f32 %v4097, %v4178
    %v4211 = vmax.f32 %v4099, %v4179
    %v4212 = vmax.f32 %v4101, %v4180
    %v4213 = vmax.f32 %v4103, %v4181
    %v4214 = vmax.f32 %v4105, %v4182
    %v4215 = vmax.f32 %v4107, %v4183
    %v4216 = vmax.f32 %v4109, %v4184
    %s4217 = scalar_lea.vmem [#allocation3], 16
    %vm4218 = vcmask 57344
    %4219 = vst.msk [vmem:[%s4217 + $0x1] sm:$0x1] %vm4218, %v4201
    %4220 = vst.msk [vmem:[%s4217 + $0x11] sm:$0x1] %vm4218, %v4202
    %4221 = vst.msk [vmem:[%s4217 + $0x21] sm:$0x1] %vm4218, %v4203
    %4222 = vst.msk [vmem:[%s4217 + $0x31] sm:$0x1] %vm4218, %v4204
    %4223 = vst.msk [vmem:[%s4217 + $0x41] sm:$0x1] %vm4218, %v4205
    %4224 = vst.msk [vmem:[%s4217 + $0x51] sm:$0x1] %vm4218, %v4206
    %4225 = vst.msk [vmem:[%s4217 + $0x61] sm:$0x1] %vm4218, %v4207
    %4226 = vst.msk [vmem:[%s4217 + $0x71] sm:$0x1] %vm4218, %v4208
    %4227 = vst.msk [vmem:[%s4217 + $0xa1] sm:$0x1] %vm4218, %v4209
    %4228 = vst.msk [vmem:[%s4217 + $0xb1] sm:$0x1] %vm4218, %v4210
    %4229 = vst.msk [vmem:[%s4217 + $0xc1] sm:$0x1] %vm4218, %v4211
    %4230 = vst.msk [vmem:[%s4217 + $0xd1] sm:$0x1] %vm4218, %v4212
    %4231 = vst.msk [vmem:[%s4217 + $0xe1] sm:$0x1] %vm4218, %v4213
    %4232 = vst.msk [vmem:[%s4217 + $0xf1] sm:$0x1] %vm4218, %v4214
    %4233 = vst.msk [vmem:[%s4217 + $0x101] sm:$0x1] %vm4218, %v4215
    %4234 = vst.msk [vmem:[%s4217 + $0x111] sm:$0x1] %vm4218, %v4216
    %vm4235 = vcmask 59394
    %4236 = vst.msk [vmem:[%s4217] sm:$0x4] %vm4235, %v4201
    %4237 = vst.msk [vmem:[%s4217 + $0x10] sm:$0x4] %vm4235, %v4202
    %4238 = vst.msk [vmem:[%s4217 + $0x20] sm:$0x4] %vm4235, %v4203
    %4239 = vst.msk [vmem:[%s4217 + $0x30] sm:$0x4] %vm4235, %v4204
    %4240 = vst.msk [vmem:[%s4217 + $0x40] sm:$0x4] %vm4235, %v4205
    %4241 = vst.msk [vmem:[%s4217 + $0x50] sm:$0x4] %vm4235, %v4206
    %4242 = vst.msk [vmem:[%s4217 + $0x60] sm:$0x4] %vm4235, %v4207
    %4243 = vst.msk [vmem:[%s4217 + $0x70] sm:$0x4] %vm4235, %v4208
    %4244 = vst.msk [vmem:[%s4217 + $0xa0] sm:$0x4] %vm4235, %v4209
    %4245 = vst.msk [vmem:[%s4217 + $0xb0] sm:$0x4] %vm4235, %v4210
    %4246 = vst.msk [vmem:[%s4217 + $0xc0] sm:$0x4] %vm4235, %v4211
    %4247 = vst.msk [vmem:[%s4217 + $0xd0] sm:$0x4] %vm4235, %v4212
    %4248 = vst.msk [vmem:[%s4217 + $0xe0] sm:$0x4] %vm4235, %v4213
    %4249 = vst.msk [vmem:[%s4217 + $0xf0] sm:$0x4] %vm4235, %v4214
    %4250 = vst.msk [vmem:[%s4217 + $0x100] sm:$0x4] %vm4235, %v4215
    %4251 = vst.msk [vmem:[%s4217 + $0x110] sm:$0x4] %vm4235, %v4216
    %vm4252 = vcmask 61444
    %4253 = vst.msk [vmem:[%s4217 - $0x1] sm:$0x10] %vm4252, %v4201
    %4254 = vst.msk [vmem:[%s4217 + $0xf] sm:$0x10] %vm4252, %v4202
    %4255 = vst.msk [vmem:[%s4217 + $0x1f] sm:$0x10] %vm4252, %v4203
    %4256 = vst.msk [vmem:[%s4217 + $0x2f] sm:$0x10] %vm4252, %v4204
    %4257 = vst.msk [vmem:[%s4217 + $0x3f] sm:$0x10] %vm4252, %v4205
    %4258 = vst.msk [vmem:[%s4217 + $0x4f] sm:$0x10] %vm4252, %v4206
    %4259 = vst.msk [vmem:[%s4217 + $0x5f] sm:$0x10] %vm4252, %v4207
    %4260 = vst.msk [vmem:[%s4217 + $0x6f] sm:$0x10] %vm4252, %v4208
    %4261 = vst.msk [vmem:[%s4217 + $0x9f] sm:$0x10] %vm4252, %v4209
    %4262 = vst.msk [vmem:[%s4217 + $0xaf] sm:$0x10] %vm4252, %v4210
    %4263 = vst.msk [vmem:[%s4217 + $0xbf] sm:$0x10] %vm4252, %v4211
    %4264 = vst.msk [vmem:[%s4217 + $0xcf] sm:$0x10] %vm4252, %v4212
    %4265 = vst.msk [vmem:[%s4217 + $0xdf] sm:$0x10] %vm4252, %v4213
    %4266 = vst.msk [vmem:[%s4217 + $0xef] sm:$0x10] %vm4252, %v4214
    %4267 = vst.msk [vmem:[%s4217 + $0xff] sm:$0x10] %vm4252, %v4215
    %4268 = vst.msk [vmem:[%s4217 + $0x10f] sm:$0x10] %vm4252, %v4216
    %vm4269 = vcmask 63494
    %4270 = vst.msk [vmem:[%s4217 - $0x2] sm:$0x40] %vm4269, %v4201
    %4271 = vst.msk [vmem:[%s4217 + $0xe] sm:$0x40] %vm4269, %v4202
    %4272 = vst.msk [vmem:[%s4217 + $0x1e] sm:$0x40] %vm4269, %v4203
    %4273 = vst.msk [vmem:[%s4217 + $0x2e] sm:$0x40] %vm4269, %v4204
    %4274 = vst.msk [vmem:[%s4217 + $0x3e] sm:$0x40] %vm4269, %v4205
    %4275 = vst.msk [vmem:[%s4217 + $0x4e] sm:$0x40] %vm4269, %v4206
    %4276 = vst.msk [vmem:[%s4217 + $0x5e] sm:$0x40] %vm4269, %v4207
    %4277 = vst.msk [vmem:[%s4217 + $0x6e] sm:$0x40] %vm4269, %v4208
    %4278 = vst.msk [vmem:[%s4217 + $0x9e] sm:$0x40] %vm4269, %v4209
    %4279 = vst.msk [vmem:[%s4217 + $0xae] sm:$0x40] %vm4269, %v4210
    %4280 = vst.msk [vmem:[%s4217 + $0xbe] sm:$0x40] %vm4269, %v4211
    %4281 = vst.msk [vmem:[%s4217 + $0xce] sm:$0x40] %vm4269, %v4212
    %4282 = vst.msk [vmem:[%s4217 + $0xde] sm:$0x40] %vm4269, %v4213
    %4283 = vst.msk [vmem:[%s4217 + $0xee] sm:$0x40] %vm4269, %v4214
    %4284 = vst.msk [vmem:[%s4217 + $0xfe] sm:$0x40] %vm4269, %v4215
    %4285 = vst.msk [vmem:[%s4217 + $0x10e] sm:$0x40] %vm4269, %v4216
    %v4302 = vrot.slane %v4080, 1
    %v4303 = vrot.slane %v4082, 1
    %v4304 = vrot.slane %v4084, 1
    %v4305 = vrot.slane %v4086, 1
    %v4306 = vrot.slane %v4088, 1
    %v4307 = vrot.slane %v4090, 1
    %v4308 = vrot.slane %v4092, 1
    %v4309 = vrot.slane %v4094, 1
    %v4310 = vrot.slane %v4096, 1
    %v4311 = vrot.slane %v4098, 1
    %v4312 = vrot.slane %v4100, 1
    %v4313 = vrot.slane %v4102, 1
    %v4314 = vrot.slane %v4104, 1
    %v4315 = vrot.slane %v4106, 1
    %v4316 = vrot.slane %v4108, 1
    %v4317 = vrot.slane %v4110, 1
    %v4334 = vmax.f32 %v4080, %v4302
    %v4335 = vmax.f32 %v4082, %v4303
    %v4336 = vmax.f32 %v4084, %v4304
    %v4337 = vmax.f32 %v4086, %v4305
    %v4338 = vmax.f32 %v4088, %v4306
    %v4339 = vmax.f32 %v4090, %v4307
    %v4340 = vmax.f32 %v4092, %v4308
    %v4341 = vmax.f32 %v4094, %v4309
    %v4342 = vmax.f32 %v4096, %v4310
    %v4343 = vmax.f32 %v4098, %v4311
    %v4344 = vmax.f32 %v4100, %v4312
    %v4345 = vmax.f32 %v4102, %v4313
    %v4346 = vmax.f32 %v4104, %v4314
    %v4347 = vmax.f32 %v4106, %v4315
    %v4348 = vmax.f32 %v4108, %v4316
    %v4349 = vmax.f32 %v4110, %v4317
    %4350 = vst.msk [vmem:[%s4217 + $0x5] sm:$0x1] %vm4218, %v4334
    %4351 = vst.msk [vmem:[%s4217 + $0x15] sm:$0x1] %vm4218, %v4335
    %4352 = vst.msk [vmem:[%s4217 + $0x25] sm:$0x1] %vm4218, %v4336
    %4353 = vst.msk [vmem:[%s4217 + $0x35] sm:$0x1] %vm4218, %v4337
    %4354 = vst.msk [vmem:[%s4217 + $0x45] sm:$0x1] %vm4218, %v4338
    %4355 = vst.msk [vmem:[%s4217 + $0x55] sm:$0x1] %vm4218, %v4339
    %4356 = vst.msk [vmem:[%s4217 + $0x65] sm:$0x1] %vm4218, %v4340
    %4357 = vst.msk [vmem:[%s4217 + $0x75] sm:$0x1] %vm4218, %v4341
    %4358 = vst.msk [vmem:[%s4217 + $0xa5] sm:$0x1] %vm4218, %v4342
    %4359 = vst.msk [vmem:[%s4217 + $0xb5] sm:$0x1] %vm4218, %v4343
    %4360 = vst.msk [vmem:[%s4217 + $0xc5] sm:$0x1] %vm4218, %v4344
    %4361 = vst.msk [vmem:[%s4217 + $0xd5] sm:$0x1] %vm4218, %v4345
    %4362 = vst.msk [vmem:[%s4217 + $0xe5] sm:$0x1] %vm4218, %v4346
    %4363 = vst.msk [vmem:[%s4217 + $0xf5] sm:$0x1] %vm4218, %v4347
    %4364 = vst.msk [vmem:[%s4217 + $0x105] sm:$0x1] %vm4218, %v4348
    %4365 = vst.msk [vmem:[%s4217 + $0x115] sm:$0x1] %vm4218, %v4349
    %4366 = vst.msk [vmem:[%s4217 + $0x4] sm:$0x4] %vm4235, %v4334
    %4367 = vst.msk [vmem:[%s4217 + $0x14] sm:$0x4] %vm4235, %v4335
    %4368 = vst.msk [vmem:[%s4217 + $0x24] sm:$0x4] %vm4235, %v4336
    %4369 = vst.msk [vmem:[%s4217 + $0x34] sm:$0x4] %vm4235, %v4337
    %4370 = vst.msk [vmem:[%s4217 + $0x44] sm:$0x4] %vm4235, %v4338
    %4371 = vst.msk [vmem:[%s4217 + $0x54] sm:$0x4] %vm4235, %v4339
    %4372 = vst.msk [vmem:[%s4217 + $0x64] sm:$0x4] %vm4235, %v4340
    %4373 = vst.msk [vmem:[%s4217 + $0x74] sm:$0x4] %vm4235, %v4341
    %4374 = vst.msk [vmem:[%s4217 + $0xa4] sm:$0x4] %vm4235, %v4342
    %4375 = vst.msk [vmem:[%s4217 + $0xb4] sm:$0x4] %vm4235, %v4343
    %4376 = vst.msk [vmem:[%s4217 + $0xc4] sm:$0x4] %vm4235, %v4344
    %4377 = vst.msk [vmem:[%s4217 + $0xd4] sm:$0x4] %vm4235, %v4345
    %4378 = vst.msk [vmem:[%s4217 + $0xe4] sm:$0x4] %vm4235, %v4346
    %4379 = vst.msk [vmem:[%s4217 + $0xf4] sm:$0x4] %vm4235, %v4347
    %4380 = vst.msk [vmem:[%s4217 + $0x104] sm:$0x4] %vm4235, %v4348
    %4381 = vst.msk [vmem:[%s4217 + $0x114] sm:$0x4] %vm4235, %v4349
    %4382 = vst.msk [vmem:[%s4217 + $0x3] sm:$0x10] %vm4252, %v4334
    %4383 = vst.msk [vmem:[%s4217 + $0x13] sm:$0x10] %vm4252, %v4335
    %4384 = vst.msk [vmem:[%s4217 + $0x23] sm:$0x10] %vm4252, %v4336
    %4385 = vst.msk [vmem:[%s4217 + $0x33] sm:$0x10] %vm4252, %v4337
    %4386 = vst.msk [vmem:[%s4217 + $0x43] sm:$0x10] %vm4252, %v4338
    %4387 = vst.msk [vmem:[%s4217 + $0x53] sm:$0x10] %vm4252, %v4339
    %4388 = vst.msk [vmem:[%s4217 + $0x63] sm:$0x10] %vm4252, %v4340
    %4389 = vst.msk [vmem:[%s4217 + $0x73] sm:$0x10] %vm4252, %v4341
    %4390 = vst.msk [vmem:[%s4217 + $0xa3] sm:$0x10] %vm4252, %v4342
    %4391 = vst.msk [vmem:[%s4217 + $0xb3] sm:$0x10] %vm4252, %v4343
    %4392 = vst.msk [vmem:[%s4217 + $0xc3] sm:$0x10] %vm4252, %v4344
    %4393 = vst.msk [vmem:[%s4217 + $0xd3] sm:$0x10] %vm4252, %v4345
    %4394 = vst.msk [vmem:[%s4217 + $0xe3] sm:$0x10] %vm4252, %v4346
    %4395 = vst.msk [vmem:[%s4217 + $0xf3] sm:$0x10] %vm4252, %v4347
    %4396 = vst.msk [vmem:[%s4217 + $0x103] sm:$0x10] %vm4252, %v4348
    %4397 = vst.msk [vmem:[%s4217 + $0x113] sm:$0x10] %vm4252, %v4349
    %4398 = vst.msk [vmem:[%s4217 + $0x2] sm:$0x40] %vm4269, %v4334
    %4399 = vst.msk [vmem:[%s4217 + $0x12] sm:$0x40] %vm4269, %v4335
    %4400 = vst.msk [vmem:[%s4217 + $0x22] sm:$0x40] %vm4269, %v4336
    %4401 = vst.msk [vmem:[%s4217 + $0x32] sm:$0x40] %vm4269, %v4337
    %4402 = vst.msk [vmem:[%s4217 + $0x42] sm:$0x40] %vm4269, %v4338
    %4403 = vst.msk [vmem:[%s4217 + $0x52] sm:$0x40] %vm4269, %v4339
    %4404 = vst.msk [vmem:[%s4217 + $0x62] sm:$0x40] %vm4269, %v4340
    %4405 = vst.msk [vmem:[%s4217 + $0x72] sm:$0x40] %vm4269, %v4341
    %4406 = vst.msk [vmem:[%s4217 + $0xa2] sm:$0x40] %vm4269, %v4342
    %4407 = vst.msk [vmem:[%s4217 + $0xb2] sm:$0x40] %vm4269, %v4343
    %4408 = vst.msk [vmem:[%s4217 + $0xc2] sm:$0x40] %vm4269, %v4344
    %4409 = vst.msk [vmem:[%s4217 + $0xd2] sm:$0x40] %vm4269, %v4345
    %4410 = vst.msk [vmem:[%s4217 + $0xe2] sm:$0x40] %vm4269, %v4346
    %4411 = vst.msk [vmem:[%s4217 + $0xf2] sm:$0x40] %vm4269, %v4347
    %4412 = vst.msk [vmem:[%s4217 + $0x102] sm:$0x40] %vm4269, %v4348
    %4413 = vst.msk [vmem:[%s4217 + $0x112] sm:$0x40] %vm4269, %v4349
    %v4414 = vld [vmem:[#allocation3] sm:$0xff]
    %v4415 = vld [vmem:[#allocation3 + $0x10] sm:$0xff]
    %v4416 = vld [vmem:[#allocation3 + $0x20] sm:$0xff]
    %v4417 = vld [vmem:[#allocation3 + $0x30] sm:$0xff]
    %v4418 = vld [vmem:[#allocation3 + $0x40] sm:$0xff]
    %v4419 = vld [vmem:[#allocation3 + $0x50] sm:$0xff]
    %v4420 = vld [vmem:[#allocation3 + $0x60] sm:$0xff]
    %v4421 = vld [vmem:[#allocation3 + $0x70] sm:$0xff]
    %v4422 = vld [vmem:[#allocation3 + $0xa0] sm:$0xff]
    %v4423 = vld [vmem:[#allocation3 + $0xb0] sm:$0xff]
    %v4424 = vld [vmem:[#allocation3 + $0xc0] sm:$0xff]
    %v4425 = vld [vmem:[#allocation3 + $0xd0] sm:$0xff]
    %v4426 = vld [vmem:[#allocation3 + $0xe0] sm:$0xff]
    %v4427 = vld [vmem:[#allocation3 + $0xf0] sm:$0xff]
    %v4428 = vld [vmem:[#allocation3 + $0x100] sm:$0xff]
    %v4429 = vld [vmem:[#allocation3 + $0x110] sm:$0xff]
    %v4430 = vld [vmem:[#allocation3 + $0x1] sm:$0xff]
    %v4431 = vld [vmem:[#allocation3 + $0x11] sm:$0xff]
    %v4432 = vld [vmem:[#allocation3 + $0x21] sm:$0xff]
    %v4433 = vld [vmem:[#allocation3 + $0x31] sm:$0xff]
    %v4434 = vld [vmem:[#allocation3 + $0x41] sm:$0xff]
    %v4435 = vld [vmem:[#allocation3 + $0x51] sm:$0xff]
    %v4436 = vld [vmem:[#allocation3 + $0x61] sm:$0xff]
    %v4437 = vld [vmem:[#allocation3 + $0x71] sm:$0xff]
    %v4438 = vld [vmem:[#allocation3 + $0xa1] sm:$0xff]
    %v4439 = vld [vmem:[#allocation3 + $0xb1] sm:$0xff]
    %v4440 = vld [vmem:[#allocation3 + $0xc1] sm:$0xff]
    %v4441 = vld [vmem:[#allocation3 + $0xd1] sm:$0xff]
    %v4442 = vld [vmem:[#allocation3 + $0xe1] sm:$0xff]
    %v4443 = vld [vmem:[#allocation3 + $0xf1] sm:$0xff]
    %v4444 = vld [vmem:[#allocation3 + $0x101] sm:$0xff]
    %v4445 = vld [vmem:[#allocation3 + $0x111] sm:$0xff]
    %v4446 = vld [vmem:[#allocation3 + $0x2] sm:$0xff]
    %v4447 = vld [vmem:[#allocation3 + $0x12] sm:$0xff]
    %v4448 = vld [vmem:[#allocation3 + $0x22] sm:$0xff]
    %v4449 = vld [vmem:[#allocation3 + $0x32] sm:$0xff]
    %v4450 = vld [vmem:[#allocation3 + $0x42] sm:$0xff]
    %v4451 = vld [vmem:[#allocation3 + $0x52] sm:$0xff]
    %v4452 = vld [vmem:[#allocation3 + $0x62] sm:$0xff]
    %v4453 = vld [vmem:[#allocation3 + $0x72] sm:$0xff]
    %v4454 = vld [vmem:[#allocation3 + $0xa2] sm:$0xff]
    %v4455 = vld [vmem:[#allocation3 + $0xb2] sm:$0xff]
    %v4456 = vld [vmem:[#allocation3 + $0xc2] sm:$0xff]
    %v4457 = vld [vmem:[#allocation3 + $0xd2] sm:$0xff]
    %v4458 = vld [vmem:[#allocation3 + $0xe2] sm:$0xff]
    %v4459 = vld [vmem:[#allocation3 + $0xf2] sm:$0xff]
    %v4460 = vld [vmem:[#allocation3 + $0x102] sm:$0xff]
    %v4461 = vld [vmem:[#allocation3 + $0x112] sm:$0xff]
    %v4462 = vld [vmem:[%s4217] sm:$0xff]
    %v4463 = vld [vmem:[%s4217 + $0x10] sm:$0xff]
    %v4464 = vld [vmem:[%s4217 + $0x20] sm:$0xff]
    %v4465 = vld [vmem:[%s4217 + $0x30] sm:$0xff]
    %v4466 = vld [vmem:[%s4217 + $0x40] sm:$0xff]
    %v4467 = vld [vmem:[%s4217 + $0x50] sm:$0xff]
    %v4468 = vld [vmem:[%s4217 + $0x60] sm:$0xff]
    %v4469 = vld [vmem:[%s4217 + $0x70] sm:$0xff]
    %v4470 = vld [vmem:[%s4217 + $0xa0] sm:$0xff]
    %v4471 = vld [vmem:[%s4217 + $0xb0] sm:$0xff]
    %v4472 = vld [vmem:[%s4217 + $0xc0] sm:$0xff]
    %v4473 = vld [vmem:[%s4217 + $0xd0] sm:$0xff]
    %v4474 = vld [vmem:[%s4217 + $0xe0] sm:$0xff]
    %v4475 = vld [vmem:[%s4217 + $0xf0] sm:$0xff]
    %v4476 = vld [vmem:[%s4217 + $0x100] sm:$0xff]
    %v4477 = vld [vmem:[%s4217 + $0x110] sm:$0xff]
    %v4478 = vld [vmem:[%s4217 + $0x1] sm:$0xff]
    %v4479 = vld [vmem:[%s4217 + $0x11] sm:$0xff]
    %v4480 = vld [vmem:[%s4217 + $0x21] sm:$0xff]
    %v4481 = vld [vmem:[%s4217 + $0x31] sm:$0xff]
    %v4482 = vld [vmem:[%s4217 + $0x41] sm:$0xff]
    %v4483 = vld [vmem:[%s4217 + $0x51] sm:$0xff]
    %v4484 = vld [vmem:[%s4217 + $0x61] sm:$0xff]
    %v4485 = vld [vmem:[%s4217 + $0x71] sm:$0xff]
    %v4486 = vld [vmem:[%s4217 + $0xa1] sm:$0xff]
    %v4487 = vld [vmem:[%s4217 + $0xb1] sm:$0xff]
    %v4488 = vld [vmem:[%s4217 + $0xc1] sm:$0xff]
    %v4489 = vld [vmem:[%s4217 + $0xd1] sm:$0xff]
    %v4490 = vld [vmem:[%s4217 + $0xe1] sm:$0xff]
    %v4491 = vld [vmem:[%s4217 + $0xf1] sm:$0xff]
    %v4492 = vld [vmem:[%s4217 + $0x101] sm:$0xff]
    %v4493 = vld [vmem:[%s4217 + $0x111] sm:$0xff]
    %v4494 = vld [vmem:[%s4217 + $0x2] sm:$0xff]
    %v4495 = vld [vmem:[%s4217 + $0x12] sm:$0xff]
    %v4496 = vld [vmem:[%s4217 + $0x22] sm:$0xff]
    %v4497 = vld [vmem:[%s4217 + $0x32] sm:$0xff]
    %v4498 = vld [vmem:[%s4217 + $0x42] sm:$0xff]
    %v4499 = vld [vmem:[%s4217 + $0x52] sm:$0xff]
    %v4500 = vld [vmem:[%s4217 + $0x62] sm:$0xff]
    %v4501 = vld [vmem:[%s4217 + $0x72] sm:$0xff]
    %v4502 = vld [vmem:[%s4217 + $0xa2] sm:$0xff]
    %v4503 = vld [vmem:[%s4217 + $0xb2] sm:$0xff]
    %v4504 = vld [vmem:[%s4217 + $0xc2] sm:$0xff]
    %v4505 = vld [vmem:[%s4217 + $0xd2] sm:$0xff]
    %v4506 = vld [vmem:[%s4217 + $0xe2] sm:$0xff]
    %v4507 = vld [vmem:[%s4217 + $0xf2] sm:$0xff]
    %v4508 = vld [vmem:[%s4217 + $0x102] sm:$0xff]
    %v4509 = vld [vmem:[%s4217 + $0x112] sm:$0xff]
    %s4510 = scalar_lea.vmem [#allocation3], 32
    %v4511 = vld [vmem:[%s4510] sm:$0xff]
    %v4512 = vld [vmem:[%s4510 + $0x10] sm:$0xff]
    %v4513 = vld [vmem:[%s4510 + $0x20] sm:$0xff]
    %v4514 = vld [vmem:[%s4510 + $0x30] sm:$0xff]
    %v4515 = vld [vmem:[%s4510 + $0x40] sm:$0xff]
    %v4516 = vld [vmem:[%s4510 + $0x50] sm:$0xff]
    %v4517 = vld [vmem:[%s4510 + $0x60] sm:$0xff]
    %v4518 = vld [vmem:[%s4510 + $0x70] sm:$0xff]
    %v4519 = vld [vmem:[%s4510 + $0xa0] sm:$0xff]
    %v4520 = vld [vmem:[%s4510 + $0xb0] sm:$0xff]
    %v4521 = vld [vmem:[%s4510 + $0xc0] sm:$0xff]
    %v4522 = vld [vmem:[%s4510 + $0xd0] sm:$0xff]
    %v4523 = vld [vmem:[%s4510 + $0xe0] sm:$0xff]
    %v4524 = vld [vmem:[%s4510 + $0xf0] sm:$0xff]
    %v4525 = vld [vmem:[%s4510 + $0x100] sm:$0xff]
    %v4526 = vld [vmem:[%s4510 + $0x110] sm:$0xff]
    %v4527 = vld [vmem:[%s4510 + $0x1] sm:$0xff]
    %v4528 = vld [vmem:[%s4510 + $0x11] sm:$0xff]
    %v4529 = vld [vmem:[%s4510 + $0x21] sm:$0xff]
    %v4530 = vld [vmem:[%s4510 + $0x31] sm:$0xff]
    %v4531 = vld [vmem:[%s4510 + $0x41] sm:$0xff]
    %v4532 = vld [vmem:[%s4510 + $0x51] sm:$0xff]
    %v4533 = vld [vmem:[%s4510 + $0x61] sm:$0xff]
    %v4534 = vld [vmem:[%s4510 + $0x71] sm:$0xff]
    %v4535 = vld [vmem:[%s4510 + $0xa1] sm:$0xff]
    %v4536 = vld [vmem:[%s4510 + $0xb1] sm:$0xff]
    %v4537 = vld [vmem:[%s4510 + $0xc1] sm:$0xff]
    %v4538 = vld [vmem:[%s4510 + $0xd1] sm:$0xff]
    %v4539 = vld [vmem:[%s4510 + $0xe1] sm:$0xff]
    %v4540 = vld [vmem:[%s4510 + $0xf1] sm:$0xff]
    %v4541 = vld [vmem:[%s4510 + $0x101] sm:$0xff]
    %v4542 = vld [vmem:[%s4510 + $0x111] sm:$0xff]
    %v4543 = vld [vmem:[%s4510 + $0x2] sm:$0xff]
    %v4544 = vld [vmem:[%s4510 + $0x12] sm:$0xff]
    %v4545 = vld [vmem:[%s4510 + $0x22] sm:$0xff]
    %v4546 = vld [vmem:[%s4510 + $0x32] sm:$0xff]
    %v4547 = vld [vmem:[%s4510 + $0x42] sm:$0xff]
    %v4548 = vld [vmem:[%s4510 + $0x52] sm:$0xff]
    %v4549 = vld [vmem:[%s4510 + $0x62] sm:$0xff]
    %v4550 = vld [vmem:[%s4510 + $0x72] sm:$0xff]
    %v4551 = vld [vmem:[%s4510 + $0xa2] sm:$0xff]
    %v4552 = vld [vmem:[%s4510 + $0xb2] sm:$0xff]
    %v4553 = vld [vmem:[%s4510 + $0xc2] sm:$0xff]
    %v4554 = vld [vmem:[%s4510 + $0xd2] sm:$0xff]
    %v4555 = vld [vmem:[%s4510 + $0xe2] sm:$0xff]
    %v4556 = vld [vmem:[%s4510 + $0xf2] sm:$0xff]
    %v4557 = vld [vmem:[%s4510 + $0x102] sm:$0xff]
    %v4558 = vld [vmem:[%s4510 + $0x112] sm:$0xff]
    %4575 = vrot.lane.b32.xlu0 %v4430, 8
    %v4576 = vpop.permute.xlu0 %4575
    %4577 = vrot.lane.b32.xlu0 %v4431, 8
    %v4578 = vpop.permute.xlu0 %4577
    %4579 = vrot.lane.b32.xlu0 %v4432, 8
    %v4580 = vpop.permute.xlu0 %4579
    %4581 = vrot.lane.b32.xlu0 %v4433, 8
    %v4582 = vpop.permute.xlu0 %4581
    %4583 = vrot.lane.b32.xlu0 %v4434, 8
    %v4584 = vpop.permute.xlu0 %4583
    %4585 = vrot.lane.b32.xlu0 %v4435, 8
    %v4586 = vpop.permute.xlu0 %4585
    %4587 = vrot.lane.b32.xlu0 %v4436, 8
    %v4588 = vpop.permute.xlu0 %4587
    %4589 = vrot.lane.b32.xlu0 %v4437, 8
    %v4590 = vpop.permute.xlu0 %4589
    %4591 = vrot.lane.b32.xlu0 %v4438, 8
    %v4592 = vpop.permute.xlu0 %4591
    %4593 = vrot.lane.b32.xlu0 %v4439, 8
    %v4594 = vpop.permute.xlu0 %4593
    %4595 = vrot.lane.b32.xlu0 %v4440, 8
    %v4596 = vpop.permute.xlu0 %4595
    %4597 = vrot.lane.b32.xlu0 %v4441, 8
    %v4598 = vpop.permute.xlu0 %4597
    %4599 = vrot.lane.b32.xlu0 %v4442, 8
    %v4600 = vpop.permute.xlu0 %4599
    %4601 = vrot.lane.b32.xlu0 %v4443, 8
    %v4602 = vpop.permute.xlu0 %4601
    %4603 = vrot.lane.b32.xlu0 %v4444, 8
    %v4604 = vpop.permute.xlu0 %4603
    %4605 = vrot.lane.b32.xlu0 %v4445, 8
    %v4606 = vpop.permute.xlu0 %4605
    %4639 = vrot.lane.b32.xlu0 %v4446, 16
    %v4640 = vpop.permute.xlu0 %4639
    %4641 = vrot.lane.b32.xlu0 %v4447, 16
    %v4642 = vpop.permute.xlu0 %4641
    %4643 = vrot.lane.b32.xlu0 %v4448, 16
    %v4644 = vpop.permute.xlu0 %4643
    %4645 = vrot.lane.b32.xlu0 %v4449, 16
    %v4646 = vpop.permute.xlu0 %4645
    %4647 = vrot.lane.b32.xlu0 %v4450, 16
    %v4648 = vpop.permute.xlu0 %4647
    %4649 = vrot.lane.b32.xlu0 %v4451, 16
    %v4650 = vpop.permute.xlu0 %4649
    %4651 = vrot.lane.b32.xlu0 %v4452, 16
    %v4652 = vpop.permute.xlu0 %4651
    %4653 = vrot.lane.b32.xlu0 %v4453, 16
    %v4654 = vpop.permute.xlu0 %4653
    %4655 = vrot.lane.b32.xlu0 %v4454, 16
    %v4656 = vpop.permute.xlu0 %4655
    %4657 = vrot.lane.b32.xlu0 %v4455, 16
    %v4658 = vpop.permute.xlu0 %4657
    %4659 = vrot.lane.b32.xlu0 %v4456, 16
    %v4660 = vpop.permute.xlu0 %4659
    %4661 = vrot.lane.b32.xlu0 %v4457, 16
    %v4662 = vpop.permute.xlu0 %4661
    %4663 = vrot.lane.b32.xlu0 %v4458, 16
    %v4664 = vpop.permute.xlu0 %4663
    %4665 = vrot.lane.b32.xlu0 %v4459, 16
    %v4666 = vpop.permute.xlu0 %4665
    %4667 = vrot.lane.b32.xlu0 %v4460, 16
    %v4668 = vpop.permute.xlu0 %4667
    %4669 = vrot.lane.b32.xlu0 %v4461, 16
    %v4670 = vpop.permute.xlu0 %4669
    %4703 = vrot.lane.b32.xlu0 %v4462, 24
    %v4704 = vpop.permute.xlu0 %4703
    %4705 = vrot.lane.b32.xlu0 %v4463, 24
    %v4706 = vpop.permute.xlu0 %4705
    %4707 = vrot.lane.b32.xlu0 %v4464, 24
    %v4708 = vpop.permute.xlu0 %4707
    %4709 = vrot.lane.b32.xlu0 %v4465, 24
    %v4710 = vpop.permute.xlu0 %4709
    %4711 = vrot.lane.b32.xlu0 %v4466, 24
    %v4712 = vpop.permute.xlu0 %4711
    %4713 = vrot.lane.b32.xlu0 %v4467, 24
    %v4714 = vpop.permute.xlu0 %4713
    %4715 = vrot.lane.b32.xlu0 %v4468, 24
    %v4716 = vpop.permute.xlu0 %4715
    %4717 = vrot.lane.b32.xlu0 %v4469, 24
    %v4718 = vpop.permute.xlu0 %4717
    %4719 = vrot.lane.b32.xlu0 %v4470, 24
    %v4720 = vpop.permute.xlu0 %4719
    %4721 = vrot.lane.b32.xlu0 %v4471, 24
    %v4722 = vpop.permute.xlu0 %4721
    %4723 = vrot.lane.b32.xlu0 %v4472, 24
    %v4724 = vpop.permute.xlu0 %4723
    %4725 = vrot.lane.b32.xlu0 %v4473, 24
    %v4726 = vpop.permute.xlu0 %4725
    %4727 = vrot.lane.b32.xlu0 %v4474, 24
    %v4728 = vpop.permute.xlu0 %4727
    %4729 = vrot.lane.b32.xlu0 %v4475, 24
    %v4730 = vpop.permute.xlu0 %4729
    %4731 = vrot.lane.b32.xlu0 %v4476, 24
    %v4732 = vpop.permute.xlu0 %4731
    %4733 = vrot.lane.b32.xlu0 %v4477, 24
    %v4734 = vpop.permute.xlu0 %4733
    %4767 = vrot.lane.b32.xlu0 %v4478, 32
    %v4768 = vpop.permute.xlu0 %4767
    %4769 = vrot.lane.b32.xlu0 %v4479, 32
    %v4770 = vpop.permute.xlu0 %4769
    %4771 = vrot.lane.b32.xlu0 %v4480, 32
    %v4772 = vpop.permute.xlu0 %4771
    %4773 = vrot.lane.b32.xlu0 %v4481, 32
    %v4774 = vpop.permute.xlu0 %4773
    %4775 = vrot.lane.b32.xlu0 %v4482, 32
    %v4776 = vpop.permute.xlu0 %4775
    %4777 = vrot.lane.b32.xlu0 %v4483, 32
    %v4778 = vpop.permute.xlu0 %4777
    %4779 = vrot.lane.b32.xlu0 %v4484, 32
    %v4780 = vpop.permute.xlu0 %4779
    %4781 = vrot.lane.b32.xlu0 %v4485, 32
    %v4782 = vpop.permute.xlu0 %4781
    %4783 = vrot.lane.b32.xlu0 %v4486, 32
    %v4784 = vpop.permute.xlu0 %4783
    %4785 = vrot.lane.b32.xlu0 %v4487, 32
    %v4786 = vpop.permute.xlu0 %4785
    %4787 = vrot.lane.b32.xlu0 %v4488, 32
    %v4788 = vpop.permute.xlu0 %4787
    %4789 = vrot.lane.b32.xlu0 %v4489, 32
    %v4790 = vpop.permute.xlu0 %4789
    %4791 = vrot.lane.b32.xlu0 %v4490, 32
    %v4792 = vpop.permute.xlu0 %4791
    %4793 = vrot.lane.b32.xlu0 %v4491, 32
    %v4794 = vpop.permute.xlu0 %4793
    %4795 = vrot.lane.b32.xlu0 %v4492, 32
    %v4796 = vpop.permute.xlu0 %4795
    %4797 = vrot.lane.b32.xlu0 %v4493, 32
    %v4798 = vpop.permute.xlu0 %4797
    %4831 = vrot.lane.b32.xlu0 %v4494, 40
    %v4832 = vpop.permute.xlu0 %4831
    %4833 = vrot.lane.b32.xlu0 %v4495, 40
    %v4834 = vpop.permute.xlu0 %4833
    %4835 = vrot.lane.b32.xlu0 %v4496, 40
    %v4836 = vpop.permute.xlu0 %4835
    %4837 = vrot.lane.b32.xlu0 %v4497, 40
    %v4838 = vpop.permute.xlu0 %4837
    %4839 = vrot.lane.b32.xlu0 %v4498, 40
    %v4840 = vpop.permute.xlu0 %4839
    %4841 = vrot.lane.b32.xlu0 %v4499, 40
    %v4842 = vpop.permute.xlu0 %4841
    %4843 = vrot.lane.b32.xlu0 %v4500, 40
    %v4844 = vpop.permute.xlu0 %4843
    %4845 = vrot.lane.b32.xlu0 %v4501, 40
    %v4846 = vpop.permute.xlu0 %4845
    %4847 = vrot.lane.b32.xlu0 %v4502, 40
    %v4848 = vpop.permute.xlu0 %4847
    %4849 = vrot.lane.b32.xlu0 %v4503, 40
    %v4850 = vpop.permute.xlu0 %4849
    %4851 = vrot.lane.b32.xlu0 %v4504, 40
    %v4852 = vpop.permute.xlu0 %4851
    %4853 = vrot.lane.b32.xlu0 %v4505, 40
    %v4854 = vpop.permute.xlu0 %4853
    %4855 = vrot.lane.b32.xlu0 %v4506, 40
    %v4856 = vpop.permute.xlu0 %4855
    %4857 = vrot.lane.b32.xlu0 %v4507, 40
    %v4858 = vpop.permute.xlu0 %4857
    %4859 = vrot.lane.b32.xlu0 %v4508, 40
    %v4860 = vpop.permute.xlu0 %4859
    %4861 = vrot.lane.b32.xlu0 %v4509, 40
    %v4862 = vpop.permute.xlu0 %4861
    %4895 = vrot.lane.b32.xlu0 %v4511, 48
    %v4896 = vpop.permute.xlu0 %4895
    %4897 = vrot.lane.b32.xlu0 %v4512, 48
    %v4898 = vpop.permute.xlu0 %4897
    %4899 = vrot.lane.b32.xlu0 %v4513, 48
    %v4900 = vpop.permute.xlu0 %4899
    %4901 = vrot.lane.b32.xlu0 %v4514, 48
    %v4902 = vpop.permute.xlu0 %4901
    %4903 = vrot.lane.b32.xlu0 %v4515, 48
    %v4904 = vpop.permute.xlu0 %4903
    %4905 = vrot.lane.b32.xlu0 %v4516, 48
    %v4906 = vpop.permute.xlu0 %4905
    %4907 = vrot.lane.b32.xlu0 %v4517, 48
    %v4908 = vpop.permute.xlu0 %4907
    %4909 = vrot.lane.b32.xlu0 %v4518, 48
    %v4910 = vpop.permute.xlu0 %4909
    %4911 = vrot.lane.b32.xlu0 %v4519, 48
    %v4912 = vpop.permute.xlu0 %4911
    %4913 = vrot.lane.b32.xlu0 %v4520, 48
    %v4914 = vpop.permute.xlu0 %4913
    %4915 = vrot.lane.b32.xlu0 %v4521, 48
    %v4916 = vpop.permute.xlu0 %4915
    %4917 = vrot.lane.b32.xlu0 %v4522, 48
    %v4918 = vpop.permute.xlu0 %4917
    %4919 = vrot.lane.b32.xlu0 %v4523, 48
    %v4920 = vpop.permute.xlu0 %4919
    %4921 = vrot.lane.b32.xlu0 %v4524, 48
    %v4922 = vpop.permute.xlu0 %4921
    %4923 = vrot.lane.b32.xlu0 %v4525, 48
    %v4924 = vpop.permute.xlu0 %4923
    %4925 = vrot.lane.b32.xlu0 %v4526, 48
    %v4926 = vpop.permute.xlu0 %4925
    %4959 = vrot.lane.b32.xlu0 %v4527, 56
    %v4960 = vpop.permute.xlu0 %4959
    %4961 = vrot.lane.b32.xlu0 %v4528, 56
    %v4962 = vpop.permute.xlu0 %4961
    %4963 = vrot.lane.b32.xlu0 %v4529, 56
    %v4964 = vpop.permute.xlu0 %4963
    %4965 = vrot.lane.b32.xlu0 %v4530, 56
    %v4966 = vpop.permute.xlu0 %4965
    %4967 = vrot.lane.b32.xlu0 %v4531, 56
    %v4968 = vpop.permute.xlu0 %4967
    %4969 = vrot.lane.b32.xlu0 %v4532, 56
    %v4970 = vpop.permute.xlu0 %4969
    %4971 = vrot.lane.b32.xlu0 %v4533, 56
    %v4972 = vpop.permute.xlu0 %4971
    %4973 = vrot.lane.b32.xlu0 %v4534, 56
    %v4974 = vpop.permute.xlu0 %4973
    %4975 = vrot.lane.b32.xlu0 %v4535, 56
    %v4976 = vpop.permute.xlu0 %4975
    %4977 = vrot.lane.b32.xlu0 %v4536, 56
    %v4978 = vpop.permute.xlu0 %4977
    %4979 = vrot.lane.b32.xlu0 %v4537, 56
    %v4980 = vpop.permute.xlu0 %4979
    %4981 = vrot.lane.b32.xlu0 %v4538, 56
    %v4982 = vpop.permute.xlu0 %4981
    %4983 = vrot.lane.b32.xlu0 %v4539, 56
    %v4984 = vpop.permute.xlu0 %4983
    %4985 = vrot.lane.b32.xlu0 %v4540, 56
    %v4986 = vpop.permute.xlu0 %4985
    %4987 = vrot.lane.b32.xlu0 %v4541, 56
    %v4988 = vpop.permute.xlu0 %4987
    %4989 = vrot.lane.b32.xlu0 %v4542, 56
    %v4990 = vpop.permute.xlu0 %4989
    %5023 = vrot.lane.b32.xlu0 %v4543, 64
    %v5024 = vpop.permute.xlu0 %5023
    %5025 = vrot.lane.b32.xlu0 %v4544, 64
    %v5026 = vpop.permute.xlu0 %5025
    %5027 = vrot.lane.b32.xlu0 %v4545, 64
    %v5028 = vpop.permute.xlu0 %5027
    %5029 = vrot.lane.b32.xlu0 %v4546, 64
    %v5030 = vpop.permute.xlu0 %5029
    %5031 = vrot.lane.b32.xlu0 %v4547, 64
    %v5032 = vpop.permute.xlu0 %5031
    %5033 = vrot.lane.b32.xlu0 %v4548, 64
    %v5034 = vpop.permute.xlu0 %5033
    %5035 = vrot.lane.b32.xlu0 %v4549, 64
    %v5036 = vpop.permute.xlu0 %5035
    %5037 = vrot.lane.b32.xlu0 %v4550, 64
    %v5038 = vpop.permute.xlu0 %5037
    %5039 = vrot.lane.b32.xlu0 %v4551, 64
    %v5040 = vpop.permute.xlu0 %5039
    %5041 = vrot.lane.b32.xlu0 %v4552, 64
    %v5042 = vpop.permute.xlu0 %5041
    %5043 = vrot.lane.b32.xlu0 %v4553, 64
    %v5044 = vpop.permute.xlu0 %5043
    %5045 = vrot.lane.b32.xlu0 %v4554, 64
    %v5046 = vpop.permute.xlu0 %5045
    %5047 = vrot.lane.b32.xlu0 %v4555, 64
    %v5048 = vpop.permute.xlu0 %5047
    %5049 = vrot.lane.b32.xlu0 %v4556, 64
    %v5050 = vpop.permute.xlu0 %5049
    %5051 = vrot.lane.b32.xlu0 %v4557, 64
    %v5052 = vpop.permute.xlu0 %5051
    %5053 = vrot.lane.b32.xlu0 %v4558, 64
    %v5054 = vpop.permute.xlu0 %5053
    %v5071 = vsel %vm4111, %v4414, %v4576
    %v5072 = vsel %vm4111, %v4415, %v4578
    %v5073 = vsel %vm4111, %v4416, %v4580
    %v5074 = vsel %vm4111, %v4417, %v4582
    %v5075 = vsel %vm4111, %v4418, %v4584
    %v5076 = vsel %vm4111, %v4419, %v4586
    %v5077 = vsel %vm4111, %v4420, %v4588
    %v5078 = vsel %vm4111, %v4421, %v4590
    %v5079 = vsel %vm4111, %v4422, %v4592
    %v5080 = vsel %vm4111, %v4423, %v4594
    %v5081 = vsel %vm4111, %v4424, %v4596
    %v5082 = vsel %vm4111, %v4425, %v4598
    %v5083 = vsel %vm4111, %v4426, %v4600
    %v5084 = vsel %vm4111, %v4427, %v4602
    %v5085 = vsel %vm4111, %v4428, %v4604
    %v5086 = vsel %vm4111, %v4429, %v4606
    %vm5087 = vcmask 130048
    %v5088 = vsel %vm5087, %v5071, %v4640
    %v5089 = vsel %vm5087, %v5072, %v4642
    %v5090 = vsel %vm5087, %v5073, %v4644
    %v5091 = vsel %vm5087, %v5074, %v4646
    %v5092 = vsel %vm5087, %v5075, %v4648
    %v5093 = vsel %vm5087, %v5076, %v4650
    %v5094 = vsel %vm5087, %v5077, %v4652
    %v5095 = vsel %vm5087, %v5078, %v4654
    %v5096 = vsel %vm5087, %v5079, %v4656
    %v5097 = vsel %vm5087, %v5080, %v4658
    %v5098 = vsel %vm5087, %v5081, %v4660
    %v5099 = vsel %vm5087, %v5082, %v4662
    %v5100 = vsel %vm5087, %v5083, %v4664
    %v5101 = vsel %vm5087, %v5084, %v4666
    %v5102 = vsel %vm5087, %v5085, %v4668
    %v5103 = vsel %vm5087, %v5086, %v4670
    %v5104 = vsel %vm3357, %v5088, %v4704
    %v5105 = vsel %vm3357, %v5089, %v4706
    %v5106 = vsel %vm3357, %v5090, %v4708
    %v5107 = vsel %vm3357, %v5091, %v4710
    %v5108 = vsel %vm3357, %v5092, %v4712
    %v5109 = vsel %vm3357, %v5093, %v4714
    %v5110 = vsel %vm3357, %v5094, %v4716
    %v5111 = vsel %vm3357, %v5095, %v4718
    %v5112 = vsel %vm3357, %v5096, %v4720
    %v5113 = vsel %vm3357, %v5097, %v4722
    %v5114 = vsel %vm3357, %v5098, %v4724
    %v5115 = vsel %vm3357, %v5099, %v4726
    %v5116 = vsel %vm3357, %v5100, %v4728
    %v5117 = vsel %vm3357, %v5101, %v4730
    %v5118 = vsel %vm3357, %v5102, %v4732
    %v5119 = vsel %vm3357, %v5103, %v4734
    %vm5120 = vcmask 261120
    %v5121 = vsel %vm5120, %v5104, %v4768
    %v5122 = vsel %vm5120, %v5105, %v4770
    %v5123 = vsel %vm5120, %v5106, %v4772
    %v5124 = vsel %vm5120, %v5107, %v4774
    %v5125 = vsel %vm5120, %v5108, %v4776
    %v5126 = vsel %vm5120, %v5109, %v4778
    %v5127 = vsel %vm5120, %v5110, %v4780
    %v5128 = vsel %vm5120, %v5111, %v4782
    %v5129 = vsel %vm5120, %v5112, %v4784
    %v5130 = vsel %vm5120, %v5113, %v4786
    %v5131 = vsel %vm5120, %v5114, %v4788
    %v5132 = vsel %vm5120, %v5115, %v4790
    %v5133 = vsel %vm5120, %v5116, %v4792
    %v5134 = vsel %vm5120, %v5117, %v4794
    %v5135 = vsel %vm5120, %v5118, %v4796
    %v5136 = vsel %vm5120, %v5119, %v4798
    %vm5137 = vcmask 326656
    %v5138 = vsel %vm5137, %v5121, %v4832
    %v5139 = vsel %vm5137, %v5122, %v4834
    %v5140 = vsel %vm5137, %v5123, %v4836
    %v5141 = vsel %vm5137, %v5124, %v4838
    %v5142 = vsel %vm5137, %v5125, %v4840
    %v5143 = vsel %vm5137, %v5126, %v4842
    %v5144 = vsel %vm5137, %v5127, %v4844
    %v5145 = vsel %vm5137, %v5128, %v4846
    %v5146 = vsel %vm5137, %v5129, %v4848
    %v5147 = vsel %vm5137, %v5130, %v4850
    %v5148 = vsel %vm5137, %v5131, %v4852
    %v5149 = vsel %vm5137, %v5132, %v4854
    %v5150 = vsel %vm5137, %v5133, %v4856
    %v5151 = vsel %vm5137, %v5134, %v4858
    %v5152 = vsel %vm5137, %v5135, %v4860
    %v5153 = vsel %vm5137, %v5136, %v4862
    %vm5154 = vcmask 392192
    %v5155 = vsel %vm5154, %v5138, %v4896
    %v5156 = vsel %vm5154, %v5139, %v4898
    %v5157 = vsel %vm5154, %v5140, %v4900
    %v5158 = vsel %vm5154, %v5141, %v4902
    %v5159 = vsel %vm5154, %v5142, %v4904
    %v5160 = vsel %vm5154, %v5143, %v4906
    %v5161 = vsel %vm5154, %v5144, %v4908
    %v5162 = vsel %vm5154, %v5145, %v4910
    %v5163 = vsel %vm5154, %v5146, %v4912
    %v5164 = vsel %vm5154, %v5147, %v4914
    %v5165 = vsel %vm5154, %v5148, %v4916
    %v5166 = vsel %vm5154, %v5149, %v4918
    %v5167 = vsel %vm5154, %v5150, %v4920
    %v5168 = vsel %vm5154, %v5151, %v4922
    %v5169 = vsel %vm5154, %v5152, %v4924
    %v5170 = vsel %vm5154, %v5153, %v4926
    %vm5171 = vcmask 457728
    %v5172 = vsel %vm5171, %v5155, %v4960
    %v5173 = vsel %vm5171, %v5156, %v4962
    %v5174 = vsel %vm5171, %v5157, %v4964
    %v5175 = vsel %vm5171, %v5158, %v4966
    %v5176 = vsel %vm5171, %v5159, %v4968
    %v5177 = vsel %vm5171, %v5160, %v4970
    %v5178 = vsel %vm5171, %v5161, %v4972
    %v5179 = vsel %vm5171, %v5162, %v4974
    %v5180 = vsel %vm5171, %v5163, %v4976
    %v5181 = vsel %vm5171, %v5164, %v4978
    %v5182 = vsel %vm5171, %v5165, %v4980
    %v5183 = vsel %vm5171, %v5166, %v4982
    %v5184 = vsel %vm5171, %v5167, %v4984
    %v5185 = vsel %vm5171, %v5168, %v4986
    %v5186 = vsel %vm5171, %v5169, %v4988
    %v5187 = vsel %vm5171, %v5170, %v4990
    %vm5188 = vcmask 523264
    %v5189 = vsel %vm5188, %v5172, %v5024
    %v5190 = vsel %vm5188, %v5173, %v5026
    %v5191 = vsel %vm5188, %v5174, %v5028
    %v5192 = vsel %vm5188, %v5175, %v5030
    %v5193 = vsel %vm5188, %v5176, %v5032
    %v5194 = vsel %vm5188, %v5177, %v5034
    %v5195 = vsel %vm5188, %v5178, %v5036
    %v5196 = vsel %vm5188, %v5179, %v5038
    %v5197 = vsel %vm5188, %v5180, %v5040
    %v5198 = vsel %vm5188, %v5181, %v5042
    %v5199 = vsel %vm5188, %v5182, %v5044
    %v5200 = vsel %vm5188, %v5183, %v5046
    %v5201 = vsel %vm5188, %v5184, %v5048
    %v5202 = vsel %vm5188, %v5185, %v5050
    %v5203 = vsel %vm5188, %v5186, %v5052
    %v5204 = vsel %vm5188, %v5187, %v5054
    %v5205 = vld [vmem:[%s3] sm:$0xff]
    %v5206 = vld [vmem:[%s3 + $0x8] sm:$0xff]
    %v5207 = vld [vmem:[%s3 + $0x10] sm:$0xff]
    %v5208 = vld [vmem:[%s3 + $0x18] sm:$0xff]
    %v5209 = vld [vmem:[%s3 + $0x20] sm:$0xff]
    %v5210 = vld [vmem:[%s3 + $0x28] sm:$0xff]
    %v5211 = vld [vmem:[%s3 + $0x30] sm:$0xff]
    %v5212 = vld [vmem:[%s3 + $0x38] sm:$0xff]
    %v5213 = vld [vmem:[%s3 + $0x40] sm:$0xff]
    %v5214 = vld [vmem:[%s4] sm:$0x1]
    %v5216 = vlaneseq
    %v5217 = vshrl.u32 %v5216, 7
    %v5218 = vsub.s32 0, %v5217
    %v5219 = vrot.slane %v5214, %v5218
    %vm5221 = vcmask 588800
    %v5223 = vsel %vm5221, %v5189, 0
    %v5226 = vsel %vm5221, %v5190, 0
    %v5229 = vsel %vm5221, %v5191, 0
    %v5232 = vsel %vm5221, %v5192, 0
    %v5235 = vsel %vm5221, %v5193, 0
    %v5238 = vsel %vm5221, %v5194, 0
    %v5241 = vsel %vm5221, %v5195, 0
    %v5244 = vsel %vm5221, %v5196, 0
    %v5247 = vsel %vm5221, %v5197, 0
    %v5250 = vsel %vm5221, %v5198, 0
    %v5253 = vsel %vm5221, %v5199, 0
    %v5256 = vsel %vm5221, %v5200, 0
    %v5259 = vsel %vm5221, %v5201, 0
    %v5262 = vsel %vm5221, %v5202, 0
    %v5265 = vsel %vm5221, %v5203, 0
    %v5268 = vsel %vm5221, %v5204, 0
    %5270 = vmatprep.subr.mxu0 0.0
    %5271 = vmatpush1.msra.mxu0 0.0
    %5272 = vmatprep.subr.mxu0 0.0
    %5273 = vmatpush1.msra.mxu0 0.0
    %5274 = vmatprep.subr.mxu0 0.0
    %5275 = vmatpush1.msra.mxu0 0.0
    %5276 = vmatprep.subr.mxu0 0.0
    %5277 = vmatpush1.msra.mxu0 0.0
    %5278 = vmatprep.subr.mxu0 0.0
    %5279 = vmatpush1.msra.mxu0 0.0
    %5280 = vmatprep.subr.mxu0 0.0
    %5281 = vmatpush1.msra.mxu0 0.0
    %5282 = vmatprep.subr.mxu0 0.0
    %5283 = vmatpush1.msra.mxu0 0.0
    %5284 = vmatprep.subr.mxu0 0.0
    %5285 = vmatpush1.msra.mxu0 %v5213
    %5286 = vmatprep.subr.mxu0 0.0
    %5287 = vmatpush1.msra.mxu0 %v5212
    %5288 = vmatprep.subr.mxu0 0.0
    %5289 = vmatpush1.msra.mxu0 %v5211
    %5290 = vmatprep.subr.mxu0 0.0
    %5291 = vmatpush1.msra.mxu0 %v5210
    %5292 = vmatprep.subr.mxu0 0.0
    %5293 = vmatpush1.msra.mxu0 %v5209
    %5294 = vmatprep.subr.mxu0 0.0
    %5295 = vmatpush1.msra.mxu0 %v5208
    %5296 = vmatprep.subr.mxu0 0.0
    %5297 = vmatpush1.msra.mxu0 %v5207
    %5298 = vmatprep.subr.mxu0 0.0
    %5299 = vmatpush1.msra.mxu0 %v5206
    %5300 = vmatprep.subr.mxu0 0.0
    %5301 = vmatpush1.msra.mxu0 %v5205
    %5302 = vmatprep.subr.mxu0 0.0
    %5303 = vmatpush2.msra.mxu0 0.0
    %5304 = vmatprep.subr.mxu0 0.0
    %5305 = vmatpush2.msra.mxu0 0.0
    %5306 = vmatprep.subr.mxu0 0.0
    %5307 = vmatpush2.msra.mxu0 0.0
    %5308 = vmatprep.subr.mxu0 0.0
    %5309 = vmatpush2.msra.mxu0 0.0
    %5310 = vmatprep.subr.mxu0 0.0
    %5311 = vmatpush2.msra.mxu0 0.0
    %5312 = vmatprep.subr.mxu0 0.0
    %5313 = vmatpush2.msra.mxu0 0.0
    %5314 = vmatprep.subr.mxu0 0.0
    %5315 = vmatpush2.msra.mxu0 0.0
    %5316 = vmatprep.subr.mxu0 0.0
    %5317 = vmatpush2.msra.mxu0 0.0
    %5318 = vmatprep.subr.mxu0 0.0
    %5319 = vmatpush2.msra.mxu0 0.0
    %5320 = vmatprep.subr.mxu0 0.0
    %5321 = vmatpush2.msra.mxu0 0.0
    %5322 = vmatprep.subr.mxu0 0.0
    %5323 = vmatpush2.msra.mxu0 0.0
    %5324 = vmatprep.subr.mxu0 0.0
    %5325 = vmatpush2.msra.mxu0 0.0
    %5326 = vmatprep.subr.mxu0 0.0
    %5327 = vmatpush2.msra.mxu0 0.0
    %5328 = vmatprep.subr.mxu0 0.0
    %5329 = vmatpush2.msra.mxu0 0.0
    %5330 = vmatprep.subr.mxu0 0.0
    %5331 = vmatpush2.msra.mxu0 0.0
    %5332 = vmatprep.subr.mxu0 0.0
    %5333 = vmatpush2.msra.mxu0 0.0
    %5334 = vmatprep.mubr.f32.mxu0 0.0
    %5335 = vmatmul.mubr.f32.gmra.mxu0 %v5223
    %v5336 = vpop.f32.mrf.mxu0
    %v5337 = vadd.f32 %v5219, %v5336
    %v5338 = vpop.f32.mrf.mxu0
    %5339 = vmatprep.mubr.f32.mxu0 0.0
    %5340 = vmatmul.mubr.f32.gmra.mxu0 %v5226
    %v5341 = vpop.f32.mrf.mxu0
    %v5342 = vadd.f32 %v5219, %v5341
    %v5343 = vpop.f32.mrf.mxu0
    %5344 = vmatprep.mubr.f32.mxu0 0.0
    %5345 = vmatmul.mubr.f32.gmra.mxu0 %v5229
    %v5346 = vpop.f32.mrf.mxu0
    %v5347 = vadd.f32 %v5219, %v5346
    %v5348 = vpop.f32.mrf.mxu0
    %5349 = vmatprep.mubr.f32.mxu0 0.0
    %5350 = vmatmul.mubr.f32.gmra.mxu0 %v5232
    %v5351 = vpop.f32.mrf.mxu0
    %v5352 = vadd.f32 %v5219, %v5351
    %v5353 = vpop.f32.mrf.mxu0
    %5354 = vmatprep.mubr.f32.mxu0 0.0
    %5355 = vmatmul.mubr.f32.gmra.mxu0 %v5235
    %v5356 = vpop.f32.mrf.mxu0
    %v5357 = vadd.f32 %v5219, %v5356
    %v5358 = vpop.f32.mrf.mxu0
    %5359 = vmatprep.mubr.f32.mxu0 0.0
    %5360 = vmatmul.mubr.f32.gmra.mxu0 %v5238
    %v5361 = vpop.f32.mrf.mxu0
    %v5362 = vadd.f32 %v5219, %v5361
    %v5363 = vpop.f32.mrf.mxu0
    %5364 = vmatprep.mubr.f32.mxu0 0.0
    %5365 = vmatmul.mubr.f32.gmra.mxu0 %v5241
    %v5366 = vpop.f32.mrf.mxu0
    %v5367 = vadd.f32 %v5219, %v5366
    %v5368 = vpop.f32.mrf.mxu0
    %5369 = vmatprep.mubr.f32.mxu0 0.0
    %5370 = vmatmul.mubr.f32.gmra.mxu0 %v5244
    %v5371 = vpop.f32.mrf.mxu0
    %v5372 = vadd.f32 %v5219, %v5371
    %v5373 = vpop.f32.mrf.mxu0
    %5374 = vmatprep.mubr.f32.mxu0 0.0
    %5375 = vmatmul.mubr.f32.gmra.mxu0 %v5247
    %v5376 = vpop.f32.mrf.mxu0
    %v5377 = vadd.f32 %v5219, %v5376
    %v5378 = vpop.f32.mrf.mxu0
    %5379 = vmatprep.mubr.f32.mxu0 0.0
    %5380 = vmatmul.mubr.f32.gmra.mxu0 %v5250
    %v5381 = vpop.f32.mrf.mxu0
    %v5382 = vadd.f32 %v5219, %v5381
    %v5383 = vpop.f32.mrf.mxu0
    %5384 = vmatprep.mubr.f32.mxu0 0.0
    %5385 = vmatmul.mubr.f32.gmra.mxu0 %v5253
    %v5386 = vpop.f32.mrf.mxu0
    %v5387 = vadd.f32 %v5219, %v5386
    %v5388 = vpop.f32.mrf.mxu0
    %5389 = vmatprep.mubr.f32.mxu0 0.0
    %5390 = vmatmul.mubr.f32.gmra.mxu0 %v5256
    %v5391 = vpop.f32.mrf.mxu0
    %v5392 = vadd.f32 %v5219, %v5391
    %v5393 = vpop.f32.mrf.mxu0
    %5394 = vmatprep.mubr.f32.mxu0 0.0
    %5395 = vmatmul.mubr.f32.gmra.mxu0 %v5259
    %v5396 = vpop.f32.mrf.mxu0
    %v5397 = vadd.f32 %v5219, %v5396
    %v5398 = vpop.f32.mrf.mxu0
    %5399 = vmatprep.mubr.f32.mxu0 0.0
    %5400 = vmatmul.mubr.f32.gmra.mxu0 %v5262
    %v5401 = vpop.f32.mrf.mxu0
    %v5402 = vadd.f32 %v5219, %v5401
    %v5403 = vpop.f32.mrf.mxu0
    %5404 = vmatprep.mubr.f32.mxu0 0.0
    %5405 = vmatmul.mubr.f32.gmra.mxu0 %v5265
    %v5406 = vpop.f32.mrf.mxu0
    %v5407 = vadd.f32 %v5219, %v5406
    %v5408 = vpop.f32.mrf.mxu0
    %5409 = vmatprep.mubr.f32.mxu0 0.0
    %5410 = vmatmul.mubr.f32.gmra.mxu0 %v5268
    %v5411 = vpop.f32.mrf.mxu0
    %v5412 = vadd.f32 %v5219, %v5411
    %v5413 = vpop.f32.mrf.mxu0
    %5414 = vdwg.mxu0
    %v5415 = vmax.f32 %v5337, 0.0
    %v5416 = vmax.f32 %v5342, 0.0
    %v5417 = vmax.f32 %v5347, 0.0
    %v5418 = vmax.f32 %v5352, 0.0
    %v5419 = vmax.f32 %v5357, 0.0
    %v5420 = vmax.f32 %v5362, 0.0
    %v5421 = vmax.f32 %v5367, 0.0
    %v5422 = vmax.f32 %v5372, 0.0
    %v5423 = vmax.f32 %v5377, 0.0
    %v5424 = vmax.f32 %v5382, 0.0
    %v5425 = vmax.f32 %v5387, 0.0
    %v5426 = vmax.f32 %v5392, 0.0
    %v5427 = vmax.f32 %v5397, 0.0
    %v5428 = vmax.f32 %v5402, 0.0
    %v5429 = vmax.f32 %v5407, 0.0
    %v5430 = vmax.f32 %v5412, 0.0
    %v5431 = vmax.f32 %v5415, %v5416
    %v5432 = vmax.f32 %v5417, %v5418
    %v5433 = vmax.f32 %v5419, %v5420
    %v5434 = vmax.f32 %v5421, %v5422
    %v5435 = vmax.f32 %v5423, %v5424
    %v5436 = vmax.f32 %v5425, %v5426
    %v5437 = vmax.f32 %v5427, %v5428
    %v5438 = vmax.f32 %v5429, %v5430
    %v5447 = vrot.slane %v5431, 1
    %v5448 = vrot.slane %v5432, 1
    %v5449 = vrot.slane %v5433, 1
    %v5450 = vrot.slane %v5434, 1
    %v5451 = vrot.slane %v5435, 1
    %v5452 = vrot.slane %v5436, 1
    %v5453 = vrot.slane %v5437, 1
    %v5454 = vrot.slane %v5438, 1
    %v5463 = vmax.f32 %v5431, %v5447
    %v5464 = vmax.f32 %v5432, %v5448
    %v5465 = vmax.f32 %v5433, %v5449
    %v5466 = vmax.f32 %v5434, %v5450
    %v5467 = vmax.f32 %v5435, %v5451
    %v5468 = vmax.f32 %v5436, %v5452
    %v5469 = vmax.f32 %v5437, %v5453
    %v5470 = vmax.f32 %v5438, %v5454
    %vm5471 = vcmask 122880
    %5472 = vst.msk [vmem:[#allocation4] sm:$0x1] %vm5471, %v5463
    %5473 = vst.msk [vmem:[#allocation4 + $0x4] sm:$0x1] %vm5471, %v5464
    %5474 = vst.msk [vmem:[#allocation4 + $0x8] sm:$0x1] %vm5471, %v5465
    %5475 = vst.msk [vmem:[#allocation4 + $0xc] sm:$0x1] %vm5471, %v5466
    %5476 = vst.msk [vmem:[#allocation4 + $0x10] sm:$0x1] %vm5471, %v5467
    %5477 = vst.msk [vmem:[#allocation4 + $0x14] sm:$0x1] %vm5471, %v5468
    %5478 = vst.msk [vmem:[#allocation4 + $0x18] sm:$0x1] %vm5471, %v5469
    %5479 = vst.msk [vmem:[#allocation4 + $0x1c] sm:$0x1] %vm5471, %v5470
    %vm5480 = vcmask 124930
    %5481 = vst.msk [vmem:[#allocation4 - $0x1] sm:$0x4] %vm5480, %v5463
    %5482 = vst.msk [vmem:[#allocation4 + $0x3] sm:$0x4] %vm5480, %v5464
    %5483 = vst.msk [vmem:[#allocation4 + $0x7] sm:$0x4] %vm5480, %v5465
    %5484 = vst.msk [vmem:[#allocation4 + $0xb] sm:$0x4] %vm5480, %v5466
    %5485 = vst.msk [vmem:[#allocation4 + $0xf] sm:$0x4] %vm5480, %v5467
    %5486 = vst.msk [vmem:[#allocation4 + $0x13] sm:$0x4] %vm5480, %v5468
    %5487 = vst.msk [vmem:[#allocation4 + $0x17] sm:$0x4] %vm5480, %v5469
    %5488 = vst.msk [vmem:[#allocation4 + $0x1b] sm:$0x4] %vm5480, %v5470
    %vm5489 = vcmask 126980
    %5490 = vst.msk [vmem:[#allocation4 - $0x2] sm:$0x10] %vm5489, %v5463
    %5491 = vst.msk [vmem:[#allocation4 + $0x2] sm:$0x10] %vm5489, %v5464
    %5492 = vst.msk [vmem:[#allocation4 + $0x6] sm:$0x10] %vm5489, %v5465
    %5493 = vst.msk [vmem:[#allocation4 + $0xa] sm:$0x10] %vm5489, %v5466
    %5494 = vst.msk [vmem:[#allocation4 + $0xe] sm:$0x10] %vm5489, %v5467
    %5495 = vst.msk [vmem:[#allocation4 + $0x12] sm:$0x10] %vm5489, %v5468
    %5496 = vst.msk [vmem:[#allocation4 + $0x16] sm:$0x10] %vm5489, %v5469
    %5497 = vst.msk [vmem:[#allocation4 + $0x1a] sm:$0x10] %vm5489, %v5470
    %vm5498 = vcmask 129030
    %5499 = vst.msk [vmem:[#allocation4 - $0x3] sm:$0x40] %vm5498, %v5463
    %5500 = vst.msk [vmem:[#allocation4 + $0x1] sm:$0x40] %vm5498, %v5464
    %5501 = vst.msk [vmem:[#allocation4 + $0x5] sm:$0x40] %vm5498, %v5465
    %5502 = vst.msk [vmem:[#allocation4 + $0x9] sm:$0x40] %vm5498, %v5466
    %5503 = vst.msk [vmem:[#allocation4 + $0xd] sm:$0x40] %vm5498, %v5467
    %5504 = vst.msk [vmem:[#allocation4 + $0x11] sm:$0x40] %vm5498, %v5468
    %5505 = vst.msk [vmem:[#allocation4 + $0x15] sm:$0x40] %vm5498, %v5469
    %5506 = vst.msk [vmem:[#allocation4 + $0x19] sm:$0x40] %vm5498, %v5470
    %v5507 = vld [vmem:[#allocation4] sm:$0xf]
    %v5508 = vld [vmem:[#allocation4 + $0x4] sm:$0xf]
    %v5509 = vld [vmem:[#allocation4 + $0x8] sm:$0xf]
    %v5510 = vld [vmem:[#allocation4 + $0xc] sm:$0xf]
    %v5511 = vld [vmem:[#allocation4 + $0x10] sm:$0xf]
    %v5512 = vld [vmem:[#allocation4 + $0x14] sm:$0xf]
    %v5513 = vld [vmem:[#allocation4 + $0x18] sm:$0xf]
    %v5514 = vld [vmem:[#allocation4 + $0x1c] sm:$0xf]
    %v5515 = vadd.f32 %v5507, %v5508
    %v5516 = vadd.f32 %v5509, %v5510
    %v5517 = vadd.f32 %v5511, %v5512
    %v5518 = vadd.f32 %v5513, %v5514
    %v5519 = vmul.f32 %v5515, 0.5
    %v5520 = vmul.f32 %v5516, 0.5
    %v5521 = vmul.f32 %v5517, 0.5
    %v5522 = vmul.f32 %v5518, 0.5
    %v5527 = vrot.slane %v5519, 1
    %v5528 = vrot.slane %v5520, 1
    %v5529 = vrot.slane %v5521, 1
    %v5530 = vrot.slane %v5522, 1
    %v5535 = vadd.f32 %v5519, %v5527
    %v5536 = vadd.f32 %v5520, %v5528
    %v5537 = vadd.f32 %v5521, %v5529
    %v5538 = vadd.f32 %v5522, %v5530
    %v5539 = vmul.f32 %v5535, 0.5
    %v5540 = vmul.f32 %v5536, 0.5
    %v5541 = vmul.f32 %v5537, 0.5
    %v5542 = vmul.f32 %v5538, 0.5
    %5543 = vst.msk [vmem:[#allocation5] sm:$0x1] %vm5471, %v5539
    %5544 = vst.msk [vmem:[#allocation5 + $0x2] sm:$0x1] %vm5471, %v5540
    %5545 = vst.msk [vmem:[#allocation5 + $0x4] sm:$0x1] %vm5471, %v5541
    %5546 = vst.msk [vmem:[#allocation5 + $0x6] sm:$0x1] %vm5471, %v5542
    %5547 = vst.msk [vmem:[#allocation5 - $0x1] sm:$0x4] %vm5480, %v5539
    %5548 = vst.msk [vmem:[#allocation5 + $0x1] sm:$0x4] %vm5480, %v5540
    %5549 = vst.msk [vmem:[#allocation5 + $0x3] sm:$0x4] %vm5480, %v5541
    %5550 = vst.msk [vmem:[#allocation5 + $0x5] sm:$0x4] %vm5480, %v5542
    %v5551 = vld [vmem:[#allocation5] sm:$0x1]
    %v5552 = vld [vmem:[#allocation5 + $0x4] sm:$0x1]
    %v5553 = vld [vmem:[#allocation5 + $0x1] sm:$0x1]
    %v5554 = vld [vmem:[#allocation5 + $0x5] sm:$0x1]
    %s5555 = scalar_lea.vmem [#allocation5], 2
    %v5556 = vld [vmem:[%s5555] sm:$0x1]
    %v5557 = vld [vmem:[%s5555 + $0x4] sm:$0x1]
    %v5558 = vld [vmem:[%s5555 + $0x1] sm:$0x1]
    %v5559 = vld [vmem:[%s5555 + $0x5] sm:$0x1]
    %v5562 = vrot.slane %v5552, 7
    %vm5563 = vcmask 1041409
    %v5564 = vsel %vm5563, %v5562, %v5551
    %v5568 = vrot.slane %v5554, 7
    %v5569 = vsel %vm5563, %v5568, %v5553
    %5570 = vrot.lane.b32.xlu0 %v5569, 16
    %v5571 = vpop.permute.xlu0 %5570
    %v5575 = vrot.slane %v5557, 7
    %v5576 = vsel %vm5563, %v5575, %v5556
    %5577 = vrot.lane.b32.xlu0 %v5576, 32
    %v5578 = vpop.permute.xlu0 %5577
    %v5582 = vrot.slane %v5559, 7
    %v5583 = vsel %vm5563, %v5582, %v5558
    %5584 = vrot.lane.b32.xlu0 %v5583, 48
    %v5585 = vpop.permute.xlu0 %5584
    %v5587 = vsel %vm5087, %v5564, %v5571
    %v5588 = vsel %vm5120, %v5587, %v5578
    %v5589 = vsel %vm5154, %v5588, %v5585
    %v5590 = vld [vmem:[%s5] sm:$0xff]
    %v5591 = vld [vmem:[%s5 + $0x8] sm:$0xff]
    %v5592 = vld [vmem:[%s5 + $0x10] sm:$0xff]
    %v5593 = vld [vmem:[%s5 + $0x18] sm:$0xff]
    %v5594 = vld [vmem:[%s5 + $0x20] sm:$0xff]
    %v5595 = vld [vmem:[%s5 + $0x28] sm:$0xff]
    %v5596 = vld [vmem:[%s5 + $0x30] sm:$0xff]
    %v5597 = vld [vmem:[%s5 + $0x38] sm:$0xff]
    %v5598 = vld [vmem:[%s6] sm:$0x1]
    %v5600 = vlaneseq
    %v5601 = vshrl.u32 %v5600, 7
    %v5602 = vsub.s32 0, %v5601
    %v5603 = vrot.slane %v5598, %v5602
    %v5606 = vsel %vm5188, %v5589, 0
    %5608 = vmatprep.subr.mxu0 0.0
    %5609 = vmatpush1.msra.mxu0 0.0
    %5610 = vmatprep.subr.mxu0 0.0
    %5611 = vmatpush1.msra.mxu0 0.0
    %5612 = vmatprep.subr.mxu0 0.0
    %5613 = vmatpush1.msra.mxu0 0.0
    %5614 = vmatprep.subr.mxu0 0.0
    %5615 = vmatpush1.msra.mxu0 0.0
    %5616 = vmatprep.subr.mxu0 0.0
    %5617 = vmatpush1.msra.mxu0 0.0
    %5618 = vmatprep.subr.mxu0 0.0
    %5619 = vmatpush1.msra.mxu0 0.0
    %5620 = vmatprep.subr.mxu0 0.0
    %5621 = vmatpush1.msra.mxu0 0.0
    %5622 = vmatprep.subr.mxu0 0.0
    %5623 = vmatpush1.msra.mxu0 0.0
    %5624 = vmatprep.subr.mxu0 0.0
    %5625 = vmatpush1.msra.mxu0 %v5597
    %5626 = vmatprep.subr.mxu0 0.0
    %5627 = vmatpush1.msra.mxu0 %v5596
    %5628 = vmatprep.subr.mxu0 0.0
    %5629 = vmatpush1.msra.mxu0 %v5595
    %5630 = vmatprep.subr.mxu0 0.0
    %5631 = vmatpush1.msra.mxu0 %v5594
    %5632 = vmatprep.subr.mxu0 0.0
    %5633 = vmatpush1.msra.mxu0 %v5593
    %5634 = vmatprep.subr.mxu0 0.0
    %5635 = vmatpush1.msra.mxu0 %v5592
    %5636 = vmatprep.subr.mxu0 0.0
    %5637 = vmatpush1.msra.mxu0 %v5591
    %5638 = vmatprep.subr.mxu0 0.0
    %5639 = vmatpush1.msra.mxu0 %v5590
    %5640 = vmatprep.subr.mxu0 0.0
    %5641 = vmatpush2.msra.mxu0 0.0
    %5642 = vmatprep.subr.mxu0 0.0
    %5643 = vmatpush2.msra.mxu0 0.0
    %5644 = vmatprep.subr.mxu0 0.0
    %5645 = vmatpush2.msra.mxu0 0.0
    %5646 = vmatprep.subr.mxu0 0.0
    %5647 = vmatpush2.msra.mxu0 0.0
    %5648 = vmatprep.subr.mxu0 0.0
    %5649 = vmatpush2.msra.mxu0 0.0
    %5650 = vmatprep.subr.mxu0 0.0
    %5651 = vmatpush2.msra.mxu0 0.0
    %5652 = vmatprep.subr.mxu0 0.0
    %5653 = vmatpush2.msra.mxu0 0.0
    %5654 = vmatprep.subr.mxu0 0.0
    %5655 = vmatpush2.msra.mxu0 0.0
    %5656 = vmatprep.subr.mxu0 0.0
    %5657 = vmatpush2.msra.mxu0 0.0
    %5658 = vmatprep.subr.mxu0 0.0
    %5659 = vmatpush2.msra.mxu0 0.0
    %5660 = vmatprep.subr.mxu0 0.0
    %5661 = vmatpush2.msra.mxu0 0.0
    %5662 = vmatprep.subr.mxu0 0.0
    %5663 = vmatpush2.msra.mxu0 0.0
    %5664 = vmatprep.subr.mxu0 0.0
    %5665 = vmatpush2.msra.mxu0 0.0
    %5666 = vmatprep.subr.mxu0 0.0
    %5667 = vmatpush2.msra.mxu0 0.0
    %5668 = vmatprep.subr.mxu0 0.0
    %5669 = vmatpush2.msra.mxu0 0.0
    %5670 = vmatprep.subr.mxu0 0.0
    %5671 = vmatpush2.msra.mxu0 0.0
    %5672 = vmatprep.mubr.f32.mxu0 0.0
    %5673 = vmatmul.mubr.f32.gmra.mxu0 %v5606
    %v5674 = vpop.f32.mrf.mxu0
    %v5675 = vadd.f32 %v5603, %v5674
    %v5676 = vpop.f32.mrf.mxu0
    %5677 = vdwg.mxu0
    %v5678 = vmax.f32 %v5675, 0.0
    %v5679 = vld [vmem:[%s7] sm:$0xff]
    %v5680 = vld [vmem:[%s7 + $0x8] sm:$0xff]
    %v5681 = vld [vmem:[%s7 + $0x10] sm:$0xff]
    %v5682 = vld [vmem:[%s7 + $0x18] sm:$0xff]
    %v5683 = vld [vmem:[%s8] sm:$0x1]
    %v5685 = vlaneseq
    %v5686 = vshrl.u32 %v5685, 7
    %v5687 = vsub.s32 0, %v5686
    %v5688 = vrot.slane %v5683, %v5687
    %v5691 = vsel %vm5120, %v5678, 0
    %5693 = vmatprep.subr.mxu0 0.0
    %5694 = vmatpush1.msra.mxu0 0.0
    %5695 = vmatprep.subr.mxu0 0.0
    %5696 = vmatpush1.msra.mxu0 0.0
    %5697 = vmatprep.subr.mxu0 0.0
    %5698 = vmatpush1.msra.mxu0 0.0
    %5699 = vmatprep.subr.mxu0 0.0
    %5700 = vmatpush1.msra.mxu0 0.0
    %5701 = vmatprep.subr.mxu0 0.0
    %5702 = vmatpush1.msra.mxu0 0.0
    %5703 = vmatprep.subr.mxu0 0.0
    %5704 = vmatpush1.msra.mxu0 0.0
    %5705 = vmatprep.subr.mxu0 0.0
    %5706 = vmatpush1.msra.mxu0 0.0
    %5707 = vmatprep.subr.mxu0 0.0
    %5708 = vmatpush1.msra.mxu0 0.0
    %5709 = vmatprep.subr.mxu0 0.0
    %5710 = vmatpush1.msra.mxu0 0.0
    %5711 = vmatprep.subr.mxu0 0.0
    %5712 = vmatpush1.msra.mxu0 0.0
    %5713 = vmatprep.subr.mxu0 0.0
    %5714 = vmatpush1.msra.mxu0 0.0
    %5715 = vmatprep.subr.mxu0 0.0
    %5716 = vmatpush1.msra.mxu0 0.0
    %5717 = vmatprep.subr.mxu0 0.0
    %5718 = vmatpush1.msra.mxu0 %v5682
    %5719 = vmatprep.subr.mxu0 0.0
    %5720 = vmatpush1.msra.mxu0 %v5681
    %5721 = vmatprep.subr.mxu0 0.0
    %5722 = vmatpush1.msra.mxu0 %v5680
    %5723 = vmatprep.subr.mxu0 0.0
    %5724 = vmatpush1.msra.mxu0 %v5679
    %5725 = vmatprep.subr.mxu0 0.0
    %5726 = vmatpush2.msra.mxu0 0.0
    %5727 = vmatprep.subr.mxu0 0.0
    %5728 = vmatpush2.msra.mxu0 0.0
    %5729 = vmatprep.subr.mxu0 0.0
    %5730 = vmatpush2.msra.mxu0 0.0
    %5731 = vmatprep.subr.mxu0 0.0
    %5732 = vmatpush2.msra.mxu0 0.0
    %5733 = vmatprep.subr.mxu0 0.0
    %5734 = vmatpush2.msra.mxu0 0.0
    %5735 = vmatprep.subr.mxu0 0.0
    %5736 = vmatpush2.msra.mxu0 0.0
    %5737 = vmatprep.subr.mxu0 0.0
    %5738 = vmatpush2.msra.mxu0 0.0
    %5739 = vmatprep.subr.mxu0 0.0
    %5740 = vmatpush2.msra.mxu0 0.0
    %5741 = vmatprep.subr.mxu0 0.0
    %5742 = vmatpush2.msra.mxu0 0.0
    %5743 = vmatprep.subr.mxu0 0.0
    %5744 = vmatpush2.msra.mxu0 0.0
    %5745 = vmatprep.subr.mxu0 0.0
    %5746 = vmatpush2.msra.mxu0 0.0
    %5747 = vmatprep.subr.mxu0 0.0
    %5748 = vmatpush2.msra.mxu0 0.0
    %5749 = vmatprep.subr.mxu0 0.0
    %5750 = vmatpush2.msra.mxu0 0.0
    %5751 = vmatprep.subr.mxu0 0.0
    %5752 = vmatpush2.msra.mxu0 0.0
    %5753 = vmatprep.subr.mxu0 0.0
    %5754 = vmatpush2.msra.mxu0 0.0
    %5755 = vmatprep.subr.mxu0 0.0
    %5756 = vmatpush2.msra.mxu0 0.0
    %5757 = vmatprep.mubr.f32.mxu0 0.0
    %5758 = vmatmul.mubr.f32.gmra.mxu0 %v5691
    %v5759 = vpop.f32.mrf.mxu0
    %v5760 = vadd.f32 %v5688, %v5759
    %v5761 = vpop.f32.mrf.mxu0
    %5762 = vdwg.mxu0
    %v5763 = vmax.f32 %v5760, 0.0
    %v5764 = vld [vmem:[%s9] sm:$0xff]
    %v5765 = vld [vmem:[%s9 + $0x8] sm:$0x3]
    %v5766 = vld [vmem:[%s10] sm:$0x1]
    %v5768 = vlaneseq
    %v5769 = vshrl.u32 %v5768, 7
    %v5770 = vsub.s32 0, %v5769
    %v5771 = vrot.slane %v5766, %v5770
    %vm5773 = vcmask 80896
    %v5775 = vsel %vm5773, %v5763, 0
    %vm5777 = vcmask 1041408
    %v5779 = vsel %vm5777, %v5765, 0
    %5781 = vmatprep.subr.mxu0 0.0
    %5782 = vmatpush1.msra.mxu0 0.0
    %5783 = vmatprep.subr.mxu0 0.0
    %5784 = vmatpush1.msra.mxu0 0.0
    %5785 = vmatprep.subr.mxu0 0.0
    %5786 = vmatpush1.msra.mxu0 0.0
    %5787 = vmatprep.subr.mxu0 0.0
    %5788 = vmatpush1.msra.mxu0 0.0
    %5789 = vmatprep.subr.mxu0 0.0
    %5790 = vmatpush1.msra.mxu0 0.0
    %5791 = vmatprep.subr.mxu0 0.0
    %5792 = vmatpush1.msra.mxu0 0.0
    %5793 = vmatprep.subr.mxu0 0.0
    %5794 = vmatpush1.msra.mxu0 0.0
    %5795 = vmatprep.subr.mxu0 0.0
    %5796 = vmatpush1.msra.mxu0 0.0
    %5797 = vmatprep.subr.mxu0 0.0
    %5798 = vmatpush1.msra.mxu0 0.0
    %5799 = vmatprep.subr.mxu0 0.0
    %5800 = vmatpush1.msra.mxu0 0.0
    %5801 = vmatprep.subr.mxu0 0.0
    %5802 = vmatpush1.msra.mxu0 0.0
    %5803 = vmatprep.subr.mxu0 0.0
    %5804 = vmatpush1.msra.mxu0 0.0
    %5805 = vmatprep.subr.mxu0 0.0
    %5806 = vmatpush1.msra.mxu0 0.0
    %5807 = vmatprep.subr.mxu0 0.0
    %5808 = vmatpush1.msra.mxu0 0.0
    %5809 = vmatprep.subr.mxu0 0.0
    %5810 = vmatpush1.msra.mxu0 %v5779
    %5811 = vmatprep.subr.mxu0 0.0
    %5812 = vmatpush1.msra.mxu0 %v5764
    %5813 = vmatprep.subr.mxu0 0.0
    %5814 = vmatpush2.msra.mxu0 0.0
    %5815 = vmatprep.subr.mxu0 0.0
    %5816 = vmatpush2.msra.mxu0 0.0
    %5817 = vmatprep.subr.mxu0 0.0
    %5818 = vmatpush2.msra.mxu0 0.0
    %5819 = vmatprep.subr.mxu0 0.0
    %5820 = vmatpush2.msra.mxu0 0.0
    %5821 = vmatprep.subr.mxu0 0.0
    %5822 = vmatpush2.msra.mxu0 0.0
    %5823 = vmatprep.subr.mxu0 0.0
    %5824 = vmatpush2.msra.mxu0 0.0
    %5825 = vmatprep.subr.mxu0 0.0
    %5826 = vmatpush2.msra.mxu0 0.0
    %5827 = vmatprep.subr.mxu0 0.0
    %5828 = vmatpush2.msra.mxu0 0.0
    %5829 = vmatprep.subr.mxu0 0.0
    %5830 = vmatpush2.msra.mxu0 0.0
    %5831 = vmatprep.subr.mxu0 0.0
    %5832 = vmatpush2.msra.mxu0 0.0
    %5833 = vmatprep.subr.mxu0 0.0
    %5834 = vmatpush2.msra.mxu0 0.0
    %5835 = vmatprep.subr.mxu0 0.0
    %5836 = vmatpush2.msra.mxu0 0.0
    %5837 = vmatprep.subr.mxu0 0.0
    %5838 = vmatpush2.msra.mxu0 0.0
    %5839 = vmatprep.subr.mxu0 0.0
    %5840 = vmatpush2.msra.mxu0 0.0
    %5841 = vmatprep.subr.mxu0 0.0
    %5842 = vmatpush2.msra.mxu0 0.0
    %5843 = vmatprep.subr.mxu0 0.0
    %5844 = vmatpush2.msra.mxu0 0.0
    %5845 = vmatprep.mubr.f32.mxu0 0.0
    %5846 = vmatmul.mubr.f32.gmra.mxu0 %v5775
    %v5847 = vpop.f32.mrf.mxu0
    %v5848 = vadd.f32 %v5771, %v5847
    %v5849 = vpop.f32.mrf.mxu0
    %5850 = vdwg.mxu0
    %vm5851 = vcmask 9216
    %5852 = vst.msk [vmem:[#allocation6] sm:$0x3] %vm5851, %v5848
    // Predicated region
    $region46: #{head_vgg_forward.1} parent=1 // pred_check
      _
    $region47: #{head_vgg_forward.1} parent=1 // pred_check_branch
      %5854 = sbr.rel (0) target = $region49
    $region48: #{head_vgg_forward.1} parent=1 // pred_region
      %s5856 = ssub.s32 32, 32
      %5857 = vsyncadd [#allocation7], %s5856
      %s5859 = sshll.u32 [#allocation6], 4
      %s5860 = int_to_ptr.vmem [resolvable:$true] %s5859
      %5862 = dma.vmem_to_hbm [thread:$0]  %s5860, 32, %s11, [#allocation7]
    $region49: #{head_vgg_forward.1} parent=1 // pred_fallthru
      _
    // Predicated region
    $region50: #{head_vgg_forward.1} parent=1 // pred_check
      _
    $region51: #{head_vgg_forward.1} parent=1 // pred_check_branch
      %5864 = sbr.rel (0) target = $region53
    $region52: #{head_vgg_forward.1} parent=1 // pred_region
      %5865 = dma.done [#allocation7], 32
    $region53: #{head_vgg_forward.1} parent=1 // pred_fallthru
      _
    %5866 = vsyncpa [#allocation7], 1

</llo_original>
